<compile_context>
chip_gen: v7x
topology: tpu7x:2x2x1
jax: 0.10.0
libtpu: 0.0.40
codegen_flags: <defaults>
</compile_context>

<pallas_src>
import jax
import jax.numpy as jnp
from jax.experimental import pallas as pl
from jax.experimental.pallas import tpu as pltpu


# ----------------------------------------------------------------------------
# Kernel
# ----------------------------------------------------------------------------
def bottleneck_kernel(x_ref, w1_ref, b1_ref, w2_ref, b2_ref, w3_ref, b3_ref,
                      out_ref):
    _, H, W, Cin = x_ref.shape
    P = w1_ref.shape[1]
    Cout = w3_ref.shape[1]
    HW = H * W

    # ---- conv1 (1x1, no bias) + bn1 (folded) + relu --------------------------
    x_bf16 = x_ref[...].reshape(HW, Cin)                     # already bf16 in HBM
    h1 = jnp.dot(x_bf16, w1_ref[...],
                 preferred_element_type=jnp.float32) + b1_ref[...]
    h1 = jnp.maximum(h1, 0.0)                                # (HW, P) f32

    # ---- conv2 (3x3, stride=1, pad=1) + bn2 (folded) + relu ------------------
    # Row-padded, flattened copy of h1: zero rows above/below == conv2 zero pad.
    # Sublane-aligned concat (W is a multiple of 8).
    zrow = jnp.zeros((W, P), jnp.float32)
    hp = jnp.concatenate([zrow, h1, zrow], axis=0)           # ((H+2)*W, P)

    # Column-validity masks for the +-1 shifts along W: the shifted-in values
    # at the image border are exactly conv2's zero padding.
    w_idx = jax.lax.broadcasted_iota(jnp.int32, (HW, P), 0) % W
    valid_left = w_idx != 0                                  # reading column w-1 ok
    valid_right = w_idx != (W - 1)                           # reading column w+1 ok

    h2 = jnp.zeros((HW, P), jnp.float32)
    for dh in (-1, 0, 1):
        # Sublane-aligned slice (offset (dh+1)*W, W multiple of 8): cheap.
        slab = hp[(dh + 1) * W:(dh + 1) * W + HW, :]
        for dw in (-1, 0, 1):
            if dw == 0:
                tap = slab
            else:
                # Shift along W == sublane roll of the flattened array (XLU,
                # overlaps the MXU); mask the wrapped / out-of-image column.
                rolled = pltpu.roll(slab, (-dw) % HW, 0)
                mask = valid_left if dw == -1 else valid_right
                tap = jnp.where(mask, rolled, jnp.zeros_like(rolled))
            k = (dh + 1) * 3 + (dw + 1)
            h2 = h2 + jnp.dot(tap.astype(jnp.bfloat16), w2_ref[k],
                              preferred_element_type=jnp.float32)
    h2 = jnp.maximum(h2 + b2_ref[...], 0.0).astype(jnp.bfloat16)

    # ---- conv3 (1x1, no bias) + bn3 (folded) + residual + relu ---------------
    h3 = jnp.dot(h2, w3_ref[...],
                 preferred_element_type=jnp.float32) + b3_ref[...]
    # Re-read x for the residual (cheap vld) instead of keeping it live.
    res = x_ref[...].reshape(HW, Cout).astype(jnp.float32)
    out = jnp.maximum(h3 + res, 0.0)
    out_ref[...] = out.reshape(1, H, W, Cout).astype(out_ref.dtype)


# ----------------------------------------------------------------------------
# Wrapper
# ----------------------------------------------------------------------------
def bottleneck_forward(x, folded_params):
    w1, b1, w2, b2, w3, b3 = folded_params
    N, H, W, Cin = x.shape
    Cout = w3.shape[1]
    assert Cin == Cout, "no-downsample Bottleneck requires inplanes == 4*planes"

    # bf16 HBM I/O: halves memory traffic for this memory-bound layer.
    x = x.astype(jnp.bfloat16)

    def img_map(n):
        return (n, 0, 0, 0)

    def resident2(n):                       # weights/biases: resident, never re-DMA'd
        return (0, 0)

    def resident3(n):
        return (0, 0, 0)

    grid_spec = pltpu.PrefetchScalarGridSpec(
        num_scalar_prefetch=0,
        grid=(N,),
        in_specs=[
            pl.BlockSpec((1, H, W, Cin), img_map),   # whole image per step
            pl.BlockSpec(w1.shape, resident2),
            pl.BlockSpec(b1.shape, resident2),
            pl.BlockSpec(w2.shape, resident3),
            pl.BlockSpec(b2.shape, resident2),
            pl.BlockSpec(w3.shape, resident2),
            pl.BlockSpec(b3.shape, resident2),
        ],
        out_specs=pl.BlockSpec((1, H, W, Cout), img_map),
    )

    return pl.pallas_call(
        bottleneck_kernel,
        out_shape=jax.ShapeDtypeStruct((N, H, W, Cout), jnp.bfloat16),
        grid_spec=grid_spec,
        compiler_params=pltpu.CompilerParams(
            dimension_semantics=("parallel",),
            vmem_limit_bytes=48 * 1024 * 1024,   # safe on v7x's 64 MiB physical VMEM
        ),
    )(x, w1, b1, w2, b2, w3, b3)


# ----------------------------------------------------------------------------
# Parameters (synthetic, deterministic) + BN folding
# ----------------------------------------------------------------------------
def make_params(key, inplanes, planes):
    """Raw conv weights + BN running stats (inference mode).

    PyTorch shapes:
      conv1.weight (planes, inplanes, 1, 1)  -> here (inplanes, planes)
      conv2.weight (planes, planes, 3, 3)    -> here (9, planes_in, planes_out)
      conv3.weight (4*planes, planes, 1, 1)  -> here (planes, 4*planes)
    """
    cout = planes * 4
    ks = jax.random.split(key, 15)

    def bn_stats(kg, kb, km, kv, c):
        gamma = 1.0 + 0.1 * jax.random.normal(kg, (c,), jnp.float32)
        beta = 0.1 * jax.random.normal(kb, (c,), jnp.float32)
        mean = 0.1 * jax.random.normal(km, (c,), jnp.float32)
        var = 0.5 + 0.1 * jnp.abs(jax.random.normal(kv, (c,), jnp.float32))
        return gamma, beta, mean, var

    w1 = jax.random.normal(ks[0], (inplanes, planes), jnp.float32) / float(inplanes) ** 0.5
    w2 = jax.random.normal(ks[1], (9, planes, planes), jnp.float32) / float(9 * planes) ** 0.5
    w3 = jax.random.normal(ks[2], (planes, cout), jnp.float32) / float(planes) ** 0.5
    bn1 = bn_stats(ks[3], ks[4], ks[5], ks[6], planes)
    bn2 = bn_stats(ks[7], ks[8], ks[9], ks[10], planes)
    bn3 = bn_stats(ks[11], ks[12], ks[13], ks[14], cout)
    return w1, w2, w3, bn1, bn2, bn3


def fold_params(raw, eps=1e-5):
    """Fold BN scale into conv weights (bf16 for the MXU); keep f32 biases."""
    w1, w2, w3, bn1, bn2, bn3 = raw

    def fold(gamma, beta, mean, var):
        scale = gamma / jnp.sqrt(var + eps)
        bias = beta - mean * scale
        return scale, bias

    s1, b1 = fold(*bn1)
    s2, b2 = fold(*bn2)
    s3, b3 = fold(*bn3)
    w1f = (w1 * s1[None, :]).astype(jnp.bfloat16)              # (Cin, P)
    w2f = (w2 * s2[None, None, :]).astype(jnp.bfloat16)        # (9, P, P)
    w3f = (w3 * s3[None, :]).astype(jnp.bfloat16)              # (P, 4P)
    return (w1f, b1.reshape(1, -1), w2f, b2.reshape(1, -1), w3f, b3.reshape(1, -1))


# ----------------------------------------------------------------------------
# Pure-JAX reference (same math: bf16 MXU operands, f32 accumulate/elementwise)
# ----------------------------------------------------------------------------
def bottleneck_reference(x_bf16, folded_params):
    w1, b1, w2, b2, w3, b3 = folded_params
    N, H, W, Cin = x_bf16.shape
    P = w1.shape[1]

    h1 = jnp.maximum(
        jnp.dot(x_bf16.reshape(-1, Cin), w1,
                preferred_element_type=jnp.float32) + b1, 0.0)
    h1 = h1.reshape(N, H, W, P).astype(jnp.bfloat16)

    hp = jnp.pad(h1, ((0, 0), (1, 1), (1, 1), (0, 0)))
    h2 = jnp.zeros((N * H * W, P), jnp.float32)
    for kh in range(3):
        for kw in range(3):
            tap = hp[:, kh:kh + H, kw:kw + W, :].reshape(-1, P)
            h2 = h2 + jnp.dot(tap, w2[kh * 3 + kw],
                              preferred_element_type=jnp.float32)
    h2 = jnp.maximum(h2 + b2, 0.0).astype(jnp.bfloat16)

    h3 = jnp.dot(h2, w3, preferred_element_type=jnp.float32) + b3
    out = jnp.maximum(h3 + x_bf16.reshape(-1, Cin).astype(jnp.float32), 0.0)
    return out.reshape(N, H, W, -1)


# ----------------------------------------------------------------------------
if __name__ == "__main__":
    N, H, W = 2, 16, 16
    planes = 32                       # Cin = Cout = 4*planes = 128 (lane-dense)
    inplanes = planes * 4             # residual add requires inplanes == 4*planes

    key = jax.random.PRNGKey(0)
    kx, kp = jax.random.split(key)
    x = jax.random.normal(kx, (N, H, W, inplanes), jnp.float32).astype(jnp.bfloat16)
    raw = make_params(kp, inplanes, planes)
    params = fold_params(raw)

    y = jax.block_until_ready(bottleneck_forward(x, params))
    y_ref = bottleneck_reference(x, params)

    assert y.shape == (N, H, W, planes * 4)
    assert y.dtype == jnp.bfloat16
    assert jnp.allclose(y.astype(jnp.float32), y_ref, rtol=2e-2, atol=2e-2), \
        "mismatch vs reference"

    print("KERNEL_OK")
</pallas_src>

<mosaic_0001>
module attributes {stable_mosaic.version = 11 : i64} {
  func.func @bottleneck_kernel(%arg0: i32, %arg1: memref<1x16x16x128xbf16, #tpu.memory_space<vmem>>, %arg2: memref<128x32xbf16, #tpu.memory_space<vmem>>, %arg3: memref<1x32xf32, #tpu.memory_space<vmem>>, %arg4: memref<9x32x32xbf16, #tpu.memory_space<vmem>>, %arg5: memref<1x32xf32, #tpu.memory_space<vmem>>, %arg6: memref<32x128xbf16, #tpu.memory_space<vmem>>, %arg7: memref<1x128xf32, #tpu.memory_space<vmem>>, %arg8: memref<1x16x16x128xbf16, #tpu.memory_space<vmem>>) attributes {dimension_semantics = [#tpu.dimension_semantics<parallel>], iteration_bounds = array<i64: 2>, scalar_prefetch = 0 : i64, scratch_operands = 0 : i64, tpu.core_type = #tpu.core_type<tc>, window_params = [{transform_indices = @transform_0, window_bounds = array<i64: 1, 16, 16, 128>}, {pipeline_mode = #tpu.pipeline_mode<synchronous>, transform_indices = @transform_1, window_bounds = array<i64: 128, 32>}, {pipeline_mode = #tpu.pipeline_mode<synchronous>, transform_indices = @transform_2, window_bounds = array<i64: 1, 32>}, {pipeline_mode = #tpu.pipeline_mode<synchronous>, transform_indices = @transform_3, window_bounds = array<i64: 9, 32, 32>}, {pipeline_mode = #tpu.pipeline_mode<synchronous>, transform_indices = @transform_4, window_bounds = array<i64: 1, 32>}, {pipeline_mode = #tpu.pipeline_mode<synchronous>, transform_indices = @transform_5, window_bounds = array<i64: 32, 128>}, {pipeline_mode = #tpu.pipeline_mode<synchronous>, transform_indices = @transform_6, window_bounds = array<i64: 1, 128>}, {transform_indices = @transform_7, window_bounds = array<i64: 1, 16, 16, 128>}]} {
    %c0 = arith.constant 0 : index
    %c0_0 = arith.constant 0 : index
    %c0_1 = arith.constant 0 : index
    %c0_2 = arith.constant 0 : index
    %0 = vector.load %arg1[%c0, %c0_0, %c0_1, %c0_2] : memref<1x16x16x128xbf16, #tpu.memory_space<vmem>>, vector<1x16x16x128xbf16>
    %1 = vector.shape_cast %0 : vector<1x16x16x128xbf16> to vector<256x128xbf16>
    %c0_3 = arith.constant 0 : index
    %c0_4 = arith.constant 0 : index
    %2 = vector.load %arg2[%c0_3, %c0_4] : memref<128x32xbf16, #tpu.memory_space<vmem>>, vector<128x32xbf16>
    %cst = arith.constant dense<0.000000e+00> : vector<256x32xf32>
    %3 = tpu.matmul %1, %2, %cst {dimension_numbers = #tpu.dot_dimension_numbers<[1], [0], [0], [1], [0, 0, 1, 1], [], []>} : vector<256x128xbf16>, vector<128x32xbf16>, vector<256x32xf32> -> vector<256x32xf32>
    %c0_5 = arith.constant 0 : index
    %c0_6 = arith.constant 0 : index
    %4 = vector.load %arg3[%c0_5, %c0_6] : memref<1x32xf32, #tpu.memory_space<vmem>>, vector<1x32xf32>
    %5 = vector.broadcast %4 : vector<1x32xf32> to vector<256x32xf32>
    %6 = arith.addf %3, %5 : vector<256x32xf32>
    %cst_7 = arith.constant 0.000000e+00 : f32
    %7 = vector.broadcast %cst_7 : f32 to vector<256x32xf32>
    %8 = arith.maximumf %6, %7 : vector<256x32xf32>
    %cst_8 = arith.constant 0.000000e+00 : f32
    %9 = vector.broadcast %cst_8 : f32 to vector<16x32xf32>
    %10 = tpu.concatenate %9, %8, %9 in 0 : vector<16x32xf32>, vector<256x32xf32>, vector<16x32xf32> -> vector<288x32xf32>
    %11 = tpu.iota {dimensions = array<i32: 0>} : vector<256x32xi32>
    %c16_i32 = arith.constant 16 : i32
    %c0_i32 = arith.constant 0 : i32
    %12 = arith.cmpi eq, %c16_i32, %c0_i32 : i32
    %c1_i32 = arith.constant 1 : i32
    %13 = arith.select %12, %c1_i32, %c16_i32 : i32
    %14 = vector.broadcast %13 : i32 to vector<256x32xi32>
    %15 = arith.remsi %11, %14 : vector<256x32xi32>
    %c0_i32_9 = arith.constant 0 : i32
    %16 = vector.broadcast %c0_i32_9 : i32 to vector<256x32xi32>
    %17 = arith.cmpi ne, %15, %16 : vector<256x32xi32>
    %c0_i32_10 = arith.constant 0 : i32
    %18 = vector.broadcast %c0_i32_10 : i32 to vector<256x32xi32>
    %19 = arith.cmpi slt, %15, %18 : vector<256x32xi32>
    %c0_i32_11 = arith.constant 0 : i32
    %20 = arith.cmpi slt, %13, %c0_i32_11 : i32
    %21 = vector.broadcast %20 : i1 to vector<256x32xi1>
    %22 = vector.broadcast %21 : vector<256x32xi1> to vector<256x32xi1>
    %23 = arith.xori %19, %22 : vector<256x32xi1>
    %24 = arith.andi %23, %17 : vector<256x32xi1>
    %25 = vector.broadcast %13 : i32 to vector<256x32xi32>
    %26 = arith.addi %15, %25 : vector<256x32xi32>
    %27 = arith.select %24, %26, %15 : vector<256x32xi1>, vector<256x32xi32>
    %c0_i32_12 = arith.constant 0 : i32
    %28 = vector.broadcast %c0_i32_12 : i32 to vector<256x32xi32>
    %29 = arith.cmpi ne, %27, %28 : vector<256x32xi32>
    %c15_i32 = arith.constant 15 : i32
    %30 = vector.broadcast %c15_i32 : i32 to vector<256x32xi32>
    %31 = arith.cmpi ne, %27, %30 : vector<256x32xi32>
    %cst_13 = arith.constant 0.000000e+00 : f32
    %32 = vector.broadcast %cst_13 : f32 to vector<256x32xf32>
    %33 = vector.extract_strided_slice %10 {offsets = [0, 0], sizes = [256, 32], strides = [1, 1]} : vector<288x32xf32> to vector<256x32xf32>
    %c1_i32_14 = arith.constant 1 : i32
    %34 = tpu.dynamic_rotate %33 by %c1_i32_14 dim 0 : vector<256x32xf32>, i32 -> vector<256x32xf32>
    %cst_15 = arith.constant 0.000000e+00 : f32
    %35 = vector.broadcast %cst_15 : f32 to vector<256x32xf32>
    %36 = arith.select %29, %34, %35 : vector<256x32xi1>, vector<256x32xf32>
    %37 = arith.truncf %36 : vector<256x32xf32> to vector<256x32xbf16>
    %c0_16 = arith.constant 0 : index
    %c0_17 = arith.constant 0 : index
    %c0_18 = arith.constant 0 : index
    %38 = vector.load %arg4[%c0_16, %c0_17, %c0_18] : memref<9x32x32xbf16, #tpu.memory_space<vmem>>, vector<1x32x32xbf16>
    %39 = vector.shape_cast %38 : vector<1x32x32xbf16> to vector<32x32xbf16>
    %cst_19 = arith.constant dense<0.000000e+00> : vector<256x32xf32>
    %40 = tpu.matmul %37, %39, %cst_19 {dimension_numbers = #tpu.dot_dimension_numbers<[1], [0], [0], [1], [0, 0, 1, 1], [], []>} : vector<256x32xbf16>, vector<32x32xbf16>, vector<256x32xf32> -> vector<256x32xf32>
    %41 = arith.addf %32, %40 : vector<256x32xf32>
    %42 = arith.truncf %33 : vector<256x32xf32> to vector<256x32xbf16>
    %c1 = arith.constant 1 : index
    %c0_20 = arith.constant 0 : index
    %c0_21 = arith.constant 0 : index
    %43 = vector.load %arg4[%c1, %c0_20, %c0_21] : memref<9x32x32xbf16, #tpu.memory_space<vmem>>, vector<1x32x32xbf16>
    %44 = vector.shape_cast %43 : vector<1x32x32xbf16> to vector<32x32xbf16>
    %cst_22 = arith.constant dense<0.000000e+00> : vector<256x32xf32>
    %45 = tpu.matmul %42, %44, %cst_22 {dimension_numbers = #tpu.dot_dimension_numbers<[1], [0], [0], [1], [0, 0, 1, 1], [], []>} : vector<256x32xbf16>, vector<32x32xbf16>, vector<256x32xf32> -> vector<256x32xf32>
    %46 = arith.addf %41, %45 : vector<256x32xf32>
    %c255_i32 = arith.constant 255 : i32
    %47 = tpu.dynamic_rotate %33 by %c255_i32 dim 0 : vector<256x32xf32>, i32 -> vector<256x32xf32>
    %cst_23 = arith.constant 0.000000e+00 : f32
    %48 = vector.broadcast %cst_23 : f32 to vector<256x32xf32>
    %49 = arith.select %31, %47, %48 : vector<256x32xi1>, vector<256x32xf32>
    %50 = arith.truncf %49 : vector<256x32xf32> to vector<256x32xbf16>
    %c2 = arith.constant 2 : index
    %c0_24 = arith.constant 0 : index
    %c0_25 = arith.constant 0 : index
    %51 = vector.load %arg4[%c2, %c0_24, %c0_25] : memref<9x32x32xbf16, #tpu.memory_space<vmem>>, vector<1x32x32xbf16>
    %52 = vector.shape_cast %51 : vector<1x32x32xbf16> to vector<32x32xbf16>
    %cst_26 = arith.constant dense<0.000000e+00> : vector<256x32xf32>
    %53 = tpu.matmul %50, %52, %cst_26 {dimension_numbers = #tpu.dot_dimension_numbers<[1], [0], [0], [1], [0, 0, 1, 1], [], []>} : vector<256x32xbf16>, vector<32x32xbf16>, vector<256x32xf32> -> vector<256x32xf32>
    %54 = arith.addf %46, %53 : vector<256x32xf32>
    %55 = vector.extract_strided_slice %10 {offsets = [16, 0], sizes = [256, 32], strides = [1, 1]} : vector<288x32xf32> to vector<256x32xf32>
    %c1_i32_27 = arith.constant 1 : i32
    %56 = tpu.dynamic_rotate %55 by %c1_i32_27 dim 0 : vector<256x32xf32>, i32 -> vector<256x32xf32>
    %cst_28 = arith.constant 0.000000e+00 : f32
    %57 = vector.broadcast %cst_28 : f32 to vector<256x32xf32>
    %58 = arith.select %29, %56, %57 : vector<256x32xi1>, vector<256x32xf32>
    %59 = arith.truncf %58 : vector<256x32xf32> to vector<256x32xbf16>
    %c3 = arith.constant 3 : index
    %c0_29 = arith.constant 0 : index
    %c0_30 = arith.constant 0 : index
    %60 = vector.load %arg4[%c3, %c0_29, %c0_30] : memref<9x32x32xbf16, #tpu.memory_space<vmem>>, vector<1x32x32xbf16>
    %61 = vector.shape_cast %60 : vector<1x32x32xbf16> to vector<32x32xbf16>
    %cst_31 = arith.constant dense<0.000000e+00> : vector<256x32xf32>
    %62 = tpu.matmul %59, %61, %cst_31 {dimension_numbers = #tpu.dot_dimension_numbers<[1], [0], [0], [1], [0, 0, 1, 1], [], []>} : vector<256x32xbf16>, vector<32x32xbf16>, vector<256x32xf32> -> vector<256x32xf32>
    %63 = arith.addf %54, %62 : vector<256x32xf32>
    %64 = arith.truncf %55 : vector<256x32xf32> to vector<256x32xbf16>
    %c4 = arith.constant 4 : index
    %c0_32 = arith.constant 0 : index
    %c0_33 = arith.constant 0 : index
    %65 = vector.load %arg4[%c4, %c0_32, %c0_33] : memref<9x32x32xbf16, #tpu.memory_space<vmem>>, vector<1x32x32xbf16>
    %66 = vector.shape_cast %65 : vector<1x32x32xbf16> to vector<32x32xbf16>
    %cst_34 = arith.constant dense<0.000000e+00> : vector<256x32xf32>
    %67 = tpu.matmul %64, %66, %cst_34 {dimension_numbers = #tpu.dot_dimension_numbers<[1], [0], [0], [1], [0, 0, 1, 1], [], []>} : vector<256x32xbf16>, vector<32x32xbf16>, vector<256x32xf32> -> vector<256x32xf32>
    %68 = arith.addf %63, %67 : vector<256x32xf32>
    %c255_i32_35 = arith.constant 255 : i32
    %69 = tpu.dynamic_rotate %55 by %c255_i32_35 dim 0 : vector<256x32xf32>, i32 -> vector<256x32xf32>
    %cst_36 = arith.constant 0.000000e+00 : f32
    %70 = vector.broadcast %cst_36 : f32 to vector<256x32xf32>
    %71 = arith.select %31, %69, %70 : vector<256x32xi1>, vector<256x32xf32>
    %72 = arith.truncf %71 : vector<256x32xf32> to vector<256x32xbf16>
    %c5 = arith.constant 5 : index
    %c0_37 = arith.constant 0 : index
    %c0_38 = arith.constant 0 : index
    %73 = vector.load %arg4[%c5, %c0_37, %c0_38] : memref<9x32x32xbf16, #tpu.memory_space<vmem>>, vector<1x32x32xbf16>
    %74 = vector.shape_cast %73 : vector<1x32x32xbf16> to vector<32x32xbf16>
    %cst_39 = arith.constant dense<0.000000e+00> : vector<256x32xf32>
    %75 = tpu.matmul %72, %74, %cst_39 {dimension_numbers = #tpu.dot_dimension_numbers<[1], [0], [0], [1], [0, 0, 1, 1], [], []>} : vector<256x32xbf16>, vector<32x32xbf16>, vector<256x32xf32> -> vector<256x32xf32>
    %76 = arith.addf %68, %75 : vector<256x32xf32>
    %77 = vector.extract_strided_slice %10 {offsets = [32, 0], sizes = [256, 32], strides = [1, 1]} : vector<288x32xf32> to vector<256x32xf32>
    %c1_i32_40 = arith.constant 1 : i32
    %78 = tpu.dynamic_rotate %77 by %c1_i32_40 dim 0 : vector<256x32xf32>, i32 -> vector<256x32xf32>
    %cst_41 = arith.constant 0.000000e+00 : f32
    %79 = vector.broadcast %cst_41 : f32 to vector<256x32xf32>
    %80 = arith.select %29, %78, %79 : vector<256x32xi1>, vector<256x32xf32>
    %81 = arith.truncf %80 : vector<256x32xf32> to vector<256x32xbf16>
    %c6 = arith.constant 6 : index
    %c0_42 = arith.constant 0 : index
    %c0_43 = arith.constant 0 : index
    %82 = vector.load %arg4[%c6, %c0_42, %c0_43] : memref<9x32x32xbf16, #tpu.memory_space<vmem>>, vector<1x32x32xbf16>
    %83 = vector.shape_cast %82 : vector<1x32x32xbf16> to vector<32x32xbf16>
    %cst_44 = arith.constant dense<0.000000e+00> : vector<256x32xf32>
    %84 = tpu.matmul %81, %83, %cst_44 {dimension_numbers = #tpu.dot_dimension_numbers<[1], [0], [0], [1], [0, 0, 1, 1], [], []>} : vector<256x32xbf16>, vector<32x32xbf16>, vector<256x32xf32> -> vector<256x32xf32>
    %85 = arith.addf %76, %84 : vector<256x32xf32>
    %86 = arith.truncf %77 : vector<256x32xf32> to vector<256x32xbf16>
    %c7 = arith.constant 7 : index
    %c0_45 = arith.constant 0 : index
    %c0_46 = arith.constant 0 : index
    %87 = vector.load %arg4[%c7, %c0_45, %c0_46] : memref<9x32x32xbf16, #tpu.memory_space<vmem>>, vector<1x32x32xbf16>
    %88 = vector.shape_cast %87 : vector<1x32x32xbf16> to vector<32x32xbf16>
    %cst_47 = arith.constant dense<0.000000e+00> : vector<256x32xf32>
    %89 = tpu.matmul %86, %88, %cst_47 {dimension_numbers = #tpu.dot_dimension_numbers<[1], [0], [0], [1], [0, 0, 1, 1], [], []>} : vector<256x32xbf16>, vector<32x32xbf16>, vector<256x32xf32> -> vector<256x32xf32>
    %90 = arith.addf %85, %89 : vector<256x32xf32>
    %c255_i32_48 = arith.constant 255 : i32
    %91 = tpu.dynamic_rotate %77 by %c255_i32_48 dim 0 : vector<256x32xf32>, i32 -> vector<256x32xf32>
    %cst_49 = arith.constant 0.000000e+00 : f32
    %92 = vector.broadcast %cst_49 : f32 to vector<256x32xf32>
    %93 = arith.select %31, %91, %92 : vector<256x32xi1>, vector<256x32xf32>
    %94 = arith.truncf %93 : vector<256x32xf32> to vector<256x32xbf16>
    %c8 = arith.constant 8 : index
    %c0_50 = arith.constant 0 : index
    %c0_51 = arith.constant 0 : index
    %95 = vector.load %arg4[%c8, %c0_50, %c0_51] : memref<9x32x32xbf16, #tpu.memory_space<vmem>>, vector<1x32x32xbf16>
    %96 = vector.shape_cast %95 : vector<1x32x32xbf16> to vector<32x32xbf16>
    %cst_52 = arith.constant dense<0.000000e+00> : vector<256x32xf32>
    %97 = tpu.matmul %94, %96, %cst_52 {dimension_numbers = #tpu.dot_dimension_numbers<[1], [0], [0], [1], [0, 0, 1, 1], [], []>} : vector<256x32xbf16>, vector<32x32xbf16>, vector<256x32xf32> -> vector<256x32xf32>
    %98 = arith.addf %90, %97 : vector<256x32xf32>
    %c0_53 = arith.constant 0 : index
    %c0_54 = arith.constant 0 : index
    %99 = vector.load %arg5[%c0_53, %c0_54] : memref<1x32xf32, #tpu.memory_space<vmem>>, vector<1x32xf32>
    %100 = vector.broadcast %99 : vector<1x32xf32> to vector<256x32xf32>
    %101 = arith.addf %98, %100 : vector<256x32xf32>
    %cst_55 = arith.constant 0.000000e+00 : f32
    %102 = vector.broadcast %cst_55 : f32 to vector<256x32xf32>
    %103 = arith.maximumf %101, %102 : vector<256x32xf32>
    %104 = arith.truncf %103 : vector<256x32xf32> to vector<256x32xbf16>
    %c0_56 = arith.constant 0 : index
    %c0_57 = arith.constant 0 : index
    %105 = vector.load %arg6[%c0_56, %c0_57] : memref<32x128xbf16, #tpu.memory_space<vmem>>, vector<32x128xbf16>
    %cst_58 = arith.constant dense<0.000000e+00> : vector<256x128xf32>
    %106 = tpu.matmul %104, %105, %cst_58 {dimension_numbers = #tpu.dot_dimension_numbers<[1], [0], [0], [1], [0, 0, 1, 1], [], []>} : vector<256x32xbf16>, vector<32x128xbf16>, vector<256x128xf32> -> vector<256x128xf32>
    %c0_59 = arith.constant 0 : index
    %c0_60 = arith.constant 0 : index
    %107 = vector.load %arg7[%c0_59, %c0_60] : memref<1x128xf32, #tpu.memory_space<vmem>>, vector<1x128xf32>
    %108 = vector.broadcast %107 : vector<1x128xf32> to vector<256x128xf32>
    %109 = arith.addf %106, %108 : vector<256x128xf32>
    %c0_61 = arith.constant 0 : index
    %c0_62 = arith.constant 0 : index
    %c0_63 = arith.constant 0 : index
    %c0_64 = arith.constant 0 : index
    %110 = vector.load %arg1[%c0_61, %c0_62, %c0_63, %c0_64] : memref<1x16x16x128xbf16, #tpu.memory_space<vmem>>, vector<1x16x16x128xbf16>
    %111 = vector.shape_cast %110 : vector<1x16x16x128xbf16> to vector<256x128xbf16>
    %112 = arith.extf %111 : vector<256x128xbf16> to vector<256x128xf32>
    %113 = arith.addf %109, %112 : vector<256x128xf32>
    %cst_65 = arith.constant 0.000000e+00 : f32
    %114 = vector.broadcast %cst_65 : f32 to vector<256x128xf32>
    %115 = arith.maximumf %113, %114 : vector<256x128xf32>
    %116 = vector.shape_cast %115 : vector<256x128xf32> to vector<1x16x16x128xf32>
    %117 = arith.truncf %116 : vector<1x16x16x128xf32> to vector<1x16x16x128xbf16>
    %c0_66 = arith.constant 0 : index
    %c0_67 = arith.constant 0 : index
    %c0_68 = arith.constant 0 : index
    %c0_69 = arith.constant 0 : index
    %118 = vector.load %arg8[%c0_66, %c0_67, %c0_68, %c0_69] : memref<1x16x16x128xbf16, #tpu.memory_space<vmem>>, vector<1x16x16x128xbf16>
    tpu.vector_store %arg8[%c0_66, %c0_67, %c0_68, %c0_69], %117 {strides = array<i32>} : memref<1x16x16x128xbf16, #tpu.memory_space<vmem>>, vector<1x16x16x128xbf16>,
    return
  }
  func.func @transform_0(%arg0: i32) -> (i32, i32, i32, i32) {
    %c0_i32 = arith.constant 0 : i32
    %c0_i32_0 = arith.constant 0 : i32
    %c0_i32_1 = arith.constant 0 : i32
    %c0_i32_2 = arith.constant 0 : i32
    return %arg0, %c0_i32, %c0_i32_0, %c0_i32_1 : i32, i32, i32, i32
  }
  func.func @transform_1(%arg0: i32) -> (i32, i32) {
    %c0_i32 = arith.constant 0 : i32
    %c0_i32_0 = arith.constant 0 : i32
    %c0_i32_1 = arith.constant 0 : i32
    return %c0_i32, %c0_i32_0 : i32, i32
  }
  func.func @transform_2(%arg0: i32) -> (i32, i32) {
    %c0_i32 = arith.constant 0 : i32
    %c0_i32_0 = arith.constant 0 : i32
    %c0_i32_1 = arith.constant 0 : i32
    return %c0_i32, %c0_i32_0 : i32, i32
  }
  func.func @transform_3(%arg0: i32) -> (i32, i32, i32) {
    %c0_i32 = arith.constant 0 : i32
    %c0_i32_0 = arith.constant 0 : i32
    %c0_i32_1 = arith.constant 0 : i32
    %c0_i32_2 = arith.constant 0 : i32
    return %c0_i32, %c0_i32_0, %c0_i32_1 : i32, i32, i32
  }
  func.func @transform_4(%arg0: i32) -> (i32, i32) {
    %c0_i32 = arith.constant 0 : i32
    %c0_i32_0 = arith.constant 0 : i32
    %c0_i32_1 = arith.constant 0 : i32
    return %c0_i32, %c0_i32_0 : i32, i32
  }
  func.func @transform_5(%arg0: i32) -> (i32, i32) {
    %c0_i32 = arith.constant 0 : i32
    %c0_i32_0 = arith.constant 0 : i32
    %c0_i32_1 = arith.constant 0 : i32
    return %c0_i32, %c0_i32_0 : i32, i32
  }
  func.func @transform_6(%arg0: i32) -> (i32, i32) {
    %c0_i32 = arith.constant 0 : i32
    %c0_i32_0 = arith.constant 0 : i32
    %c0_i32_1 = arith.constant 0 : i32
    return %c0_i32, %c0_i32_0 : i32, i32
  }
  func.func @transform_7(%arg0: i32) -> (i32, i32, i32, i32) {
    %c0_i32 = arith.constant 0 : i32
    %c0_i32_0 = arith.constant 0 : i32
    %c0_i32_1 = arith.constant 0 : i32
    %c0_i32_2 = arith.constant 0 : i32
    return %arg0, %c0_i32, %c0_i32_0, %c0_i32_1 : i32, i32, i32, i32
  }
}

</mosaic_0001>

<llo_original>
// kernel: tpu_custom_call.1
$region0: #{tpu_custom_call.1}
  #allocation0 [shape = 'u32[]', space=smem, size = 0x4, offset = 0x4, fixed_abs, tag = 'smem constant byte address 0x4 - core index']
  #allocation1 [shape = 'u32[144,128]{1,0:T(1,128)}', space=vmem, size = 0x12000, scoped, tag = 'internal scratch']
  %s0 = inlined_call_operand.hbm [shape: bf16[2,16,16,128], index: 0, kind: input, shape index: {}]
  %s1 = inlined_call_operand.vmem [shape: bf16[128,32], index: 1, kind: input, shape index: {}]
  %s2 = inlined_call_operand.vmem [shape: f32[1,32], index: 2, kind: input, shape index: {}]
  %s3 = inlined_call_operand.hbm [shape: bf16[9,32,32], index: 3, kind: input, shape index: {}]
  %s4 = inlined_call_operand.vmem [shape: f32[1,32], index: 4, kind: input, shape index: {}]
  %s5 = inlined_call_operand.vmem [shape: bf16[32,128], index: 5, kind: input, shape index: {}]
  %s6 = inlined_call_operand.vmem [shape: f32[1,128], index: 6, kind: input, shape index: {}]
  %s7 = inlined_call_operand.hbm [shape: bf16[2,16,16,128], index: 7, kind: output, shape index: {}]
  %s8 = sld [smem:[#allocation0]]
  $region69: #{tpu_custom_call.1} parent=0
    _
  %s10 = ssub.s32 1, %s8
  %s11 = scalar_select 0, %s10, %s8
  $region1: #{tpu_custom_call.1} parent=0
    #allocation2 [shape = 'u8[131072]{0}', space=vmem, size = 0x20000, scoped, tag = 'input window, operand 0']
    #allocation3 [shape = 's32[2]{0}', space=sflag, size = 0x8, scoped, tag = 'scoped memory for tpu_custom_call.1']
    #allocation4 [shape = 's32[2]{0}', space=sflag, size = 0x8, scoped, tag = 'scoped memory for tpu_custom_call.1']
    #allocation5 [shape = 'u8[73728]{0}', space=vmem, size = 0x12000, scoped, tag = 'input window, operand 3, single buffered']
    #allocation6 [shape = 's32[1]{0}', space=sflag, size = 0x4, scoped, tag = 'scoped memory for tpu_custom_call.1']
    #allocation7 [shape = 'u8[131072]{0}', space=vmem, size = 0x20000, scoped, tag = 'output window, operand 0']
    %12 = vsyncpa [#allocation3], 0
    %s13 = scalar_lea.sflag [#allocation3], 1
    %14 = vsyncpa %s13, 0
    %15 = vsyncpa [#allocation6], 0
    %16 = vsyncpa [#allocation4], 0
    %s17 = scalar_lea.sflag [#allocation4], 1
    %18 = vsyncpa %s17, 0
    loop: start=0, step=1, limit=4
    $region2: #{tpu_custom_call.1} parent=1 // loop_pre_header
      _
    $region3: #{tpu_custom_call.1} parent=1 // loop_header
      %s20 = sphi 0, %s24
      %p21 = scmp.ge.s32.totalorder %s20, 4
      %s30 = sphi 0, %s32
      %s33 = sphi 0, %s30
      %s34 = sphi 0, %s33
      %s50 = sphi 0, %s34
      %s54 = sphi 0, %s54
      %s56 = sphi 0, %s54
      %s57 = sphi 0, %s56
      %s71 = sphi 0, %s57
      %s75 = sphi 0, %s75
      %s77 = sphi 0, %s75
      %s78 = sphi 0, %s77
      %s92 = sphi 0, %s78
      %s96 = sphi 0, %s96
      %s98 = sphi 0, %s96
      %s99 = sphi 0, %s98
      %s113 = sphi 0, %s99
      %s117 = sphi 0, %s117
      %s119 = sphi 0, %s117
      %s120 = sphi 0, %s119
      %s134 = sphi 0, %s120
      %s138 = sphi 0, %s138
      %s140 = sphi 0, %s138
      %s141 = sphi 0, %s140
      %s155 = sphi 0, %s141
      %s159 = sphi 0, %s159
      %s161 = sphi 0, %s159
      %s162 = sphi 0, %s161
      %s176 = sphi 0, %s162
      %s182 = sphi 0, %s184
      %s185 = sphi 0, %s182
      %s186 = sphi 0, %s185
      %s202 = sphi 0, %s186
    $region4: #{tpu_custom_call.1} parent=1 // loop_header_branch
      %23 = sbr.rel (%p21) target = $region8
    $region5: #{tpu_custom_call.1} parent=1 // loop_body
      %s25 = ssub.s32 %s20, 1
      %s26 = ssub.s32 %s20, 2
      %s27 = sadd.s32 %s20, 1
      %s28 = ssub.s32 %s20, %s27
      %p29 = scmp.eq.s32.totalorder %s28, 0
      %s31 = sadd.s32 %s30, 1
      %s32 = scalar_select %p29, %s30, %s31
      %p35 = pneg %p29
      %p36 = scmp.eq.s32.totalorder %s20, 1
      %p37 = por %p35, %p36
      %p38 = scmp.ne.s32.totalorder %s30, %s33
      %p39 = scmp.eq.s32.totalorder %s20, 0
      %p40 = por %p38, %p39
      %p41 = scmp.ne.s32.totalorder %s30, %s33
      %p42 = scmp.eq.s32.totalorder %s25, 1
      %p43 = por %p41, %p42
      %p44 = scmp.ne.s32.totalorder %s33, %s34
      %p45 = scmp.eq.s32.totalorder %s25, 0
      %p46 = por %p44, %p45
      %p47 = scmp.ne.s32.totalorder %s33, %s34
      %p48 = scmp.eq.s32.totalorder %s26, 1
      %p49 = por %p47, %p48
      %p51 = scmp.ne.s32.totalorder %s34, %s50
      %p52 = scmp.eq.s32.totalorder %s26, 0
      %p53 = por %p51, %p52
      %s55 = sadd.s32 %s54, 1
      %p58 = scmp.eq.s32.totalorder %s20, 1
      %p59 = scmp.ne.s32.totalorder %s54, %s56
      %p60 = scmp.eq.s32.totalorder %s20, 0
      %p61 = por %p59, %p60
      %p62 = scmp.ne.s32.totalorder %s54, %s56
      %p63 = scmp.eq.s32.totalorder %s25, 1
      %p64 = por %p62, %p63
      %p65 = scmp.ne.s32.totalorder %s56, %s57
      %p66 = scmp.eq.s32.totalorder %s25, 0
      %p67 = por %p65, %p66
      %p68 = scmp.ne.s32.totalorder %s56, %s57
      %p69 = scmp.eq.s32.totalorder %s26, 1
      %p70 = por %p68, %p69
      %p72 = scmp.ne.s32.totalorder %s57, %s71
      %p73 = scmp.eq.s32.totalorder %s26, 0
      %p74 = por %p72, %p73
      %s76 = sadd.s32 %s75, 1
      %p79 = scmp.eq.s32.totalorder %s20, 1
      %p80 = scmp.ne.s32.totalorder %s75, %s77
      %p81 = scmp.eq.s32.totalorder %s20, 0
      %p82 = por %p80, %p81
      %p83 = scmp.ne.s32.totalorder %s75, %s77
      %p84 = scmp.eq.s32.totalorder %s25, 1
      %p85 = por %p83, %p84
      %p86 = scmp.ne.s32.totalorder %s77, %s78
      %p87 = scmp.eq.s32.totalorder %s25, 0
      %p88 = por %p86, %p87
      %p89 = scmp.ne.s32.totalorder %s77, %s78
      %p90 = scmp.eq.s32.totalorder %s26, 1
      %p91 = por %p89, %p90
      %p93 = scmp.ne.s32.totalorder %s78, %s92
      %p94 = scmp.eq.s32.totalorder %s26, 0
      %p95 = por %p93, %p94
      %s97 = sadd.s32 %s96, 1
      %p100 = scmp.eq.s32.totalorder %s20, 1
      %p101 = scmp.ne.s32.totalorder %s96, %s98
      %p102 = scmp.eq.s32.totalorder %s20, 0
      %p103 = por %p101, %p102
      %p104 = scmp.ne.s32.totalorder %s96, %s98
      %p105 = scmp.eq.s32.totalorder %s25, 1
      %p106 = por %p104, %p105
      %p107 = scmp.ne.s32.totalorder %s98, %s99
      %p108 = scmp.eq.s32.totalorder %s25, 0
      %p109 = por %p107, %p108
      %p110 = scmp.ne.s32.totalorder %s98, %s99
      %p111 = scmp.eq.s32.totalorder %s26, 1
      %p112 = por %p110, %p111
      %p114 = scmp.ne.s32.totalorder %s99, %s113
      %p115 = scmp.eq.s32.totalorder %s26, 0
      %p116 = por %p114, %p115
      %s118 = sadd.s32 %s117, 1
      %p121 = scmp.eq.s32.totalorder %s20, 1
      %p122 = scmp.ne.s32.totalorder %s117, %s119
      %p123 = scmp.eq.s32.totalorder %s20, 0
      %p124 = por %p122, %p123
      %p125 = scmp.ne.s32.totalorder %s117, %s119
      %p126 = scmp.eq.s32.totalorder %s25, 1
      %p127 = por %p125, %p126
      %p128 = scmp.ne.s32.totalorder %s119, %s120
      %p129 = scmp.eq.s32.totalorder %s25, 0
      %p130 = por %p128, %p129
      %p131 = scmp.ne.s32.totalorder %s119, %s120
      %p132 = scmp.eq.s32.totalorder %s26, 1
      %p133 = por %p131, %p132
      %p135 = scmp.ne.s32.totalorder %s120, %s134
      %p136 = scmp.eq.s32.totalorder %s26, 0
      %p137 = por %p135, %p136
      %s139 = sadd.s32 %s138, 1
      %p142 = scmp.eq.s32.totalorder %s20, 1
      %p143 = scmp.ne.s32.totalorder %s138, %s140
      %p144 = scmp.eq.s32.totalorder %s20, 0
      %p145 = por %p143, %p144
      %p146 = scmp.ne.s32.totalorder %s138, %s140
      %p147 = scmp.eq.s32.totalorder %s25, 1
      %p148 = por %p146, %p147
      %p149 = scmp.ne.s32.totalorder %s140, %s141
      %p150 = scmp.eq.s32.totalorder %s25, 0
      %p151 = por %p149, %p150
      %p152 = scmp.ne.s32.totalorder %s140, %s141
      %p153 = scmp.eq.s32.totalorder %s26, 1
      %p154 = por %p152, %p153
      %p156 = scmp.ne.s32.totalorder %s141, %s155
      %p157 = scmp.eq.s32.totalorder %s26, 0
      %p158 = por %p156, %p157
      %s160 = sadd.s32 %s159, 1
      %p163 = scmp.eq.s32.totalorder %s20, 1
      %p164 = scmp.ne.s32.totalorder %s159, %s161
      %p165 = scmp.eq.s32.totalorder %s20, 0
      %p166 = por %p164, %p165
      %p167 = scmp.ne.s32.totalorder %s159, %s161
      %p168 = scmp.eq.s32.totalorder %s25, 1
      %p169 = por %p167, %p168
      %p170 = scmp.ne.s32.totalorder %s161, %s162
      %p171 = scmp.eq.s32.totalorder %s25, 0
      %p172 = por %p170, %p171
      %p173 = scmp.ne.s32.totalorder %s161, %s162
      %p174 = scmp.eq.s32.totalorder %s26, 1
      %p175 = por %p173, %p174
      %p177 = scmp.ne.s32.totalorder %s162, %s176
      %p178 = scmp.eq.s32.totalorder %s26, 0
      %p179 = por %p177, %p178
      %s180 = ssub.s32 %s20, %s27
      %p181 = scmp.eq.s32.totalorder %s180, 0
      %s183 = sadd.s32 %s182, 1
      %s184 = scalar_select %p181, %s182, %s183
      %p187 = pneg %p181
      %p188 = scmp.eq.s32.totalorder %s20, 1
      %p189 = por %p187, %p188
      %p190 = scmp.ne.s32.totalorder %s182, %s185
      %p191 = scmp.eq.s32.totalorder %s20, 0
      %p192 = por %p190, %p191
      %p193 = scmp.ne.s32.totalorder %s182, %s185
      %p194 = scmp.eq.s32.totalorder %s25, 1
      %p195 = por %p193, %p194
      %p196 = scmp.ne.s32.totalorder %s185, %s186
      %p197 = scmp.eq.s32.totalorder %s25, 0
      %p198 = por %p196, %p197
      %p199 = scmp.ne.s32.totalorder %s185, %s186
      %p200 = scmp.eq.s32.totalorder %s26, 1
      %p201 = por %p199, %p200
      %p203 = scmp.ne.s32.totalorder %s186, %s202
      %p204 = scmp.eq.s32.totalorder %s26, 0
      %p205 = por %p203, %p204
      %p206 = scmp.le.s32.totalorder 1, %s20
      %p207 = scmp.lt.s32.totalorder %s20, 3
      %p208 = pnand %p206, %p207
      %p209 = pneg %p208
      // Predicated region
      $region9: #{tpu_custom_call.1} parent=5 // pred_check
        _
      $region10: #{tpu_custom_call.1} parent=5 // pred_check_branch
        %211 = sbr.rel (%p208) target = $region12
      $region11: #{tpu_custom_call.1} parent=5 // pred_region
        %s212 = ssub.s32 %s20, 1
        // Predicated region
        $region13: #{tpu_custom_call.1} parent=11 // pred_check
          %p213 = pneg %p67
        $region14: #{tpu_custom_call.1} parent=11 // pred_check_branch
          %215 = sbr.rel (%p213) target = $region16
        $region15: #{tpu_custom_call.1} parent=11 // pred_region
          _
        $region16: #{tpu_custom_call.1} parent=11 // pred_fallthru
          _
        // Predicated region
        $region17: #{tpu_custom_call.1} parent=11 // pred_check
          %p216 = pneg %p88
        $region18: #{tpu_custom_call.1} parent=11 // pred_check_branch
          %218 = sbr.rel (%p216) target = $region20
        $region19: #{tpu_custom_call.1} parent=11 // pred_region
          _
        $region20: #{tpu_custom_call.1} parent=11 // pred_fallthru
          _
        // Predicated region
        $region21: #{tpu_custom_call.1} parent=11 // pred_check
          %p219 = pneg %p109
        $region22: #{tpu_custom_call.1} parent=11 // pred_check_branch
          %221 = sbr.rel (%p219) target = $region24
        $region23: #{tpu_custom_call.1} parent=11 // pred_region
          %s223 = ssub.s32 2304, 2304
          %224 = vsyncadd [#allocation6], %s223
          %s225 = sshll.u32 [#allocation5], 4
          %s226 = int_to_ptr.vmem [resolvable:$true] %s225
          %231 = dma.hbm_to_vmem [thread:$0]  %s3, 2304, %s226, [#allocation6], 64, 64, 4
        $region24: #{tpu_custom_call.1} parent=11 // pred_fallthru
          _
        // Predicated region
        $region25: #{tpu_custom_call.1} parent=11 // pred_check
          %p232 = pneg %p130
        $region26: #{tpu_custom_call.1} parent=11 // pred_check_branch
          %234 = sbr.rel (%p232) target = $region28
        $region27: #{tpu_custom_call.1} parent=11 // pred_region
          _
        $region28: #{tpu_custom_call.1} parent=11 // pred_fallthru
          _
        // Predicated region
        $region29: #{tpu_custom_call.1} parent=11 // pred_check
          %p235 = pneg %p151
        $region30: #{tpu_custom_call.1} parent=11 // pred_check_branch
          %237 = sbr.rel (%p235) target = $region32
        $region31: #{tpu_custom_call.1} parent=11 // pred_region
          _
        $region32: #{tpu_custom_call.1} parent=11 // pred_fallthru
          _
        // Predicated region
        $region33: #{tpu_custom_call.1} parent=11 // pred_check
          %p238 = pneg %p172
        $region34: #{tpu_custom_call.1} parent=11 // pred_check_branch
          %240 = sbr.rel (%p238) target = $region36
        $region35: #{tpu_custom_call.1} parent=11 // pred_region
          _
        $region36: #{tpu_custom_call.1} parent=11 // pred_fallthru
          _
      $region12: #{tpu_custom_call.1} parent=5 // pred_fallthru
        _
      %p241 = scmp.lt.s32.totalorder %s20, 2
      // Predicated region
      $region37: #{tpu_custom_call.1} parent=5 // pred_check
        %p242 = pneg %p241
      $region38: #{tpu_custom_call.1} parent=5 // pred_check_branch
        %244 = sbr.rel (%p242) target = $region40
      $region39: #{tpu_custom_call.1} parent=5 // pred_region
        // Predicated region
        $region41: #{tpu_custom_call.1} parent=39 // pred_check
          %p245 = pneg %p40
        $region42: #{tpu_custom_call.1} parent=39 // pred_check_branch
          %247 = sbr.rel (%p245) target = $region44
        $region43: #{tpu_custom_call.1} parent=39 // pred_region
          %s248 = sand.u32 %s30, 1
          %s249 = scalar_lea.sflag [#allocation3], %s248
          %s250 = sand.u32 %s30, 1
          %s251 = smul.addr %s250, 128
          %s252 = scalar_lea.vmem [#allocation2], %s251
          %s254 = ssub.s32 2048, 2048
          %255 = vsyncadd %s249, %s254
          %s256 = smul.addr %s20, 32
          %s257 = smul.addr %s256, 64
          %s258 = scalar_lea.hbm %s0, %s257
          %s259 = sshll.u32 %s252, 4
          %s260 = int_to_ptr.vmem [resolvable:$true] %s259
          %265 = dma.hbm_to_vmem [thread:$0]  %s258, 2048, %s260, %s249, 64, 64, 4
        $region44: #{tpu_custom_call.1} parent=39 // pred_fallthru
          _
      $region40: #{tpu_custom_call.1} parent=5 // pred_fallthru
        _
      %p266 = scmp.le.s32.totalorder 1, %s20
      %p267 = scmp.lt.s32.totalorder %s20, 3
      %p268 = pnand %p266, %p267
      %p269 = pneg %p268
      // Predicated region
      $region45: #{tpu_custom_call.1} parent=5 // pred_check
        _
      $region46: #{tpu_custom_call.1} parent=5 // pred_check_branch
        %271 = sbr.rel (%p268) target = $region48
      $region47: #{tpu_custom_call.1} parent=5 // pred_region
        %s272 = ssub.s32 %s20, 1
        %s273 = sand.u32 %s33, 1
        %s274 = scalar_lea.sflag [#allocation3], %s273
        %s275 = sand.u32 %s33, 1
        %s276 = smul.addr %s275, 128
        %s277 = scalar_lea.vmem [#allocation2], %s276
        // Predicated region
        $region49: #{tpu_custom_call.1} parent=47 // pred_check
          %p278 = pneg %p46
        $region50: #{tpu_custom_call.1} parent=47 // pred_check_branch
          %280 = sbr.rel (%p278) target = $region52
        $region51: #{tpu_custom_call.1} parent=47 // pred_region
          %281 = dma.done %s274, 2048
        $region52: #{tpu_custom_call.1} parent=47 // pred_fallthru
          _
        // Predicated region
        $region53: #{tpu_custom_call.1} parent=47 // pred_check
          %p282 = pneg %p109
        $region54: #{tpu_custom_call.1} parent=47 // pred_check_branch
          %284 = sbr.rel (%p282) target = $region56
        $region55: #{tpu_custom_call.1} parent=47 // pred_region
          %285 = dma.done [#allocation6], 2304
        $region56: #{tpu_custom_call.1} parent=47 // pred_fallthru
          _
        %s286 = sand.u32 %s33, 1
        %s287 = scalar_lea.sflag [#allocation3], %s286
        %s288 = sand.u32 %s33, 1
        %s289 = smul.addr %s288, 128
        %s290 = scalar_lea.vmem [#allocation2], %s289
        %p291 = pneg %p46
        %p292 = pneg %p43
        %p293 = pneg %p67
        %p294 = pneg %p64
        %p295 = pneg %p88
        %p296 = pneg %p85
        %p297 = pneg %p109
        %p298 = pneg %p106
        %p299 = pneg %p130
        %p300 = pneg %p127
        %p301 = pneg %p151
        %p302 = pneg %p148
        %p303 = pneg %p172
        %p304 = pneg %p169
        %p305 = pneg %p198
        %p306 = pneg %p195
        %s307 = sand.u32 %s185, 1
        %s308 = scalar_lea.sflag [#allocation4], %s307
        %s309 = sand.u32 %s185, 1
        %s310 = smul.addr %s309, 128
        %s311 = scalar_lea.vmem [#allocation7], %s310
        %v313 = vld [vmem:[%s277] sm:$0xf]
        %v314 = vld [vmem:[%s277 + $0x4] sm:$0xf]
        %v315 = vld [vmem:[%s277 + $0x8] sm:$0xf]
        %v316 = vld [vmem:[%s277 + $0xc] sm:$0xf]
        %v317 = vld [vmem:[%s277 + $0x10] sm:$0xf]
        %v318 = vld [vmem:[%s277 + $0x14] sm:$0xf]
        %v319 = vld [vmem:[%s277 + $0x18] sm:$0xf]
        %v320 = vld [vmem:[%s277 + $0x1c] sm:$0xf]
        %v321 = vld [vmem:[%s277 + $0x20] sm:$0xf]
        %v322 = vld [vmem:[%s277 + $0x24] sm:$0xf]
        %v323 = vld [vmem:[%s277 + $0x28] sm:$0xf]
        %v324 = vld [vmem:[%s277 + $0x2c] sm:$0xf]
        %v325 = vld [vmem:[%s277 + $0x30] sm:$0xf]
        %v326 = vld [vmem:[%s277 + $0x34] sm:$0xf]
        %v327 = vld [vmem:[%s277 + $0x38] sm:$0xf]
        %v328 = vld [vmem:[%s277 + $0x3c] sm:$0xf]
        %v329 = vld [vmem:[%s277 + $0x40] sm:$0xf]
        %v330 = vld [vmem:[%s277 + $0x44] sm:$0xf]
        %v331 = vld [vmem:[%s277 + $0x48] sm:$0xf]
        %v332 = vld [vmem:[%s277 + $0x4c] sm:$0xf]
        %v333 = vld [vmem:[%s277 + $0x50] sm:$0xf]
        %v334 = vld [vmem:[%s277 + $0x54] sm:$0xf]
        %v335 = vld [vmem:[%s277 + $0x58] sm:$0xf]
        %v336 = vld [vmem:[%s277 + $0x5c] sm:$0xf]
        %v337 = vld [vmem:[%s277 + $0x60] sm:$0xf]
        %v338 = vld [vmem:[%s277 + $0x64] sm:$0xf]
        %v339 = vld [vmem:[%s277 + $0x68] sm:$0xf]
        %v340 = vld [vmem:[%s277 + $0x6c] sm:$0xf]
        %v341 = vld [vmem:[%s277 + $0x70] sm:$0xf]
        %v342 = vld [vmem:[%s277 + $0x74] sm:$0xf]
        %v343 = vld [vmem:[%s277 + $0x78] sm:$0xf]
        %v344 = vld [vmem:[%s277 + $0x7c] sm:$0xf]
        %v345 = vld [vmem:[%s1] sm:$0xf]
        %v346 = vld [vmem:[%s1 + $0x4] sm:$0xf]
        %v347 = vld [vmem:[%s1 + $0x8] sm:$0xf]
        %v348 = vld [vmem:[%s1 + $0xc] sm:$0xf]
        %v349 = vld [vmem:[%s1 + $0x10] sm:$0xf]
        %v350 = vld [vmem:[%s1 + $0x14] sm:$0xf]
        %v351 = vld [vmem:[%s1 + $0x18] sm:$0xf]
        %v352 = vld [vmem:[%s1 + $0x1c] sm:$0xf]
        %v353 = vld [vmem:[%s1 + $0x20] sm:$0xf]
        %v354 = vld [vmem:[%s1 + $0x24] sm:$0xf]
        %v355 = vld [vmem:[%s1 + $0x28] sm:$0xf]
        %v356 = vld [vmem:[%s1 + $0x2c] sm:$0xf]
        %v357 = vld [vmem:[%s1 + $0x30] sm:$0xf]
        %v358 = vld [vmem:[%s1 + $0x34] sm:$0xf]
        %v359 = vld [vmem:[%s1 + $0x38] sm:$0xf]
        %v360 = vld [vmem:[%s1 + $0x3c] sm:$0xf]
        %v361 = vld [vmem:[%s2] sm:$0x1]
        %v363 = vlaneseq
        %v364 = vshrl.u32 %v363, 7
        %v365 = vsub.s32 0, %v364
        %v366 = vrot.slane %v361, %v365
        %v400 = vunpack.c.l.b16 %v313
        %v401 = vunpack.c.l.b16 %v314
        %v402 = vunpack.c.l.b16 %v315
        %v403 = vunpack.c.l.b16 %v316
        %v404 = vunpack.c.l.b16 %v317
        %v405 = vunpack.c.l.b16 %v318
        %v406 = vunpack.c.l.b16 %v319
        %v407 = vunpack.c.l.b16 %v320
        %v408 = vunpack.c.l.b16 %v321
        %v409 = vunpack.c.l.b16 %v322
        %v410 = vunpack.c.l.b16 %v323
        %v411 = vunpack.c.l.b16 %v324
        %v412 = vunpack.c.l.b16 %v325
        %v413 = vunpack.c.l.b16 %v326
        %v414 = vunpack.c.l.b16 %v327
        %v415 = vunpack.c.l.b16 %v328
        %v416 = vunpack.c.l.b16 %v329
        %v417 = vunpack.c.l.b16 %v330
        %v418 = vunpack.c.l.b16 %v331
        %v419 = vunpack.c.l.b16 %v332
        %v420 = vunpack.c.l.b16 %v333
        %v421 = vunpack.c.l.b16 %v334
        %v422 = vunpack.c.l.b16 %v335
        %v423 = vunpack.c.l.b16 %v336
        %v424 = vunpack.c.l.b16 %v337
        %v425 = vunpack.c.l.b16 %v338
        %v426 = vunpack.c.l.b16 %v339
        %v427 = vunpack.c.l.b16 %v340
        %v428 = vunpack.c.l.b16 %v341
        %v429 = vunpack.c.l.b16 %v342
        %v430 = vunpack.c.l.b16 %v343
        %v431 = vunpack.c.l.b16 %v344
        %v432 = vpack.c.b16 %v401, %v400
        %v433 = vpack.c.b16 %v403, %v402
        %v434 = vpack.c.b16 %v405, %v404
        %v435 = vpack.c.b16 %v407, %v406
        %v436 = vpack.c.b16 %v409, %v408
        %v437 = vpack.c.b16 %v411, %v410
        %v438 = vpack.c.b16 %v413, %v412
        %v439 = vpack.c.b16 %v415, %v414
        %v440 = vpack.c.b16 %v417, %v416
        %v441 = vpack.c.b16 %v419, %v418
        %v442 = vpack.c.b16 %v421, %v420
        %v443 = vpack.c.b16 %v423, %v422
        %v444 = vpack.c.b16 %v425, %v424
        %v445 = vpack.c.b16 %v427, %v426
        %v446 = vpack.c.b16 %v429, %v428
        %v447 = vpack.c.b16 %v431, %v430
        %v480 = vunpack.c.l.b16 %v345
        %v481 = vunpack.c.l.b16 %v346
        %v482 = vunpack.c.l.b16 %v347
        %v483 = vunpack.c.l.b16 %v348
        %v484 = vunpack.c.l.b16 %v349
        %v485 = vunpack.c.l.b16 %v350
        %v486 = vunpack.c.l.b16 %v351
        %v487 = vunpack.c.l.b16 %v352
        %v488 = vunpack.c.l.b16 %v353
        %v489 = vunpack.c.l.b16 %v354
        %v490 = vunpack.c.l.b16 %v355
        %v491 = vunpack.c.l.b16 %v356
        %v492 = vunpack.c.l.b16 %v357
        %v493 = vunpack.c.l.b16 %v358
        %v494 = vunpack.c.l.b16 %v359
        %v495 = vunpack.c.l.b16 %v360
        %v496 = vpack.c.b16 %v481, %v480
        %v497 = vpack.c.b16 %v483, %v482
        %v498 = vpack.c.b16 %v485, %v484
        %v499 = vpack.c.b16 %v487, %v486
        %v500 = vpack.c.b16 %v489, %v488
        %v501 = vpack.c.b16 %v491, %v490
        %v502 = vpack.c.b16 %v493, %v492
        %v503 = vpack.c.b16 %v495, %v494
        %512 = vmatprep.subr.bf16.mxu0 0
        %513 = vmatpush1.bf16.msra.mxu0 %v496
        %514 = vmatprep.subr.bf16.mxu0 0
        %515 = vmatpush1.bf16.msra.mxu0 %v497
        %516 = vmatprep.subr.bf16.mxu0 0
        %517 = vmatpush1.bf16.msra.mxu0 %v498
        %518 = vmatprep.subr.bf16.mxu0 0
        %519 = vmatpush1.bf16.msra.mxu0 %v499
        %520 = vmatprep.subr.bf16.mxu0 0
        %521 = vmatpush1.bf16.msra.mxu0 %v500
        %522 = vmatprep.subr.bf16.mxu0 0
        %523 = vmatpush1.bf16.msra.mxu0 %v501
        %524 = vmatprep.subr.bf16.mxu0 0
        %525 = vmatpush1.bf16.msra.mxu0 %v502
        %526 = vmatprep.subr.bf16.mxu0 0
        %527 = vmatpush1.bf16.msra.mxu0 %v503
        %528 = vmatprep.subr.bf16.mxu0 0
        %529 = vmatpush1.bf16.msra.mxu0 0
        %530 = vmatprep.subr.bf16.mxu0 0
        %531 = vmatpush1.bf16.msra.mxu0 0
        %532 = vmatprep.subr.bf16.mxu0 0
        %533 = vmatpush1.bf16.msra.mxu0 0
        %534 = vmatprep.subr.bf16.mxu0 0
        %535 = vmatpush1.bf16.msra.mxu0 0
        %536 = vmatprep.subr.bf16.mxu0 0
        %537 = vmatpush1.bf16.msra.mxu0 0
        %538 = vmatprep.subr.bf16.mxu0 0
        %539 = vmatpush1.bf16.msra.mxu0 0
        %540 = vmatprep.subr.bf16.mxu0 0
        %541 = vmatpush1.bf16.msra.mxu0 0
        %542 = vmatprep.subr.bf16.mxu0 0
        %543 = vmatpush1.bf16.msra.mxu0 0
        %544 = vmatprep.mubr.bf16.mxu0 0
        %545 = vmatmul.mubr.bf16.gmra.mrb[0].mxu0 %v432
        %v546 = vpop.f32.mrb[0].mxu0
        %v547 = vadd.f32 %v366, %v546
        %v548 = vpop.f32.mrb[0].mxu0
        %v549 = vpop.f32.mrb[0].mxu0
        %v550 = vadd.f32 %v366, %v549
        %v551 = vpop.f32.mrb[0].mxu0
        %552 = vmatprep.mubr.bf16.mxu0 0
        %553 = vmatmul.mubr.bf16.gmra.mrb[0].mxu0 %v433
        %v554 = vpop.f32.mrb[0].mxu0
        %v555 = vadd.f32 %v366, %v554
        %v556 = vpop.f32.mrb[0].mxu0
        %v557 = vpop.f32.mrb[0].mxu0
        %v558 = vadd.f32 %v366, %v557
        %v559 = vpop.f32.mrb[0].mxu0
        %560 = vmatprep.mubr.bf16.mxu0 0
        %561 = vmatmul.mubr.bf16.gmra.mrb[0].mxu0 %v434
        %v562 = vpop.f32.mrb[0].mxu0
        %v563 = vadd.f32 %v366, %v562
        %v564 = vpop.f32.mrb[0].mxu0
        %v565 = vpop.f32.mrb[0].mxu0
        %v566 = vadd.f32 %v366, %v565
        %v567 = vpop.f32.mrb[0].mxu0
        %568 = vmatprep.mubr.bf16.mxu0 0
        %569 = vmatmul.mubr.bf16.gmra.mrb[0].mxu0 %v435
        %v570 = vpop.f32.mrb[0].mxu0
        %v571 = vadd.f32 %v366, %v570
        %v572 = vpop.f32.mrb[0].mxu0
        %v573 = vpop.f32.mrb[0].mxu0
        %v574 = vadd.f32 %v366, %v573
        %v575 = vpop.f32.mrb[0].mxu0
        %576 = vmatprep.mubr.bf16.mxu0 0
        %577 = vmatmul.mubr.bf16.gmra.mrb[0].mxu0 %v436
        %v578 = vpop.f32.mrb[0].mxu0
        %v579 = vadd.f32 %v366, %v578
        %v580 = vpop.f32.mrb[0].mxu0
        %v581 = vpop.f32.mrb[0].mxu0
        %v582 = vadd.f32 %v366, %v581
        %v583 = vpop.f32.mrb[0].mxu0
        %584 = vmatprep.mubr.bf16.mxu0 0
        %585 = vmatmul.mubr.bf16.gmra.mrb[0].mxu0 %v437
        %v586 = vpop.f32.mrb[0].mxu0
        %v587 = vadd.f32 %v366, %v586
        %v588 = vpop.f32.mrb[0].mxu0
        %v589 = vpop.f32.mrb[0].mxu0
        %v590 = vadd.f32 %v366, %v589
        %v591 = vpop.f32.mrb[0].mxu0
        %592 = vmatprep.mubr.bf16.mxu0 0
        %593 = vmatmul.mubr.bf16.gmra.mrb[0].mxu0 %v438
        %v594 = vpop.f32.mrb[0].mxu0
        %v595 = vadd.f32 %v366, %v594
        %v596 = vpop.f32.mrb[0].mxu0
        %v597 = vpop.f32.mrb[0].mxu0
        %v598 = vadd.f32 %v366, %v597
        %v599 = vpop.f32.mrb[0].mxu0
        %600 = vmatprep.mubr.bf16.mxu0 0
        %601 = vmatmul.mubr.bf16.gmra.mrb[0].mxu0 %v439
        %v602 = vpop.f32.mrb[0].mxu0
        %v603 = vadd.f32 %v366, %v602
        %v604 = vpop.f32.mrb[0].mxu0
        %v605 = vpop.f32.mrb[0].mxu0
        %v606 = vadd.f32 %v366, %v605
        %v607 = vpop.f32.mrb[0].mxu0
        %608 = vmatprep.mubr.bf16.mxu0 0
        %609 = vmatmul.mubr.bf16.gmra.mrb[0].mxu0 %v440
        %v610 = vpop.f32.mrb[0].mxu0
        %v611 = vadd.f32 %v366, %v610
        %v612 = vpop.f32.mrb[0].mxu0
        %v613 = vpop.f32.mrb[0].mxu0
        %v614 = vadd.f32 %v366, %v613
        %v615 = vpop.f32.mrb[0].mxu0
        %616 = vmatprep.mubr.bf16.mxu0 0
        %617 = vmatmul.mubr.bf16.gmra.mrb[0].mxu0 %v441
        %v618 = vpop.f32.mrb[0].mxu0
        %v619 = vadd.f32 %v366, %v618
        %v620 = vpop.f32.mrb[0].mxu0
        %v621 = vpop.f32.mrb[0].mxu0
        %v622 = vadd.f32 %v366, %v621
        %v623 = vpop.f32.mrb[0].mxu0
        %624 = vmatprep.mubr.bf16.mxu0 0
        %625 = vmatmul.mubr.bf16.gmra.mrb[0].mxu0 %v442
        %v626 = vpop.f32.mrb[0].mxu0
        %v627 = vadd.f32 %v366, %v626
        %v628 = vpop.f32.mrb[0].mxu0
        %v629 = vpop.f32.mrb[0].mxu0
        %v630 = vadd.f32 %v366, %v629
        %v631 = vpop.f32.mrb[0].mxu0
        %632 = vmatprep.mubr.bf16.mxu0 0
        %633 = vmatmul.mubr.bf16.gmra.mrb[0].mxu0 %v443
        %v634 = vpop.f32.mrb[0].mxu0
        %v635 = vadd.f32 %v366, %v634
        %v636 = vpop.f32.mrb[0].mxu0
        %v637 = vpop.f32.mrb[0].mxu0
        %v638 = vadd.f32 %v366, %v637
        %v639 = vpop.f32.mrb[0].mxu0
        %640 = vmatprep.mubr.bf16.mxu0 0
        %641 = vmatmul.mubr.bf16.gmra.mrb[0].mxu0 %v444
        %v642 = vpop.f32.mrb[0].mxu0
        %v643 = vadd.f32 %v366, %v642
        %v644 = vpop.f32.mrb[0].mxu0
        %v645 = vpop.f32.mrb[0].mxu0
        %v646 = vadd.f32 %v366, %v645
        %v647 = vpop.f32.mrb[0].mxu0
        %648 = vmatprep.mubr.bf16.mxu0 0
        %649 = vmatmul.mubr.bf16.gmra.mrb[0].mxu0 %v445
        %v650 = vpop.f32.mrb[0].mxu0
        %v651 = vadd.f32 %v366, %v650
        %v652 = vpop.f32.mrb[0].mxu0
        %v653 = vpop.f32.mrb[0].mxu0
        %v654 = vadd.f32 %v366, %v653
        %v655 = vpop.f32.mrb[0].mxu0
        %656 = vmatprep.mubr.bf16.mxu0 0
        %657 = vmatmul.mubr.bf16.gmra.mrb[0].mxu0 %v446
        %v658 = vpop.f32.mrb[0].mxu0
        %v659 = vadd.f32 %v366, %v658
        %v660 = vpop.f32.mrb[0].mxu0
        %v661 = vpop.f32.mrb[0].mxu0
        %v662 = vadd.f32 %v366, %v661
        %v663 = vpop.f32.mrb[0].mxu0
        %664 = vmatprep.mubr.bf16.mxu0 0
        %665 = vmatmul.mubr.bf16.gmra.mrb[0].mxu0 %v447
        %v666 = vpop.f32.mrb[0].mxu0
        %v667 = vadd.f32 %v366, %v666
        %v668 = vpop.f32.mrb[0].mxu0
        %v669 = vpop.f32.mrb[0].mxu0
        %v670 = vadd.f32 %v366, %v669
        %v671 = vpop.f32.mrb[0].mxu0
        %672 = vdwg.mxu0
        %v673 = vmax.f32 %v547, 0.0
        %v674 = vmax.f32 %v550, 0.0
        %v675 = vmax.f32 %v555, 0.0
        %v676 = vmax.f32 %v558, 0.0
        %v677 = vmax.f32 %v563, 0.0
        %v678 = vmax.f32 %v566, 0.0
        %v679 = vmax.f32 %v571, 0.0
        %v680 = vmax.f32 %v574, 0.0
        %v681 = vmax.f32 %v579, 0.0
        %v682 = vmax.f32 %v582, 0.0
        %v683 = vmax.f32 %v587, 0.0
        %v684 = vmax.f32 %v590, 0.0
        %v685 = vmax.f32 %v595, 0.0
        %v686 = vmax.f32 %v598, 0.0
        %v687 = vmax.f32 %v603, 0.0
        %v688 = vmax.f32 %v606, 0.0
        %v689 = vmax.f32 %v611, 0.0
        %v690 = vmax.f32 %v614, 0.0
        %v691 = vmax.f32 %v619, 0.0
        %v692 = vmax.f32 %v622, 0.0
        %v693 = vmax.f32 %v627, 0.0
        %v694 = vmax.f32 %v630, 0.0
        %v695 = vmax.f32 %v635, 0.0
        %v696 = vmax.f32 %v638, 0.0
        %v697 = vmax.f32 %v643, 0.0
        %v698 = vmax.f32 %v646, 0.0
        %v699 = vmax.f32 %v651, 0.0
        %v700 = vmax.f32 %v654, 0.0
        %v701 = vmax.f32 %v659, 0.0
        %v702 = vmax.f32 %v662, 0.0
        %v703 = vmax.f32 %v667, 0.0
        %v704 = vmax.f32 %v670, 0.0
        %v705 = vlaneseq
        %v706 = vshrl.u32 %v705, 7
        %v707 = vadd.s32 %v706, 8
        %v708 = vadd.s32 %v706, 16
        %v709 = vadd.s32 %v706, 24
        %v710 = vadd.s32 %v706, 32
        %v711 = vadd.s32 %v706, 40
        %v712 = vadd.s32 %v706, 48
        %v713 = vadd.s32 %v706, 56
        %v714 = vadd.s32 %v706, 64
        %v715 = vadd.s32 %v706, 72
        %v716 = vadd.s32 %v706, 80
        %v717 = vadd.s32 %v706, 88
        %v718 = vadd.s32 %v706, 96
        %v719 = vadd.s32 %v706, 104
        %v720 = vadd.s32 %v706, 112
        %v721 = vadd.s32 %v706, 120
        %v722 = vadd.s32 %v706, 128
        %v723 = vadd.s32 %v706, 136
        %v724 = vadd.s32 %v706, 144
        %v725 = vadd.s32 %v706, 152
        %v726 = vadd.s32 %v706, 160
        %v727 = vadd.s32 %v706, 168
        %v728 = vadd.s32 %v706, 176
        %v729 = vadd.s32 %v706, 184
        %v730 = vadd.s32 %v706, 192
        %v731 = vadd.s32 %v706, 200
        %v732 = vadd.s32 %v706, 208
        %v733 = vadd.s32 %v706, 216
        %v734 = vadd.s32 %v706, 224
        %v735 = vadd.s32 %v706, 232
        %v736 = vadd.s32 %v706, 240
        %v737 = vadd.s32 %v706, 248
        %vm738 = vcmp.lt.s32.totalorder %v706, 0
        %v739 = vsub.s32 0, %v706
        %v740 = vsel %vm738, %v739, %v706
        %v741 = vshrl.u32 %v740, 4
        %v742 = vand.u32 %v740, 15
        %v743 = vsub.s32 0, %v742
        %v744 = vsel %vm738, %v743, %v742
        %vm745 = vcmp.lt.s32.totalorder %v707, 0
        %v746 = vsub.s32 0, %v707
        %v747 = vsel %vm745, %v746, %v707
        %v748 = vshrl.u32 %v747, 4
        %v749 = vand.u32 %v747, 15
        %v750 = vsub.s32 0, %v749
        %v751 = vsel %vm745, %v750, %v749
        %vm752 = vcmp.lt.s32.totalorder %v708, 0
        %v753 = vsub.s32 0, %v708
        %v754 = vsel %vm752, %v753, %v708
        %v755 = vshrl.u32 %v754, 4
        %v756 = vand.u32 %v754, 15
        %v757 = vsub.s32 0, %v756
        %v758 = vsel %vm752, %v757, %v756
        %vm759 = vcmp.lt.s32.totalorder %v709, 0
        %v760 = vsub.s32 0, %v709
        %v761 = vsel %vm759, %v760, %v709
        %v762 = vshrl.u32 %v761, 4
        %v763 = vand.u32 %v761, 15
        %v764 = vsub.s32 0, %v763
        %v765 = vsel %vm759, %v764, %v763
        %vm766 = vcmp.lt.s32.totalorder %v710, 0
        %v767 = vsub.s32 0, %v710
        %v768 = vsel %vm766, %v767, %v710
        %v769 = vshrl.u32 %v768, 4
        %v770 = vand.u32 %v768, 15
        %v771 = vsub.s32 0, %v770
        %v772 = vsel %vm766, %v771, %v770
        %vm773 = vcmp.lt.s32.totalorder %v711, 0
        %v774 = vsub.s32 0, %v711
        %v775 = vsel %vm773, %v774, %v711
        %v776 = vshrl.u32 %v775, 4
        %v777 = vand.u32 %v775, 15
        %v778 = vsub.s32 0, %v777
        %v779 = vsel %vm773, %v778, %v777
        %vm780 = vcmp.lt.s32.totalorder %v712, 0
        %v781 = vsub.s32 0, %v712
        %v782 = vsel %vm780, %v781, %v712
        %v783 = vshrl.u32 %v782, 4
        %v784 = vand.u32 %v782, 15
        %v785 = vsub.s32 0, %v784
        %v786 = vsel %vm780, %v785, %v784
        %vm787 = vcmp.lt.s32.totalorder %v713, 0
        %v788 = vsub.s32 0, %v713
        %v789 = vsel %vm787, %v788, %v713
        %v790 = vshrl.u32 %v789, 4
        %v791 = vand.u32 %v789, 15
        %v792 = vsub.s32 0, %v791
        %v793 = vsel %vm787, %v792, %v791
        %vm794 = vcmp.lt.s32.totalorder %v714, 0
        %v795 = vsub.s32 0, %v714
        %v796 = vsel %vm794, %v795, %v714
        %v797 = vshrl.u32 %v796, 4
        %v798 = vand.u32 %v796, 15
        %v799 = vsub.s32 0, %v798
        %v800 = vsel %vm794, %v799, %v798
        %vm801 = vcmp.lt.s32.totalorder %v715, 0
        %v802 = vsub.s32 0, %v715
        %v803 = vsel %vm801, %v802, %v715
        %v804 = vshrl.u32 %v803, 4
        %v805 = vand.u32 %v803, 15
        %v806 = vsub.s32 0, %v805
        %v807 = vsel %vm801, %v806, %v805
        %vm808 = vcmp.lt.s32.totalorder %v716, 0
        %v809 = vsub.s32 0, %v716
        %v810 = vsel %vm808, %v809, %v716
        %v811 = vshrl.u32 %v810, 4
        %v812 = vand.u32 %v810, 15
        %v813 = vsub.s32 0, %v812
        %v814 = vsel %vm808, %v813, %v812
        %vm815 = vcmp.lt.s32.totalorder %v717, 0
        %v816 = vsub.s32 0, %v717
        %v817 = vsel %vm815, %v816, %v717
        %v818 = vshrl.u32 %v817, 4
        %v819 = vand.u32 %v817, 15
        %v820 = vsub.s32 0, %v819
        %v821 = vsel %vm815, %v820, %v819
        %vm822 = vcmp.lt.s32.totalorder %v718, 0
        %v823 = vsub.s32 0, %v718
        %v824 = vsel %vm822, %v823, %v718
        %v825 = vshrl.u32 %v824, 4
        %v826 = vand.u32 %v824, 15
        %v827 = vsub.s32 0, %v826
        %v828 = vsel %vm822, %v827, %v826
        %vm829 = vcmp.lt.s32.totalorder %v719, 0
        %v830 = vsub.s32 0, %v719
        %v831 = vsel %vm829, %v830, %v719
        %v832 = vshrl.u32 %v831, 4
        %v833 = vand.u32 %v831, 15
        %v834 = vsub.s32 0, %v833
        %v835 = vsel %vm829, %v834, %v833
        %vm836 = vcmp.lt.s32.totalorder %v720, 0
        %v837 = vsub.s32 0, %v720
        %v838 = vsel %vm836, %v837, %v720
        %v839 = vshrl.u32 %v838, 4
        %v840 = vand.u32 %v838, 15
        %v841 = vsub.s32 0, %v840
        %v842 = vsel %vm836, %v841, %v840
        %vm843 = vcmp.lt.s32.totalorder %v721, 0
        %v844 = vsub.s32 0, %v721
        %v845 = vsel %vm843, %v844, %v721
        %v846 = vshrl.u32 %v845, 4
        %v847 = vand.u32 %v845, 15
        %v848 = vsub.s32 0, %v847
        %v849 = vsel %vm843, %v848, %v847
        %vm850 = vcmp.lt.s32.totalorder %v722, 0
        %v851 = vsub.s32 0, %v722
        %v852 = vsel %vm850, %v851, %v722
        %v853 = vshrl.u32 %v852, 4
        %v854 = vand.u32 %v852, 15
        %v855 = vsub.s32 0, %v854
        %v856 = vsel %vm850, %v855, %v854
        %vm857 = vcmp.lt.s32.totalorder %v723, 0
        %v858 = vsub.s32 0, %v723
        %v859 = vsel %vm857, %v858, %v723
        %v860 = vshrl.u32 %v859, 4
        %v861 = vand.u32 %v859, 15
        %v862 = vsub.s32 0, %v861
        %v863 = vsel %vm857, %v862, %v861
        %vm864 = vcmp.lt.s32.totalorder %v724, 0
        %v865 = vsub.s32 0, %v724
        %v866 = vsel %vm864, %v865, %v724
        %v867 = vshrl.u32 %v866, 4
        %v868 = vand.u32 %v866, 15
        %v869 = vsub.s32 0, %v868
        %v870 = vsel %vm864, %v869, %v868
        %vm871 = vcmp.lt.s32.totalorder %v725, 0
        %v872 = vsub.s32 0, %v725
        %v873 = vsel %vm871, %v872, %v725
        %v874 = vshrl.u32 %v873, 4
        %v875 = vand.u32 %v873, 15
        %v876 = vsub.s32 0, %v875
        %v877 = vsel %vm871, %v876, %v875
        %vm878 = vcmp.lt.s32.totalorder %v726, 0
        %v879 = vsub.s32 0, %v726
        %v880 = vsel %vm878, %v879, %v726
        %v881 = vshrl.u32 %v880, 4
        %v882 = vand.u32 %v880, 15
        %v883 = vsub.s32 0, %v882
        %v884 = vsel %vm878, %v883, %v882
        %vm885 = vcmp.lt.s32.totalorder %v727, 0
        %v886 = vsub.s32 0, %v727
        %v887 = vsel %vm885, %v886, %v727
        %v888 = vshrl.u32 %v887, 4
        %v889 = vand.u32 %v887, 15
        %v890 = vsub.s32 0, %v889
        %v891 = vsel %vm885, %v890, %v889
        %vm892 = vcmp.lt.s32.totalorder %v728, 0
        %v893 = vsub.s32 0, %v728
        %v894 = vsel %vm892, %v893, %v728
        %v895 = vshrl.u32 %v894, 4
        %v896 = vand.u32 %v894, 15
        %v897 = vsub.s32 0, %v896
        %v898 = vsel %vm892, %v897, %v896
        %vm899 = vcmp.lt.s32.totalorder %v729, 0
        %v900 = vsub.s32 0, %v729
        %v901 = vsel %vm899, %v900, %v729
        %v902 = vshrl.u32 %v901, 4
        %v903 = vand.u32 %v901, 15
        %v904 = vsub.s32 0, %v903
        %v905 = vsel %vm899, %v904, %v903
        %vm906 = vcmp.lt.s32.totalorder %v730, 0
        %v907 = vsub.s32 0, %v730
        %v908 = vsel %vm906, %v907, %v730
        %v909 = vshrl.u32 %v908, 4
        %v910 = vand.u32 %v908, 15
        %v911 = vsub.s32 0, %v910
        %v912 = vsel %vm906, %v911, %v910
        %vm913 = vcmp.lt.s32.totalorder %v731, 0
        %v914 = vsub.s32 0, %v731
        %v915 = vsel %vm913, %v914, %v731
        %v916 = vshrl.u32 %v915, 4
        %v917 = vand.u32 %v915, 15
        %v918 = vsub.s32 0, %v917
        %v919 = vsel %vm913, %v918, %v917
        %vm920 = vcmp.lt.s32.totalorder %v732, 0
        %v921 = vsub.s32 0, %v732
        %v922 = vsel %vm920, %v921, %v732
        %v923 = vshrl.u32 %v922, 4
        %v924 = vand.u32 %v922, 15
        %v925 = vsub.s32 0, %v924
        %v926 = vsel %vm920, %v925, %v924
        %vm927 = vcmp.lt.s32.totalorder %v733, 0
        %v928 = vsub.s32 0, %v733
        %v929 = vsel %vm927, %v928, %v733
        %v930 = vshrl.u32 %v929, 4
        %v931 = vand.u32 %v929, 15
        %v932 = vsub.s32 0, %v931
        %v933 = vsel %vm927, %v932, %v931
        %vm934 = vcmp.lt.s32.totalorder %v734, 0
        %v935 = vsub.s32 0, %v734
        %v936 = vsel %vm934, %v935, %v734
        %v937 = vshrl.u32 %v936, 4
        %v938 = vand.u32 %v936, 15
        %v939 = vsub.s32 0, %v938
        %v940 = vsel %vm934, %v939, %v938
        %vm941 = vcmp.lt.s32.totalorder %v735, 0
        %v942 = vsub.s32 0, %v735
        %v943 = vsel %vm941, %v942, %v735
        %v944 = vshrl.u32 %v943, 4
        %v945 = vand.u32 %v943, 15
        %v946 = vsub.s32 0, %v945
        %v947 = vsel %vm941, %v946, %v945
        %vm948 = vcmp.lt.s32.totalorder %v736, 0
        %v949 = vsub.s32 0, %v736
        %v950 = vsel %vm948, %v949, %v736
        %v951 = vshrl.u32 %v950, 4
        %v952 = vand.u32 %v950, 15
        %v953 = vsub.s32 0, %v952
        %v954 = vsel %vm948, %v953, %v952
        %vm955 = vcmp.lt.s32.totalorder %v737, 0
        %v956 = vsub.s32 0, %v737
        %v957 = vsel %vm955, %v956, %v737
        %v958 = vshrl.u32 %v957, 4
        %v959 = vand.u32 %v957, 15
        %v960 = vsub.s32 0, %v959
        %v961 = vsel %vm955, %v960, %v959
        %vm962 = vcmp.ne.s32.totalorder %v744, 0
        %vm963 = vcmp.ne.s32.totalorder %v751, 0
        %vm964 = vcmp.ne.s32.totalorder %v758, 0
        %vm965 = vcmp.ne.s32.totalorder %v765, 0
        %vm966 = vcmp.ne.s32.totalorder %v772, 0
        %vm967 = vcmp.ne.s32.totalorder %v779, 0
        %vm968 = vcmp.ne.s32.totalorder %v786, 0
        %vm969 = vcmp.ne.s32.totalorder %v793, 0
        %vm970 = vcmp.ne.s32.totalorder %v800, 0
        %vm971 = vcmp.ne.s32.totalorder %v807, 0
        %vm972 = vcmp.ne.s32.totalorder %v814, 0
        %vm973 = vcmp.ne.s32.totalorder %v821, 0
        %vm974 = vcmp.ne.s32.totalorder %v828, 0
        %vm975 = vcmp.ne.s32.totalorder %v835, 0
        %vm976 = vcmp.ne.s32.totalorder %v842, 0
        %vm977 = vcmp.ne.s32.totalorder %v849, 0
        %vm978 = vcmp.ne.s32.totalorder %v856, 0
        %vm979 = vcmp.ne.s32.totalorder %v863, 0
        %vm980 = vcmp.ne.s32.totalorder %v870, 0
        %vm981 = vcmp.ne.s32.totalorder %v877, 0
        %vm982 = vcmp.ne.s32.totalorder %v884, 0
        %vm983 = vcmp.ne.s32.totalorder %v891, 0
        %vm984 = vcmp.ne.s32.totalorder %v898, 0
        %vm985 = vcmp.ne.s32.totalorder %v905, 0
        %vm986 = vcmp.ne.s32.totalorder %v912, 0
        %vm987 = vcmp.ne.s32.totalorder %v919, 0
        %vm988 = vcmp.ne.s32.totalorder %v926, 0
        %vm989 = vcmp.ne.s32.totalorder %v933, 0
        %vm990 = vcmp.ne.s32.totalorder %v940, 0
        %vm991 = vcmp.ne.s32.totalorder %v947, 0
        %vm992 = vcmp.ne.s32.totalorder %v954, 0
        %vm993 = vcmp.ne.s32.totalorder %v961, 0
        %vm994 = vcmp.lt.s32.totalorder %v744, 0
        %vm995 = vcmp.lt.s32.totalorder %v751, 0
        %vm996 = vcmp.lt.s32.totalorder %v758, 0
        %vm997 = vcmp.lt.s32.totalorder %v765, 0
        %vm998 = vcmp.lt.s32.totalorder %v772, 0
        %vm999 = vcmp.lt.s32.totalorder %v779, 0
        %vm1000 = vcmp.lt.s32.totalorder %v786, 0
        %vm1001 = vcmp.lt.s32.totalorder %v793, 0
        %vm1002 = vcmp.lt.s32.totalorder %v800, 0
        %vm1003 = vcmp.lt.s32.totalorder %v807, 0
        %vm1004 = vcmp.lt.s32.totalorder %v814, 0
        %vm1005 = vcmp.lt.s32.totalorder %v821, 0
        %vm1006 = vcmp.lt.s32.totalorder %v828, 0
        %vm1007 = vcmp.lt.s32.totalorder %v835, 0
        %vm1008 = vcmp.lt.s32.totalorder %v842, 0
        %vm1009 = vcmp.lt.s32.totalorder %v849, 0
        %vm1010 = vcmp.lt.s32.totalorder %v856, 0
        %vm1011 = vcmp.lt.s32.totalorder %v863, 0
        %vm1012 = vcmp.lt.s32.totalorder %v870, 0
        %vm1013 = vcmp.lt.s32.totalorder %v877, 0
        %vm1014 = vcmp.lt.s32.totalorder %v884, 0
        %vm1015 = vcmp.lt.s32.totalorder %v891, 0
        %vm1016 = vcmp.lt.s32.totalorder %v898, 0
        %vm1017 = vcmp.lt.s32.totalorder %v905, 0
        %vm1018 = vcmp.lt.s32.totalorder %v912, 0
        %vm1019 = vcmp.lt.s32.totalorder %v919, 0
        %vm1020 = vcmp.lt.s32.totalorder %v926, 0
        %vm1021 = vcmp.lt.s32.totalorder %v933, 0
        %vm1022 = vcmp.lt.s32.totalorder %v940, 0
        %vm1023 = vcmp.lt.s32.totalorder %v947, 0
        %vm1024 = vcmp.lt.s32.totalorder %v954, 0
        %vm1025 = vcmp.lt.s32.totalorder %v961, 0
        %vm1026 = vmand %vm994, %vm962
        %vm1027 = vmand %vm995, %vm963
        %vm1028 = vmand %vm996, %vm964
        %vm1029 = vmand %vm997, %vm965
        %vm1030 = vmand %vm998, %vm966
        %vm1031 = vmand %vm999, %vm967
        %vm1032 = vmand %vm1000, %vm968
        %vm1033 = vmand %vm1001, %vm969
        %vm1034 = vmand %vm1002, %vm970
        %vm1035 = vmand %vm1003, %vm971
        %vm1036 = vmand %vm1004, %vm972
        %vm1037 = vmand %vm1005, %vm973
        %vm1038 = vmand %vm1006, %vm974
        %vm1039 = vmand %vm1007, %vm975
        %vm1040 = vmand %vm1008, %vm976
        %vm1041 = vmand %vm1009, %vm977
        %vm1042 = vmand %vm1010, %vm978
        %vm1043 = vmand %vm1011, %vm979
        %vm1044 = vmand %vm1012, %vm980
        %vm1045 = vmand %vm1013, %vm981
        %vm1046 = vmand %vm1014, %vm982
        %vm1047 = vmand %vm1015, %vm983
        %vm1048 = vmand %vm1016, %vm984
        %vm1049 = vmand %vm1017, %vm985
        %vm1050 = vmand %vm1018, %vm986
        %vm1051 = vmand %vm1019, %vm987
        %vm1052 = vmand %vm1020, %vm988
        %vm1053 = vmand %vm1021, %vm989
        %vm1054 = vmand %vm1022, %vm990
        %vm1055 = vmand %vm1023, %vm991
        %vm1056 = vmand %vm1024, %vm992
        %vm1057 = vmand %vm1025, %vm993
        %v1058 = vadd.s32 %v744, 16
        %v1059 = vadd.s32 %v751, 16
        %v1060 = vadd.s32 %v758, 16
        %v1061 = vadd.s32 %v765, 16
        %v1062 = vadd.s32 %v772, 16
        %v1063 = vadd.s32 %v779, 16
        %v1064 = vadd.s32 %v786, 16
        %v1065 = vadd.s32 %v793, 16
        %v1066 = vadd.s32 %v800, 16
        %v1067 = vadd.s32 %v807, 16
        %v1068 = vadd.s32 %v814, 16
        %v1069 = vadd.s32 %v821, 16
        %v1070 = vadd.s32 %v828, 16
        %v1071 = vadd.s32 %v835, 16
        %v1072 = vadd.s32 %v842, 16
        %v1073 = vadd.s32 %v849, 16
        %v1074 = vadd.s32 %v856, 16
        %v1075 = vadd.s32 %v863, 16
        %v1076 = vadd.s32 %v870, 16
        %v1077 = vadd.s32 %v877, 16
        %v1078 = vadd.s32 %v884, 16
        %v1079 = vadd.s32 %v891, 16
        %v1080 = vadd.s32 %v898, 16
        %v1081 = vadd.s32 %v905, 16
        %v1082 = vadd.s32 %v912, 16
        %v1083 = vadd.s32 %v919, 16
        %v1084 = vadd.s32 %v926, 16
        %v1085 = vadd.s32 %v933, 16
        %v1086 = vadd.s32 %v940, 16
        %v1087 = vadd.s32 %v947, 16
        %v1088 = vadd.s32 %v954, 16
        %v1089 = vadd.s32 %v961, 16
        %v1090 = vsel %vm1026, %v1058, %v744
        %v1091 = vsel %vm1027, %v1059, %v751
        %v1092 = vsel %vm1028, %v1060, %v758
        %v1093 = vsel %vm1029, %v1061, %v765
        %v1094 = vsel %vm1030, %v1062, %v772
        %v1095 = vsel %vm1031, %v1063, %v779
        %v1096 = vsel %vm1032, %v1064, %v786
        %v1097 = vsel %vm1033, %v1065, %v793
        %v1098 = vsel %vm1034, %v1066, %v800
        %v1099 = vsel %vm1035, %v1067, %v807
        %v1100 = vsel %vm1036, %v1068, %v814
        %v1101 = vsel %vm1037, %v1069, %v821
        %v1102 = vsel %vm1038, %v1070, %v828
        %v1103 = vsel %vm1039, %v1071, %v835
        %v1104 = vsel %vm1040, %v1072, %v842
        %v1105 = vsel %vm1041, %v1073, %v849
        %v1106 = vsel %vm1042, %v1074, %v856
        %v1107 = vsel %vm1043, %v1075, %v863
        %v1108 = vsel %vm1044, %v1076, %v870
        %v1109 = vsel %vm1045, %v1077, %v877
        %v1110 = vsel %vm1046, %v1078, %v884
        %v1111 = vsel %vm1047, %v1079, %v891
        %v1112 = vsel %vm1048, %v1080, %v898
        %v1113 = vsel %vm1049, %v1081, %v905
        %v1114 = vsel %vm1050, %v1082, %v912
        %v1115 = vsel %vm1051, %v1083, %v919
        %v1116 = vsel %vm1052, %v1084, %v926
        %v1117 = vsel %vm1053, %v1085, %v933
        %v1118 = vsel %vm1054, %v1086, %v940
        %v1119 = vsel %vm1055, %v1087, %v947
        %v1120 = vsel %vm1056, %v1088, %v954
        %v1121 = vsel %vm1057, %v1089, %v961
        %vm1122 = vcmp.ne.s32.totalorder %v1090, 0
        %vm1123 = vcmp.ne.s32.totalorder %v1091, 0
        %vm1124 = vcmp.ne.s32.totalorder %v1092, 0
        %vm1125 = vcmp.ne.s32.totalorder %v1093, 0
        %vm1126 = vcmp.ne.s32.totalorder %v1094, 0
        %vm1127 = vcmp.ne.s32.totalorder %v1095, 0
        %vm1128 = vcmp.ne.s32.totalorder %v1096, 0
        %vm1129 = vcmp.ne.s32.totalorder %v1097, 0
        %vm1130 = vcmp.ne.s32.totalorder %v1098, 0
        %vm1131 = vcmp.ne.s32.totalorder %v1099, 0
        %vm1132 = vcmp.ne.s32.totalorder %v1100, 0
        %vm1133 = vcmp.ne.s32.totalorder %v1101, 0
        %vm1134 = vcmp.ne.s32.totalorder %v1102, 0
        %vm1135 = vcmp.ne.s32.totalorder %v1103, 0
        %vm1136 = vcmp.ne.s32.totalorder %v1104, 0
        %vm1137 = vcmp.ne.s32.totalorder %v1105, 0
        %vm1138 = vcmp.ne.s32.totalorder %v1106, 0
        %vm1139 = vcmp.ne.s32.totalorder %v1107, 0
        %vm1140 = vcmp.ne.s32.totalorder %v1108, 0
        %vm1141 = vcmp.ne.s32.totalorder %v1109, 0
        %vm1142 = vcmp.ne.s32.totalorder %v1110, 0
        %vm1143 = vcmp.ne.s32.totalorder %v1111, 0
        %vm1144 = vcmp.ne.s32.totalorder %v1112, 0
        %vm1145 = vcmp.ne.s32.totalorder %v1113, 0
        %vm1146 = vcmp.ne.s32.totalorder %v1114, 0
        %vm1147 = vcmp.ne.s32.totalorder %v1115, 0
        %vm1148 = vcmp.ne.s32.totalorder %v1116, 0
        %vm1149 = vcmp.ne.s32.totalorder %v1117, 0
        %vm1150 = vcmp.ne.s32.totalorder %v1118, 0
        %vm1151 = vcmp.ne.s32.totalorder %v1119, 0
        %vm1152 = vcmp.ne.s32.totalorder %v1120, 0
        %vm1153 = vcmp.ne.s32.totalorder %v1121, 0
        %vm1154 = vcmp.ne.s32.totalorder %v1090, 15
        %vm1155 = vcmp.ne.s32.totalorder %v1091, 15
        %vm1156 = vcmp.ne.s32.totalorder %v1092, 15
        %vm1157 = vcmp.ne.s32.totalorder %v1093, 15
        %vm1158 = vcmp.ne.s32.totalorder %v1094, 15
        %vm1159 = vcmp.ne.s32.totalorder %v1095, 15
        %vm1160 = vcmp.ne.s32.totalorder %v1096, 15
        %vm1161 = vcmp.ne.s32.totalorder %v1097, 15
        %vm1162 = vcmp.ne.s32.totalorder %v1098, 15
        %vm1163 = vcmp.ne.s32.totalorder %v1099, 15
        %vm1164 = vcmp.ne.s32.totalorder %v1100, 15
        %vm1165 = vcmp.ne.s32.totalorder %v1101, 15
        %vm1166 = vcmp.ne.s32.totalorder %v1102, 15
        %vm1167 = vcmp.ne.s32.totalorder %v1103, 15
        %vm1168 = vcmp.ne.s32.totalorder %v1104, 15
        %vm1169 = vcmp.ne.s32.totalorder %v1105, 15
        %vm1170 = vcmp.ne.s32.totalorder %v1106, 15
        %vm1171 = vcmp.ne.s32.totalorder %v1107, 15
        %vm1172 = vcmp.ne.s32.totalorder %v1108, 15
        %vm1173 = vcmp.ne.s32.totalorder %v1109, 15
        %vm1174 = vcmp.ne.s32.totalorder %v1110, 15
        %vm1175 = vcmp.ne.s32.totalorder %v1111, 15
        %vm1176 = vcmp.ne.s32.totalorder %v1112, 15
        %vm1177 = vcmp.ne.s32.totalorder %v1113, 15
        %vm1178 = vcmp.ne.s32.totalorder %v1114, 15
        %vm1179 = vcmp.ne.s32.totalorder %v1115, 15
        %vm1180 = vcmp.ne.s32.totalorder %v1116, 15
        %vm1181 = vcmp.ne.s32.totalorder %v1117, 15
        %vm1182 = vcmp.ne.s32.totalorder %v1118, 15
        %vm1183 = vcmp.ne.s32.totalorder %v1119, 15
        %vm1184 = vcmp.ne.s32.totalorder %v1120, 15
        %vm1185 = vcmp.ne.s32.totalorder %v1121, 15
        %v1186 = vrot.slane %v673, 7
        %v1187 = vrot.slane %v674, 7
        %v1188 = vrot.slane %v675, 7
        %v1189 = vrot.slane %v676, 7
        %v1190 = vrot.slane %v677, 7
        %v1191 = vrot.slane %v678, 7
        %v1192 = vrot.slane %v679, 7
        %v1193 = vrot.slane %v680, 7
        %v1194 = vrot.slane %v681, 7
        %v1195 = vrot.slane %v682, 7
        %v1196 = vrot.slane %v683, 7
        %v1197 = vrot.slane %v684, 7
        %v1198 = vrot.slane %v685, 7
        %v1199 = vrot.slane %v686, 7
        %v1200 = vrot.slane %v687, 7
        %v1201 = vrot.slane %v688, 7
        %v1202 = vrot.slane %v689, 7
        %v1203 = vrot.slane %v690, 7
        %v1204 = vrot.slane %v691, 7
        %v1205 = vrot.slane %v692, 7
        %v1206 = vrot.slane %v693, 7
        %v1207 = vrot.slane %v694, 7
        %v1208 = vrot.slane %v695, 7
        %v1209 = vrot.slane %v696, 7
        %v1210 = vrot.slane %v697, 7
        %v1211 = vrot.slane %v698, 7
        %v1212 = vrot.slane %v699, 7
        %v1213 = vrot.slane %v700, 7
        %v1214 = vrot.slane %v701, 7
        %v1215 = vrot.slane %v702, 7
        %vm1216 = vcmp.lt.s32.totalorder %v706, 1
        %v1217 = vsel %vm1216, %v1214, %v1215
        %v1218 = vsel %vm1216, %v1213, %v1214
        %v1219 = vsel %vm1216, %v1212, %v1213
        %v1220 = vsel %vm1216, %v1211, %v1212
        %v1221 = vsel %vm1216, %v1210, %v1211
        %v1222 = vsel %vm1216, %v1209, %v1210
        %v1223 = vsel %vm1216, %v1208, %v1209
        %v1224 = vsel %vm1216, %v1207, %v1208
        %v1225 = vsel %vm1216, %v1206, %v1207
        %v1226 = vsel %vm1216, %v1205, %v1206
        %v1227 = vsel %vm1216, %v1204, %v1205
        %v1228 = vsel %vm1216, %v1203, %v1204
        %v1229 = vsel %vm1216, %v1202, %v1203
        %v1230 = vsel %vm1216, %v1201, %v1202
        %v1231 = vsel %vm1216, %v1200, %v1201
        %v1232 = vsel %vm1216, %v1199, %v1200
        %v1233 = vsel %vm1216, %v1198, %v1199
        %v1234 = vsel %vm1216, %v1197, %v1198
        %v1235 = vsel %vm1216, %v1196, %v1197
        %v1236 = vsel %vm1216, %v1195, %v1196
        %v1237 = vsel %vm1216, %v1194, %v1195
        %v1238 = vsel %vm1216, %v1193, %v1194
        %v1239 = vsel %vm1216, %v1192, %v1193
        %v1240 = vsel %vm1216, %v1191, %v1192
        %v1241 = vsel %vm1216, %v1190, %v1191
        %v1242 = vsel %vm1216, %v1189, %v1190
        %v1243 = vsel %vm1216, %v1188, %v1189
        %v1244 = vsel %vm1216, %v1187, %v1188
        %v1245 = vsel %vm1216, %v1186, %v1187
        %v1246 = vsel %vm1216, 0.0, %v1186
        %v1247 = vsel %vm1216, %v1215, 0.0
        %v1248 = vsel %vm1122, %v1247, 0.0
        %v1249 = vsel %vm1123, 0.0, 0.0
        %v1250 = vsel %vm1124, %v1246, 0.0
        %v1251 = vsel %vm1125, %v1245, 0.0
        %v1252 = vsel %vm1126, %v1244, 0.0
        %v1253 = vsel %vm1127, %v1243, 0.0
        %v1254 = vsel %vm1128, %v1242, 0.0
        %v1255 = vsel %vm1129, %v1241, 0.0
        %v1256 = vsel %vm1130, %v1240, 0.0
        %v1257 = vsel %vm1131, %v1239, 0.0
        %v1258 = vsel %vm1132, %v1238, 0.0
        %v1259 = vsel %vm1133, %v1237, 0.0
        %v1260 = vsel %vm1134, %v1236, 0.0
        %v1261 = vsel %vm1135, %v1235, 0.0
        %v1262 = vsel %vm1136, %v1234, 0.0
        %v1263 = vsel %vm1137, %v1233, 0.0
        %v1264 = vsel %vm1138, %v1232, 0.0
        %v1265 = vsel %vm1139, %v1231, 0.0
        %v1266 = vsel %vm1140, %v1230, 0.0
        %v1267 = vsel %vm1141, %v1229, 0.0
        %v1268 = vsel %vm1142, %v1228, 0.0
        %v1269 = vsel %vm1143, %v1227, 0.0
        %v1270 = vsel %vm1144, %v1226, 0.0
        %v1271 = vsel %vm1145, %v1225, 0.0
        %v1272 = vsel %vm1146, %v1224, 0.0
        %v1273 = vsel %vm1147, %v1223, 0.0
        %v1274 = vsel %vm1148, %v1222, 0.0
        %v1275 = vsel %vm1149, %v1221, 0.0
        %v1276 = vsel %vm1150, %v1220, 0.0
        %v1277 = vsel %vm1151, %v1219, 0.0
        %v1278 = vsel %vm1152, %v1218, 0.0
        %v1279 = vsel %vm1153, %v1217, 0.0
        %v1280 = vpack.c.bf16 %v1249, %v1248
        %v1281 = vpack.c.bf16 %v1251, %v1250
        %v1282 = vpack.c.bf16 %v1253, %v1252
        %v1283 = vpack.c.bf16 %v1255, %v1254
        %v1284 = vpack.c.bf16 %v1257, %v1256
        %v1285 = vpack.c.bf16 %v1259, %v1258
        %v1286 = vpack.c.bf16 %v1261, %v1260
        %v1287 = vpack.c.bf16 %v1263, %v1262
        %v1288 = vpack.c.bf16 %v1265, %v1264
        %v1289 = vpack.c.bf16 %v1267, %v1266
        %v1290 = vpack.c.bf16 %v1269, %v1268
        %v1291 = vpack.c.bf16 %v1271, %v1270
        %v1292 = vpack.c.bf16 %v1273, %v1272
        %v1293 = vpack.c.bf16 %v1275, %v1274
        %v1294 = vpack.c.bf16 %v1277, %v1276
        %v1295 = vpack.c.bf16 %v1279, %v1278
        %v1296 = vld [vmem:[#allocation5] sm:$0xf]
        %v1297 = vld [vmem:[#allocation5 + $0x4] sm:$0xf]
        %v1298 = vld [vmem:[#allocation5 + $0x8] sm:$0xf]
        %v1299 = vld [vmem:[#allocation5 + $0xc] sm:$0xf]
        %v1300 = vpack.c.bf16 0.0, 0.0
        %v1301 = vpack.c.bf16 %v674, %v673
        %v1302 = vpack.c.bf16 %v676, %v675
        %v1303 = vpack.c.bf16 %v678, %v677
        %v1304 = vpack.c.bf16 %v680, %v679
        %v1305 = vpack.c.bf16 %v682, %v681
        %v1306 = vpack.c.bf16 %v684, %v683
        %v1307 = vpack.c.bf16 %v686, %v685
        %v1308 = vpack.c.bf16 %v688, %v687
        %v1309 = vpack.c.bf16 %v690, %v689
        %v1310 = vpack.c.bf16 %v692, %v691
        %v1311 = vpack.c.bf16 %v694, %v693
        %v1312 = vpack.c.bf16 %v696, %v695
        %v1313 = vpack.c.bf16 %v698, %v697
        %v1314 = vpack.c.bf16 %v700, %v699
        %v1315 = vpack.c.bf16 %v702, %v701
        %s1316 = scalar_lea.vmem [#allocation5], 16
        %v1317 = vld [vmem:[%s1316] sm:$0xf]
        %v1318 = vld [vmem:[%s1316 + $0x4] sm:$0xf]
        %v1319 = vld [vmem:[%s1316 + $0x8] sm:$0xf]
        %v1320 = vld [vmem:[%s1316 + $0xc] sm:$0xf]
        %v1325 = vunpack.c.l.b16 %v1317
        %v1326 = vunpack.c.l.b16 %v1318
        %v1327 = vunpack.c.l.b16 %v1319
        %v1328 = vunpack.c.l.b16 %v1320
        %v1329 = vpack.c.b16 %v1326, %v1325
        %v1330 = vpack.c.b16 %v1328, %v1327
        %vm1333 = vcmask 261120
        %v1335 = vsel %vm1333, %v1300, 0
        %v1338 = vsel %vm1333, %v1301, 0
        %v1341 = vsel %vm1333, %v1302, 0
        %v1344 = vsel %vm1333, %v1303, 0
        %v1347 = vsel %vm1333, %v1304, 0
        %v1350 = vsel %vm1333, %v1305, 0
        %v1353 = vsel %vm1333, %v1306, 0
        %v1356 = vsel %vm1333, %v1307, 0
        %v1359 = vsel %vm1333, %v1308, 0
        %v1362 = vsel %vm1333, %v1309, 0
        %v1365 = vsel %vm1333, %v1310, 0
        %v1368 = vsel %vm1333, %v1311, 0
        %v1371 = vsel %vm1333, %v1312, 0
        %v1374 = vsel %vm1333, %v1313, 0
        %v1377 = vsel %vm1333, %v1314, 0
        %v1380 = vsel %vm1333, %v1315, 0
        %1382 = vmatprep.subr.bf16.mxu0 0
        %1383 = vmatpush1.bf16.msra.mxu0 %v1329
        %1384 = vmatprep.subr.bf16.mxu0 0
        %1385 = vmatpush1.bf16.msra.mxu0 %v1330
        %1386 = vmatprep.subr.bf16.mxu0 0
        %1387 = vmatpush1.bf16.msra.mxu0 0
        %1388 = vmatprep.subr.bf16.mxu0 0
        %1389 = vmatpush1.bf16.msra.mxu0 0
        %1390 = vmatprep.subr.bf16.mxu0 0
        %1391 = vmatpush1.bf16.msra.mxu0 0
        %1392 = vmatprep.subr.bf16.mxu0 0
        %1393 = vmatpush1.bf16.msra.mxu0 0
        %1394 = vmatprep.subr.bf16.mxu0 0
        %1395 = vmatpush1.bf16.msra.mxu0 0
        %1396 = vmatprep.subr.bf16.mxu0 0
        %1397 = vmatpush1.bf16.msra.mxu0 0
        %1398 = vmatprep.subr.bf16.mxu0 0
        %1399 = vmatpush1.bf16.msra.mxu0 0
        %1400 = vmatprep.subr.bf16.mxu0 0
        %1401 = vmatpush1.bf16.msra.mxu0 0
        %1402 = vmatprep.subr.bf16.mxu0 0
        %1403 = vmatpush1.bf16.msra.mxu0 0
        %1404 = vmatprep.subr.bf16.mxu0 0
        %1405 = vmatpush1.bf16.msra.mxu0 0
        %1406 = vmatprep.subr.bf16.mxu0 0
        %1407 = vmatpush1.bf16.msra.mxu0 0
        %1408 = vmatprep.subr.bf16.mxu0 0
        %1409 = vmatpush1.bf16.msra.mxu0 0
        %1410 = vmatprep.subr.bf16.mxu0 0
        %1411 = vmatpush1.bf16.msra.mxu0 0
        %1412 = vmatprep.subr.bf16.mxu0 0
        %1413 = vmatpush1.bf16.msra.mxu0 0
        %1414 = vmatprep.mubr.bf16.mxu0 0
        %1415 = vmatmul.mubr.bf16.gmra.mrb[0].mxu0 %v1335
        %v1416 = vpop.f32.mrb[0].mxu0
        %v1417 = vadd.f32 0.0, %v1416
        %v1418 = vpop.f32.mrb[0].mxu0
        %v1419 = vpop.f32.mrb[0].mxu0
        %v1420 = vadd.f32 0.0, %v1419
        %v1421 = vpop.f32.mrb[0].mxu0
        %1422 = vmatprep.mubr.bf16.mxu0 0
        %1423 = vmatmul.mubr.bf16.gmra.mrb[0].mxu0 %v1338
        %v1424 = vpop.f32.mrb[0].mxu0
        %v1425 = vadd.f32 0.0, %v1424
        %v1426 = vpop.f32.mrb[0].mxu0
        %v1427 = vpop.f32.mrb[0].mxu0
        %v1428 = vadd.f32 0.0, %v1427
        %v1429 = vpop.f32.mrb[0].mxu0
        %1430 = vmatprep.mubr.bf16.mxu0 0
        %1431 = vmatmul.mubr.bf16.gmra.mrb[0].mxu0 %v1341
        %v1432 = vpop.f32.mrb[0].mxu0
        %v1433 = vadd.f32 0.0, %v1432
        %v1434 = vpop.f32.mrb[0].mxu0
        %v1435 = vpop.f32.mrb[0].mxu0
        %v1436 = vadd.f32 0.0, %v1435
        %v1437 = vpop.f32.mrb[0].mxu0
        %1438 = vmatprep.mubr.bf16.mxu0 0
        %1439 = vmatmul.mubr.bf16.gmra.mrb[0].mxu0 %v1344
        %v1440 = vpop.f32.mrb[0].mxu0
        %v1441 = vadd.f32 0.0, %v1440
        %v1442 = vpop.f32.mrb[0].mxu0
        %v1443 = vpop.f32.mrb[0].mxu0
        %v1444 = vadd.f32 0.0, %v1443
        %v1445 = vpop.f32.mrb[0].mxu0
        %1446 = vmatprep.mubr.bf16.mxu0 0
        %1447 = vmatmul.mubr.bf16.gmra.mrb[0].mxu0 %v1347
        %v1448 = vpop.f32.mrb[0].mxu0
        %v1449 = vadd.f32 0.0, %v1448
        %v1450 = vpop.f32.mrb[0].mxu0
        %v1451 = vpop.f32.mrb[0].mxu0
        %v1452 = vadd.f32 0.0, %v1451
        %v1453 = vpop.f32.mrb[0].mxu0
        %1454 = vmatprep.mubr.bf16.mxu0 0
        %1455 = vmatmul.mubr.bf16.gmra.mrb[0].mxu0 %v1350
        %v1456 = vpop.f32.mrb[0].mxu0
        %v1457 = vadd.f32 0.0, %v1456
        %v1458 = vpop.f32.mrb[0].mxu0
        %v1459 = vpop.f32.mrb[0].mxu0
        %v1460 = vadd.f32 0.0, %v1459
        %v1461 = vpop.f32.mrb[0].mxu0
        %1462 = vmatprep.mubr.bf16.mxu0 0
        %1463 = vmatmul.mubr.bf16.gmra.mrb[0].mxu0 %v1353
        %v1464 = vpop.f32.mrb[0].mxu0
        %v1465 = vadd.f32 0.0, %v1464
        %v1466 = vpop.f32.mrb[0].mxu0
        %v1467 = vpop.f32.mrb[0].mxu0
        %v1468 = vadd.f32 0.0, %v1467
        %v1469 = vpop.f32.mrb[0].mxu0
        %1470 = vmatprep.mubr.bf16.mxu0 0
        %1471 = vmatmul.mubr.bf16.gmra.mrb[0].mxu0 %v1356
        %v1472 = vpop.f32.mrb[0].mxu0
        %v1473 = vadd.f32 0.0, %v1472
        %v1474 = vpop.f32.mrb[0].mxu0
        %v1475 = vpop.f32.mrb[0].mxu0
        %v1476 = vadd.f32 0.0, %v1475
        %v1477 = vpop.f32.mrb[0].mxu0
        %1478 = vmatprep.mubr.bf16.mxu0 0
        %1479 = vmatmul.mubr.bf16.gmra.mrb[0].mxu0 %v1359
        %v1480 = vpop.f32.mrb[0].mxu0
        %v1481 = vadd.f32 0.0, %v1480
        %v1482 = vpop.f32.mrb[0].mxu0
        %v1483 = vpop.f32.mrb[0].mxu0
        %v1484 = vadd.f32 0.0, %v1483
        %v1485 = vpop.f32.mrb[0].mxu0
        %1486 = vmatprep.mubr.bf16.mxu0 0
        %1487 = vmatmul.mubr.bf16.gmra.mrb[0].mxu0 %v1362
        %v1488 = vpop.f32.mrb[0].mxu0
        %v1489 = vadd.f32 0.0, %v1488
        %v1490 = vpop.f32.mrb[0].mxu0
        %v1491 = vpop.f32.mrb[0].mxu0
        %v1492 = vadd.f32 0.0, %v1491
        %v1493 = vpop.f32.mrb[0].mxu0
        %1494 = vmatprep.mubr.bf16.mxu0 0
        %1495 = vmatmul.mubr.bf16.gmra.mrb[0].mxu0 %v1365
        %v1496 = vpop.f32.mrb[0].mxu0
        %v1497 = vadd.f32 0.0, %v1496
        %v1498 = vpop.f32.mrb[0].mxu0
        %v1499 = vpop.f32.mrb[0].mxu0
        %v1500 = vadd.f32 0.0, %v1499
        %v1501 = vpop.f32.mrb[0].mxu0
        %1502 = vmatprep.mubr.bf16.mxu0 0
        %1503 = vmatmul.mubr.bf16.gmra.mrb[0].mxu0 %v1368
        %v1504 = vpop.f32.mrb[0].mxu0
        %v1505 = vadd.f32 0.0, %v1504
        %v1506 = vpop.f32.mrb[0].mxu0
        %v1507 = vpop.f32.mrb[0].mxu0
        %v1508 = vadd.f32 0.0, %v1507
        %v1509 = vpop.f32.mrb[0].mxu0
        %1510 = vmatprep.mubr.bf16.mxu0 0
        %1511 = vmatmul.mubr.bf16.gmra.mrb[0].mxu0 %v1371
        %v1512 = vpop.f32.mrb[0].mxu0
        %v1513 = vadd.f32 0.0, %v1512
        %v1514 = vpop.f32.mrb[0].mxu0
        %v1515 = vpop.f32.mrb[0].mxu0
        %v1516 = vadd.f32 0.0, %v1515
        %v1517 = vpop.f32.mrb[0].mxu0
        %1518 = vmatprep.mubr.bf16.mxu0 0
        %1519 = vmatmul.mubr.bf16.gmra.mrb[0].mxu0 %v1374
        %v1520 = vpop.f32.mrb[0].mxu0
        %v1521 = vadd.f32 0.0, %v1520
        %v1522 = vpop.f32.mrb[0].mxu0
        %v1523 = vpop.f32.mrb[0].mxu0
        %v1524 = vadd.f32 0.0, %v1523
        %v1525 = vpop.f32.mrb[0].mxu0
        %1526 = vmatprep.mubr.bf16.mxu0 0
        %1527 = vmatmul.mubr.bf16.gmra.mrb[0].mxu0 %v1377
        %v1528 = vpop.f32.mrb[0].mxu0
        %v1529 = vadd.f32 0.0, %v1528
        %v1530 = vpop.f32.mrb[0].mxu0
        %v1531 = vpop.f32.mrb[0].mxu0
        %v1532 = vadd.f32 0.0, %v1531
        %v1533 = vpop.f32.mrb[0].mxu0
        %1534 = vmatprep.mubr.bf16.mxu0 0
        %1535 = vmatmul.mubr.bf16.gmra.mrb[0].mxu0 %v1380
        %v1536 = vpop.f32.mrb[0].mxu0
        %v1537 = vadd.f32 0.0, %v1536
        %v1538 = vpop.f32.mrb[0].mxu0
        %v1539 = vpop.f32.mrb[0].mxu0
        %v1540 = vadd.f32 0.0, %v1539
        %v1541 = vpop.f32.mrb[0].mxu0
        %1542 = vdwg.mxu0
        %v1547 = vunpack.c.l.b16 %v1296
        %v1548 = vunpack.c.l.b16 %v1297
        %v1549 = vunpack.c.l.b16 %v1298
        %v1550 = vunpack.c.l.b16 %v1299
        %v1551 = vpack.c.b16 %v1548, %v1547
        %v1552 = vpack.c.b16 %v1550, %v1549
        %v1556 = vsel %vm1333, %v1280, 0
        %v1559 = vsel %vm1333, %v1281, 0
        %v1562 = vsel %vm1333, %v1282, 0
        %v1565 = vsel %vm1333, %v1283, 0
        %v1568 = vsel %vm1333, %v1284, 0
        %v1571 = vsel %vm1333, %v1285, 0
        %v1574 = vsel %vm1333, %v1286, 0
        %v1577 = vsel %vm1333, %v1287, 0
        %v1580 = vsel %vm1333, %v1288, 0
        %v1583 = vsel %vm1333, %v1289, 0
        %v1586 = vsel %vm1333, %v1290, 0
        %v1589 = vsel %vm1333, %v1291, 0
        %v1592 = vsel %vm1333, %v1292, 0
        %v1595 = vsel %vm1333, %v1293, 0
        %v1598 = vsel %vm1333, %v1294, 0
        %v1601 = vsel %vm1333, %v1295, 0
        %1603 = vmatprep.subr.bf16.mxu0 0
        %1604 = vmatpush1.bf16.msra.mxu0 %v1551
        %1605 = vmatprep.subr.bf16.mxu0 0
        %1606 = vmatpush1.bf16.msra.mxu0 %v1552
        %1607 = vmatprep.subr.bf16.mxu0 0
        %1608 = vmatpush1.bf16.msra.mxu0 0
        %1609 = vmatprep.subr.bf16.mxu0 0
        %1610 = vmatpush1.bf16.msra.mxu0 0
        %1611 = vmatprep.subr.bf16.mxu0 0
        %1612 = vmatpush1.bf16.msra.mxu0 0
        %1613 = vmatprep.subr.bf16.mxu0 0
        %1614 = vmatpush1.bf16.msra.mxu0 0
        %1615 = vmatprep.subr.bf16.mxu0 0
        %1616 = vmatpush1.bf16.msra.mxu0 0
        %1617 = vmatprep.subr.bf16.mxu0 0
        %1618 = vmatpush1.bf16.msra.mxu0 0
        %1619 = vmatprep.subr.bf16.mxu0 0
        %1620 = vmatpush1.bf16.msra.mxu0 0
        %1621 = vmatprep.subr.bf16.mxu0 0
        %1622 = vmatpush1.bf16.msra.mxu0 0
        %1623 = vmatprep.subr.bf16.mxu0 0
        %1624 = vmatpush1.bf16.msra.mxu0 0
        %1625 = vmatprep.subr.bf16.mxu0 0
        %1626 = vmatpush1.bf16.msra.mxu0 0
        %1627 = vmatprep.subr.bf16.mxu0 0
        %1628 = vmatpush1.bf16.msra.mxu0 0
        %1629 = vmatprep.subr.bf16.mxu0 0
        %1630 = vmatpush1.bf16.msra.mxu0 0
        %1631 = vmatprep.subr.bf16.mxu0 0
        %1632 = vmatpush1.bf16.msra.mxu0 0
        %1633 = vmatprep.subr.bf16.mxu0 0
        %1634 = vmatpush1.bf16.msra.mxu0 0
        %1635 = vmatprep.mubr.bf16.mxu0 0
        %1636 = vmatmul.mubr.bf16.gmra.mrb[0].mxu0 %v1556
        %v1637 = vpop.f32.mrb[0].mxu0
        %v1638 = vadd.f32 %v1417, %v1637
        %v1639 = vpop.f32.mrb[0].mxu0
        %v1640 = vpop.f32.mrb[0].mxu0
        %v1641 = vadd.f32 %v1420, %v1640
        %v1642 = vpop.f32.mrb[0].mxu0
        %1643 = vmatprep.mubr.bf16.mxu0 0
        %1644 = vmatmul.mubr.bf16.gmra.mrb[0].mxu0 %v1559
        %v1645 = vpop.f32.mrb[0].mxu0
        %v1646 = vadd.f32 %v1425, %v1645
        %v1647 = vpop.f32.mrb[0].mxu0
        %v1648 = vpop.f32.mrb[0].mxu0
        %v1649 = vadd.f32 %v1428, %v1648
        %v1650 = vpop.f32.mrb[0].mxu0
        %1651 = vmatprep.mubr.bf16.mxu0 0
        %1652 = vmatmul.mubr.bf16.gmra.mrb[0].mxu0 %v1562
        %v1653 = vpop.f32.mrb[0].mxu0
        %v1654 = vadd.f32 %v1433, %v1653
        %v1655 = vpop.f32.mrb[0].mxu0
        %v1656 = vpop.f32.mrb[0].mxu0
        %v1657 = vadd.f32 %v1436, %v1656
        %v1658 = vpop.f32.mrb[0].mxu0
        %1659 = vmatprep.mubr.bf16.mxu0 0
        %1660 = vmatmul.mubr.bf16.gmra.mrb[0].mxu0 %v1565
        %v1661 = vpop.f32.mrb[0].mxu0
        %v1662 = vadd.f32 %v1441, %v1661
        %v1663 = vpop.f32.mrb[0].mxu0
        %v1664 = vpop.f32.mrb[0].mxu0
        %v1665 = vadd.f32 %v1444, %v1664
        %v1666 = vpop.f32.mrb[0].mxu0
        %1667 = vmatprep.mubr.bf16.mxu0 0
        %1668 = vmatmul.mubr.bf16.gmra.mrb[0].mxu0 %v1568
        %v1669 = vpop.f32.mrb[0].mxu0
        %v1670 = vadd.f32 %v1449, %v1669
        %v1671 = vpop.f32.mrb[0].mxu0
        %v1672 = vpop.f32.mrb[0].mxu0
        %v1673 = vadd.f32 %v1452, %v1672
        %v1674 = vpop.f32.mrb[0].mxu0
        %1675 = vmatprep.mubr.bf16.mxu0 0
        %1676 = vmatmul.mubr.bf16.gmra.mrb[0].mxu0 %v1571
        %v1677 = vpop.f32.mrb[0].mxu0
        %v1678 = vadd.f32 %v1457, %v1677
        %v1679 = vpop.f32.mrb[0].mxu0
        %v1680 = vpop.f32.mrb[0].mxu0
        %v1681 = vadd.f32 %v1460, %v1680
        %v1682 = vpop.f32.mrb[0].mxu0
        %1683 = vmatprep.mubr.bf16.mxu0 0
        %1684 = vmatmul.mubr.bf16.gmra.mrb[0].mxu0 %v1574
        %v1685 = vpop.f32.mrb[0].mxu0
        %v1686 = vadd.f32 %v1465, %v1685
        %v1687 = vpop.f32.mrb[0].mxu0
        %v1688 = vpop.f32.mrb[0].mxu0
        %v1689 = vadd.f32 %v1468, %v1688
        %v1690 = vpop.f32.mrb[0].mxu0
        %1691 = vmatprep.mubr.bf16.mxu0 0
        %1692 = vmatmul.mubr.bf16.gmra.mrb[0].mxu0 %v1577
        %v1693 = vpop.f32.mrb[0].mxu0
        %v1694 = vadd.f32 %v1473, %v1693
        %v1695 = vpop.f32.mrb[0].mxu0
        %v1696 = vpop.f32.mrb[0].mxu0
        %v1697 = vadd.f32 %v1476, %v1696
        %v1698 = vpop.f32.mrb[0].mxu0
        %1699 = vmatprep.mubr.bf16.mxu0 0
        %1700 = vmatmul.mubr.bf16.gmra.mrb[0].mxu0 %v1580
        %v1701 = vpop.f32.mrb[0].mxu0
        %v1702 = vadd.f32 %v1481, %v1701
        %v1703 = vpop.f32.mrb[0].mxu0
        %v1704 = vpop.f32.mrb[0].mxu0
        %v1705 = vadd.f32 %v1484, %v1704
        %v1706 = vpop.f32.mrb[0].mxu0
        %1707 = vmatprep.mubr.bf16.mxu0 0
        %1708 = vmatmul.mubr.bf16.gmra.mrb[0].mxu0 %v1583
        %v1709 = vpop.f32.mrb[0].mxu0
        %v1710 = vadd.f32 %v1489, %v1709
        %v1711 = vpop.f32.mrb[0].mxu0
        %v1712 = vpop.f32.mrb[0].mxu0
        %v1713 = vadd.f32 %v1492, %v1712
        %v1714 = vpop.f32.mrb[0].mxu0
        %1715 = vmatprep.mubr.bf16.mxu0 0
        %1716 = vmatmul.mubr.bf16.gmra.mrb[0].mxu0 %v1586
        %v1717 = vpop.f32.mrb[0].mxu0
        %v1718 = vadd.f32 %v1497, %v1717
        %v1719 = vpop.f32.mrb[0].mxu0
        %v1720 = vpop.f32.mrb[0].mxu0
        %v1721 = vadd.f32 %v1500, %v1720
        %v1722 = vpop.f32.mrb[0].mxu0
        %1723 = vmatprep.mubr.bf16.mxu0 0
        %1724 = vmatmul.mubr.bf16.gmra.mrb[0].mxu0 %v1589
        %v1725 = vpop.f32.mrb[0].mxu0
        %v1726 = vadd.f32 %v1505, %v1725
        %v1727 = vpop.f32.mrb[0].mxu0
        %v1728 = vpop.f32.mrb[0].mxu0
        %v1729 = vadd.f32 %v1508, %v1728
        %v1730 = vpop.f32.mrb[0].mxu0
        %1731 = vmatprep.mubr.bf16.mxu0 0
        %1732 = vmatmul.mubr.bf16.gmra.mrb[0].mxu0 %v1592
        %v1733 = vpop.f32.mrb[0].mxu0
        %v1734 = vadd.f32 %v1513, %v1733
        %v1735 = vpop.f32.mrb[0].mxu0
        %v1736 = vpop.f32.mrb[0].mxu0
        %v1737 = vadd.f32 %v1516, %v1736
        %v1738 = vpop.f32.mrb[0].mxu0
        %1739 = vmatprep.mubr.bf16.mxu0 0
        %1740 = vmatmul.mubr.bf16.gmra.mrb[0].mxu0 %v1595
        %v1741 = vpop.f32.mrb[0].mxu0
        %v1742 = vadd.f32 %v1521, %v1741
        %v1743 = vpop.f32.mrb[0].mxu0
        %v1744 = vpop.f32.mrb[0].mxu0
        %v1745 = vadd.f32 %v1524, %v1744
        %v1746 = vpop.f32.mrb[0].mxu0
        %1747 = vmatprep.mubr.bf16.mxu0 0
        %1748 = vmatmul.mubr.bf16.gmra.mrb[0].mxu0 %v1598
        %v1749 = vpop.f32.mrb[0].mxu0
        %v1750 = vadd.f32 %v1529, %v1749
        %v1751 = vpop.f32.mrb[0].mxu0
        %v1752 = vpop.f32.mrb[0].mxu0
        %v1753 = vadd.f32 %v1532, %v1752
        %v1754 = vpop.f32.mrb[0].mxu0
        %1755 = vmatprep.mubr.bf16.mxu0 0
        %1756 = vmatmul.mubr.bf16.gmra.mrb[0].mxu0 %v1601
        %v1757 = vpop.f32.mrb[0].mxu0
        %v1758 = vadd.f32 %v1537, %v1757
        %v1759 = vpop.f32.mrb[0].mxu0
        %v1760 = vpop.f32.mrb[0].mxu0
        %v1761 = vadd.f32 %v1540, %v1760
        %v1762 = vpop.f32.mrb[0].mxu0
        %1763 = vdwg.mxu0
        %v1764 = vrot.slane %v673, 1
        %v1765 = vrot.slane %v674, 1
        %v1766 = vrot.slane %v675, 1
        %v1767 = vrot.slane %v676, 1
        %v1768 = vrot.slane %v677, 1
        %v1769 = vrot.slane %v678, 1
        %v1770 = vrot.slane %v679, 1
        %v1771 = vrot.slane %v680, 1
        %v1772 = vrot.slane %v681, 1
        %v1773 = vrot.slane %v682, 1
        %v1774 = vrot.slane %v683, 1
        %v1775 = vrot.slane %v684, 1
        %v1776 = vrot.slane %v685, 1
        %v1777 = vrot.slane %v686, 1
        %v1778 = vrot.slane %v687, 1
        %v1779 = vrot.slane %v688, 1
        %v1780 = vrot.slane %v689, 1
        %v1781 = vrot.slane %v690, 1
        %v1782 = vrot.slane %v691, 1
        %v1783 = vrot.slane %v692, 1
        %v1784 = vrot.slane %v693, 1
        %v1785 = vrot.slane %v694, 1
        %v1786 = vrot.slane %v695, 1
        %v1787 = vrot.slane %v696, 1
        %v1788 = vrot.slane %v697, 1
        %v1789 = vrot.slane %v698, 1
        %v1790 = vrot.slane %v699, 1
        %v1791 = vrot.slane %v700, 1
        %v1792 = vrot.slane %v701, 1
        %v1793 = vrot.slane %v702, 1
        %vm1794 = vcmp.lt.s32.totalorder %v706, 7
        %v1795 = vsel %vm1794, %v1792, %v1793
        %v1796 = vsel %vm1794, %v1791, %v1792
        %v1797 = vsel %vm1794, %v1790, %v1791
        %v1798 = vsel %vm1794, %v1789, %v1790
        %v1799 = vsel %vm1794, %v1788, %v1789
        %v1800 = vsel %vm1794, %v1787, %v1788
        %v1801 = vsel %vm1794, %v1786, %v1787
        %v1802 = vsel %vm1794, %v1785, %v1786
        %v1803 = vsel %vm1794, %v1784, %v1785
        %v1804 = vsel %vm1794, %v1783, %v1784
        %v1805 = vsel %vm1794, %v1782, %v1783
        %v1806 = vsel %vm1794, %v1781, %v1782
        %v1807 = vsel %vm1794, %v1780, %v1781
        %v1808 = vsel %vm1794, %v1779, %v1780
        %v1809 = vsel %vm1794, %v1778, %v1779
        %v1810 = vsel %vm1794, %v1777, %v1778
        %v1811 = vsel %vm1794, %v1776, %v1777
        %v1812 = vsel %vm1794, %v1775, %v1776
        %v1813 = vsel %vm1794, %v1774, %v1775
        %v1814 = vsel %vm1794, %v1773, %v1774
        %v1815 = vsel %vm1794, %v1772, %v1773
        %v1816 = vsel %vm1794, %v1771, %v1772
        %v1817 = vsel %vm1794, %v1770, %v1771
        %v1818 = vsel %vm1794, %v1769, %v1770
        %v1819 = vsel %vm1794, %v1768, %v1769
        %v1820 = vsel %vm1794, %v1767, %v1768
        %v1821 = vsel %vm1794, %v1766, %v1767
        %v1822 = vsel %vm1794, %v1765, %v1766
        %v1823 = vsel %vm1794, %v1764, %v1765
        %v1824 = vsel %vm1794, 0.0, %v1764
        %v1825 = vsel %vm1794, %v1793, 0.0
        %v1826 = vsel %vm1154, 0.0, 0.0
        %v1827 = vsel %vm1155, %v1824, 0.0
        %v1828 = vsel %vm1156, %v1823, 0.0
        %v1829 = vsel %vm1157, %v1822, 0.0
        %v1830 = vsel %vm1158, %v1821, 0.0
        %v1831 = vsel %vm1159, %v1820, 0.0
        %v1832 = vsel %vm1160, %v1819, 0.0
        %v1833 = vsel %vm1161, %v1818, 0.0
        %v1834 = vsel %vm1162, %v1817, 0.0
        %v1835 = vsel %vm1163, %v1816, 0.0
        %v1836 = vsel %vm1164, %v1815, 0.0
        %v1837 = vsel %vm1165, %v1814, 0.0
        %v1838 = vsel %vm1166, %v1813, 0.0
        %v1839 = vsel %vm1167, %v1812, 0.0
        %v1840 = vsel %vm1168, %v1811, 0.0
        %v1841 = vsel %vm1169, %v1810, 0.0
        %v1842 = vsel %vm1170, %v1809, 0.0
        %v1843 = vsel %vm1171, %v1808, 0.0
        %v1844 = vsel %vm1172, %v1807, 0.0
        %v1845 = vsel %vm1173, %v1806, 0.0
        %v1846 = vsel %vm1174, %v1805, 0.0
        %v1847 = vsel %vm1175, %v1804, 0.0
        %v1848 = vsel %vm1176, %v1803, 0.0
        %v1849 = vsel %vm1177, %v1802, 0.0
        %v1850 = vsel %vm1178, %v1801, 0.0
        %v1851 = vsel %vm1179, %v1800, 0.0
        %v1852 = vsel %vm1180, %v1799, 0.0
        %v1853 = vsel %vm1181, %v1798, 0.0
        %v1854 = vsel %vm1182, %v1797, 0.0
        %v1855 = vsel %vm1183, %v1796, 0.0
        %v1856 = vsel %vm1184, %v1795, 0.0
        %v1857 = vsel %vm1185, %v1825, 0.0
        %v1858 = vpack.c.bf16 %v1827, %v1826
        %v1859 = vpack.c.bf16 %v1829, %v1828
        %v1860 = vpack.c.bf16 %v1831, %v1830
        %v1861 = vpack.c.bf16 %v1833, %v1832
        %v1862 = vpack.c.bf16 %v1835, %v1834
        %v1863 = vpack.c.bf16 %v1837, %v1836
        %v1864 = vpack.c.bf16 %v1839, %v1838
        %v1865 = vpack.c.bf16 %v1841, %v1840
        %v1866 = vpack.c.bf16 %v1843, %v1842
        %v1867 = vpack.c.bf16 %v1845, %v1844
        %v1868 = vpack.c.bf16 %v1847, %v1846
        %v1869 = vpack.c.bf16 %v1849, %v1848
        %v1870 = vpack.c.bf16 %v1851, %v1850
        %v1871 = vpack.c.bf16 %v1853, %v1852
        %v1872 = vpack.c.bf16 %v1855, %v1854
        %v1873 = vpack.c.bf16 %v1857, %v1856
        %s1874 = scalar_lea.vmem [#allocation5], 32
        %v1875 = vld [vmem:[%s1874] sm:$0xf]
        %v1876 = vld [vmem:[%s1874 + $0x4] sm:$0xf]
        %v1877 = vld [vmem:[%s1874 + $0x8] sm:$0xf]
        %v1878 = vld [vmem:[%s1874 + $0xc] sm:$0xf]
        %v1883 = vunpack.c.l.b16 %v1875
        %v1884 = vunpack.c.l.b16 %v1876
        %v1885 = vunpack.c.l.b16 %v1877
        %v1886 = vunpack.c.l.b16 %v1878
        %v1887 = vpack.c.b16 %v1884, %v1883
        %v1888 = vpack.c.b16 %v1886, %v1885
        %v1892 = vsel %vm1333, %v1858, 0
        %v1895 = vsel %vm1333, %v1859, 0
        %v1898 = vsel %vm1333, %v1860, 0
        %v1901 = vsel %vm1333, %v1861, 0
        %v1904 = vsel %vm1333, %v1862, 0
        %v1907 = vsel %vm1333, %v1863, 0
        %v1910 = vsel %vm1333, %v1864, 0
        %v1913 = vsel %vm1333, %v1865, 0
        %v1916 = vsel %vm1333, %v1866, 0
        %v1919 = vsel %vm1333, %v1867, 0
        %v1922 = vsel %vm1333, %v1868, 0
        %v1925 = vsel %vm1333, %v1869, 0
        %v1928 = vsel %vm1333, %v1870, 0
        %v1931 = vsel %vm1333, %v1871, 0
        %v1934 = vsel %vm1333, %v1872, 0
        %v1937 = vsel %vm1333, %v1873, 0
        %1939 = vmatprep.subr.bf16.mxu0 0
        %1940 = vmatpush1.bf16.msra.mxu0 %v1887
        %1941 = vmatprep.subr.bf16.mxu0 0
        %1942 = vmatpush1.bf16.msra.mxu0 %v1888
        %1943 = vmatprep.subr.bf16.mxu0 0
        %1944 = vmatpush1.bf16.msra.mxu0 0
        %1945 = vmatprep.subr.bf16.mxu0 0
        %1946 = vmatpush1.bf16.msra.mxu0 0
        %1947 = vmatprep.subr.bf16.mxu0 0
        %1948 = vmatpush1.bf16.msra.mxu0 0
        %1949 = vmatprep.subr.bf16.mxu0 0
        %1950 = vmatpush1.bf16.msra.mxu0 0
        %1951 = vmatprep.subr.bf16.mxu0 0
        %1952 = vmatpush1.bf16.msra.mxu0 0
        %1953 = vmatprep.subr.bf16.mxu0 0
        %1954 = vmatpush1.bf16.msra.mxu0 0
        %1955 = vmatprep.subr.bf16.mxu0 0
        %1956 = vmatpush1.bf16.msra.mxu0 0
        %1957 = vmatprep.subr.bf16.mxu0 0
        %1958 = vmatpush1.bf16.msra.mxu0 0
        %1959 = vmatprep.subr.bf16.mxu0 0
        %1960 = vmatpush1.bf16.msra.mxu0 0
        %1961 = vmatprep.subr.bf16.mxu0 0
        %1962 = vmatpush1.bf16.msra.mxu0 0
        %1963 = vmatprep.subr.bf16.mxu0 0
        %1964 = vmatpush1.bf16.msra.mxu0 0
        %1965 = vmatprep.subr.bf16.mxu0 0
        %1966 = vmatpush1.bf16.msra.mxu0 0
        %1967 = vmatprep.subr.bf16.mxu0 0
        %1968 = vmatpush1.bf16.msra.mxu0 0
        %1969 = vmatprep.subr.bf16.mxu0 0
        %1970 = vmatpush1.bf16.msra.mxu0 0
        %1971 = vmatprep.mubr.bf16.mxu0 0
        %1972 = vmatmul.mubr.bf16.gmra.mrb[0].mxu0 %v1892
        %v1973 = vpop.f32.mrb[0].mxu0
        %v1974 = vadd.f32 0.0, %v1973
        %v1975 = vpop.f32.mrb[0].mxu0
        %v1976 = vpop.f32.mrb[0].mxu0
        %v1977 = vadd.f32 0.0, %v1976
        %v1978 = vpop.f32.mrb[0].mxu0
        %1979 = vmatprep.mubr.bf16.mxu0 0
        %1980 = vmatmul.mubr.bf16.gmra.mrb[0].mxu0 %v1895
        %v1981 = vpop.f32.mrb[0].mxu0
        %v1982 = vadd.f32 0.0, %v1981
        %v1983 = vpop.f32.mrb[0].mxu0
        %v1984 = vpop.f32.mrb[0].mxu0
        %v1985 = vadd.f32 0.0, %v1984
        %v1986 = vpop.f32.mrb[0].mxu0
        %1987 = vmatprep.mubr.bf16.mxu0 0
        %1988 = vmatmul.mubr.bf16.gmra.mrb[0].mxu0 %v1898
        %v1989 = vpop.f32.mrb[0].mxu0
        %v1990 = vadd.f32 0.0, %v1989
        %v1991 = vpop.f32.mrb[0].mxu0
        %v1992 = vpop.f32.mrb[0].mxu0
        %v1993 = vadd.f32 0.0, %v1992
        %v1994 = vpop.f32.mrb[0].mxu0
        %1995 = vmatprep.mubr.bf16.mxu0 0
        %1996 = vmatmul.mubr.bf16.gmra.mrb[0].mxu0 %v1901
        %v1997 = vpop.f32.mrb[0].mxu0
        %v1998 = vadd.f32 0.0, %v1997
        %v1999 = vpop.f32.mrb[0].mxu0
        %v2000 = vpop.f32.mrb[0].mxu0
        %v2001 = vadd.f32 0.0, %v2000
        %v2002 = vpop.f32.mrb[0].mxu0
        %2003 = vmatprep.mubr.bf16.mxu0 0
        %2004 = vmatmul.mubr.bf16.gmra.mrb[0].mxu0 %v1904
        %v2005 = vpop.f32.mrb[0].mxu0
        %v2006 = vadd.f32 0.0, %v2005
        %v2007 = vpop.f32.mrb[0].mxu0
        %v2008 = vpop.f32.mrb[0].mxu0
        %v2009 = vadd.f32 0.0, %v2008
        %v2010 = vpop.f32.mrb[0].mxu0
        %2011 = vmatprep.mubr.bf16.mxu0 0
        %2012 = vmatmul.mubr.bf16.gmra.mrb[0].mxu0 %v1907
        %v2013 = vpop.f32.mrb[0].mxu0
        %v2014 = vadd.f32 0.0, %v2013
        %v2015 = vpop.f32.mrb[0].mxu0
        %v2016 = vpop.f32.mrb[0].mxu0
        %v2017 = vadd.f32 0.0, %v2016
        %v2018 = vpop.f32.mrb[0].mxu0
        %2019 = vmatprep.mubr.bf16.mxu0 0
        %2020 = vmatmul.mubr.bf16.gmra.mrb[0].mxu0 %v1910
        %v2021 = vpop.f32.mrb[0].mxu0
        %v2022 = vadd.f32 0.0, %v2021
        %v2023 = vpop.f32.mrb[0].mxu0
        %v2024 = vpop.f32.mrb[0].mxu0
        %v2025 = vadd.f32 0.0, %v2024
        %v2026 = vpop.f32.mrb[0].mxu0
        %2027 = vmatprep.mubr.bf16.mxu0 0
        %2028 = vmatmul.mubr.bf16.gmra.mrb[0].mxu0 %v1913
        %v2029 = vpop.f32.mrb[0].mxu0
        %v2030 = vadd.f32 0.0, %v2029
        %v2031 = vpop.f32.mrb[0].mxu0
        %v2032 = vpop.f32.mrb[0].mxu0
        %v2033 = vadd.f32 0.0, %v2032
        %v2034 = vpop.f32.mrb[0].mxu0
        %2035 = vmatprep.mubr.bf16.mxu0 0
        %2036 = vmatmul.mubr.bf16.gmra.mrb[0].mxu0 %v1916
        %v2037 = vpop.f32.mrb[0].mxu0
        %v2038 = vadd.f32 0.0, %v2037
        %v2039 = vpop.f32.mrb[0].mxu0
        %v2040 = vpop.f32.mrb[0].mxu0
        %v2041 = vadd.f32 0.0, %v2040
        %v2042 = vpop.f32.mrb[0].mxu0
        %2043 = vmatprep.mubr.bf16.mxu0 0
        %2044 = vmatmul.mubr.bf16.gmra.mrb[0].mxu0 %v1919
        %v2045 = vpop.f32.mrb[0].mxu0
        %v2046 = vadd.f32 0.0, %v2045
        %v2047 = vpop.f32.mrb[0].mxu0
        %v2048 = vpop.f32.mrb[0].mxu0
        %v2049 = vadd.f32 0.0, %v2048
        %v2050 = vpop.f32.mrb[0].mxu0
        %2051 = vmatprep.mubr.bf16.mxu0 0
        %2052 = vmatmul.mubr.bf16.gmra.mrb[0].mxu0 %v1922
        %v2053 = vpop.f32.mrb[0].mxu0
        %v2054 = vadd.f32 0.0, %v2053
        %v2055 = vpop.f32.mrb[0].mxu0
        %v2056 = vpop.f32.mrb[0].mxu0
        %v2057 = vadd.f32 0.0, %v2056
        %v2058 = vpop.f32.mrb[0].mxu0
        %2059 = vmatprep.mubr.bf16.mxu0 0
        %2060 = vmatmul.mubr.bf16.gmra.mrb[0].mxu0 %v1925
        %v2061 = vpop.f32.mrb[0].mxu0
        %v2062 = vadd.f32 0.0, %v2061
        %v2063 = vpop.f32.mrb[0].mxu0
        %v2064 = vpop.f32.mrb[0].mxu0
        %v2065 = vadd.f32 0.0, %v2064
        %v2066 = vpop.f32.mrb[0].mxu0
        %2067 = vmatprep.mubr.bf16.mxu0 0
        %2068 = vmatmul.mubr.bf16.gmra.mrb[0].mxu0 %v1928
        %v2069 = vpop.f32.mrb[0].mxu0
        %v2070 = vadd.f32 0.0, %v2069
        %v2071 = vpop.f32.mrb[0].mxu0
        %v2072 = vpop.f32.mrb[0].mxu0
        %v2073 = vadd.f32 0.0, %v2072
        %v2074 = vpop.f32.mrb[0].mxu0
        %2075 = vmatprep.mubr.bf16.mxu0 0
        %2076 = vmatmul.mubr.bf16.gmra.mrb[0].mxu0 %v1931
        %v2077 = vpop.f32.mrb[0].mxu0
        %v2078 = vadd.f32 0.0, %v2077
        %v2079 = vpop.f32.mrb[0].mxu0
        %v2080 = vpop.f32.mrb[0].mxu0
        %v2081 = vadd.f32 0.0, %v2080
        %v2082 = vpop.f32.mrb[0].mxu0
        %2083 = vmatprep.mubr.bf16.mxu0 0
        %2084 = vmatmul.mubr.bf16.gmra.mrb[0].mxu0 %v1934
        %v2085 = vpop.f32.mrb[0].mxu0
        %v2086 = vadd.f32 0.0, %v2085
        %v2087 = vpop.f32.mrb[0].mxu0
        %v2088 = vpop.f32.mrb[0].mxu0
        %v2089 = vadd.f32 0.0, %v2088
        %v2090 = vpop.f32.mrb[0].mxu0
        %2091 = vmatprep.mubr.bf16.mxu0 0
        %2092 = vmatmul.mubr.bf16.gmra.mrb[0].mxu0 %v1937
        %v2093 = vpop.f32.mrb[0].mxu0
        %v2094 = vadd.f32 0.0, %v2093
        %v2095 = vpop.f32.mrb[0].mxu0
        %v2096 = vpop.f32.mrb[0].mxu0
        %v2097 = vadd.f32 0.0, %v2096
        %v2098 = vpop.f32.mrb[0].mxu0
        %2099 = vdwg.mxu0
        %v2100 = vadd.f32 %v1638, %v1974
        %v2101 = vadd.f32 %v1641, %v1977
        %v2102 = vadd.f32 %v1646, %v1982
        %v2103 = vadd.f32 %v1649, %v1985
        %v2104 = vadd.f32 %v1654, %v1990
        %v2105 = vadd.f32 %v1657, %v1993
        %v2106 = vadd.f32 %v1662, %v1998
        %v2107 = vadd.f32 %v1665, %v2001
        %v2108 = vadd.f32 %v1670, %v2006
        %v2109 = vadd.f32 %v1673, %v2009
        %v2110 = vadd.f32 %v1678, %v2014
        %v2111 = vadd.f32 %v1681, %v2017
        %v2112 = vadd.f32 %v1686, %v2022
        %v2113 = vadd.f32 %v1689, %v2025
        %v2114 = vadd.f32 %v1694, %v2030
        %v2115 = vadd.f32 %v1697, %v2033
        %v2116 = vadd.f32 %v1702, %v2038
        %v2117 = vadd.f32 %v1705, %v2041
        %v2118 = vadd.f32 %v1710, %v2046
        %v2119 = vadd.f32 %v1713, %v2049
        %v2120 = vadd.f32 %v1718, %v2054
        %v2121 = vadd.f32 %v1721, %v2057
        %v2122 = vadd.f32 %v1726, %v2062
        %v2123 = vadd.f32 %v1729, %v2065
        %v2124 = vadd.f32 %v1734, %v2070
        %v2125 = vadd.f32 %v1737, %v2073
        %v2126 = vadd.f32 %v1742, %v2078
        %v2127 = vadd.f32 %v1745, %v2081
        %v2128 = vadd.f32 %v1750, %v2086
        %v2129 = vadd.f32 %v1753, %v2089
        %v2130 = vadd.f32 %v1758, %v2094
        %v2131 = vadd.f32 %v1761, %v2097
        %v2132 = vrot.slane %v703, 7
        %v2133 = vrot.slane %v704, 7
        %v2134 = vsel %vm1216, %v2132, %v2133
        %v2135 = vsel %vm1216, %v1215, %v2132
        %v2136 = vsel %vm1216, %v2133, %v1186
        %v2137 = vsel %vm1122, %v2136, 0.0
        %v2138 = vsel %vm1123, %v1245, 0.0
        %v2139 = vsel %vm1124, %v1244, 0.0
        %v2140 = vsel %vm1125, %v1243, 0.0
        %v2141 = vsel %vm1126, %v1242, 0.0
        %v2142 = vsel %vm1127, %v1241, 0.0
        %v2143 = vsel %vm1128, %v1240, 0.0
        %v2144 = vsel %vm1129, %v1239, 0.0
        %v2145 = vsel %vm1130, %v1238, 0.0
        %v2146 = vsel %vm1131, %v1237, 0.0
        %v2147 = vsel %vm1132, %v1236, 0.0
        %v2148 = vsel %vm1133, %v1235, 0.0
        %v2149 = vsel %vm1134, %v1234, 0.0
        %v2150 = vsel %vm1135, %v1233, 0.0
        %v2151 = vsel %vm1136, %v1232, 0.0
        %v2152 = vsel %vm1137, %v1231, 0.0
        %v2153 = vsel %vm1138, %v1230, 0.0
        %v2154 = vsel %vm1139, %v1229, 0.0
        %v2155 = vsel %vm1140, %v1228, 0.0
        %v2156 = vsel %vm1141, %v1227, 0.0
        %v2157 = vsel %vm1142, %v1226, 0.0
        %v2158 = vsel %vm1143, %v1225, 0.0
        %v2159 = vsel %vm1144, %v1224, 0.0
        %v2160 = vsel %vm1145, %v1223, 0.0
        %v2161 = vsel %vm1146, %v1222, 0.0
        %v2162 = vsel %vm1147, %v1221, 0.0
        %v2163 = vsel %vm1148, %v1220, 0.0
        %v2164 = vsel %vm1149, %v1219, 0.0
        %v2165 = vsel %vm1150, %v1218, 0.0
        %v2166 = vsel %vm1151, %v1217, 0.0
        %v2167 = vsel %vm1152, %v2135, 0.0
        %v2168 = vsel %vm1153, %v2134, 0.0
        %v2169 = vpack.c.bf16 %v2138, %v2137
        %v2170 = vpack.c.bf16 %v2140, %v2139
        %v2171 = vpack.c.bf16 %v2142, %v2141
        %v2172 = vpack.c.bf16 %v2144, %v2143
        %v2173 = vpack.c.bf16 %v2146, %v2145
        %v2174 = vpack.c.bf16 %v2148, %v2147
        %v2175 = vpack.c.bf16 %v2150, %v2149
        %v2176 = vpack.c.bf16 %v2152, %v2151
        %v2177 = vpack.c.bf16 %v2154, %v2153
        %v2178 = vpack.c.bf16 %v2156, %v2155
        %v2179 = vpack.c.bf16 %v2158, %v2157
        %v2180 = vpack.c.bf16 %v2160, %v2159
        %v2181 = vpack.c.bf16 %v2162, %v2161
        %v2182 = vpack.c.bf16 %v2164, %v2163
        %v2183 = vpack.c.bf16 %v2166, %v2165
        %v2184 = vpack.c.bf16 %v2168, %v2167
        %s2185 = scalar_lea.vmem [#allocation5], 48
        %v2186 = vld [vmem:[%s2185] sm:$0xf]
        %v2187 = vld [vmem:[%s2185 + $0x4] sm:$0xf]
        %v2188 = vld [vmem:[%s2185 + $0x8] sm:$0xf]
        %v2189 = vld [vmem:[%s2185 + $0xc] sm:$0xf]
        %v2194 = vunpack.c.l.b16 %v2186
        %v2195 = vunpack.c.l.b16 %v2187
        %v2196 = vunpack.c.l.b16 %v2188
        %v2197 = vunpack.c.l.b16 %v2189
        %v2198 = vpack.c.b16 %v2195, %v2194
        %v2199 = vpack.c.b16 %v2197, %v2196
        %v2203 = vsel %vm1333, %v2169, 0
        %v2206 = vsel %vm1333, %v2170, 0
        %v2209 = vsel %vm1333, %v2171, 0
        %v2212 = vsel %vm1333, %v2172, 0
        %v2215 = vsel %vm1333, %v2173, 0
        %v2218 = vsel %vm1333, %v2174, 0
        %v2221 = vsel %vm1333, %v2175, 0
        %v2224 = vsel %vm1333, %v2176, 0
        %v2227 = vsel %vm1333, %v2177, 0
        %v2230 = vsel %vm1333, %v2178, 0
        %v2233 = vsel %vm1333, %v2179, 0
        %v2236 = vsel %vm1333, %v2180, 0
        %v2239 = vsel %vm1333, %v2181, 0
        %v2242 = vsel %vm1333, %v2182, 0
        %v2245 = vsel %vm1333, %v2183, 0
        %v2248 = vsel %vm1333, %v2184, 0
        %2250 = vmatprep.subr.bf16.mxu0 0
        %2251 = vmatpush1.bf16.msra.mxu0 %v2198
        %2252 = vmatprep.subr.bf16.mxu0 0
        %2253 = vmatpush1.bf16.msra.mxu0 %v2199
        %2254 = vmatprep.subr.bf16.mxu0 0
        %2255 = vmatpush1.bf16.msra.mxu0 0
        %2256 = vmatprep.subr.bf16.mxu0 0
        %2257 = vmatpush1.bf16.msra.mxu0 0
        %2258 = vmatprep.subr.bf16.mxu0 0
        %2259 = vmatpush1.bf16.msra.mxu0 0
        %2260 = vmatprep.subr.bf16.mxu0 0
        %2261 = vmatpush1.bf16.msra.mxu0 0
        %2262 = vmatprep.subr.bf16.mxu0 0
        %2263 = vmatpush1.bf16.msra.mxu0 0
        %2264 = vmatprep.subr.bf16.mxu0 0
        %2265 = vmatpush1.bf16.msra.mxu0 0
        %2266 = vmatprep.subr.bf16.mxu0 0
        %2267 = vmatpush1.bf16.msra.mxu0 0
        %2268 = vmatprep.subr.bf16.mxu0 0
        %2269 = vmatpush1.bf16.msra.mxu0 0
        %2270 = vmatprep.subr.bf16.mxu0 0
        %2271 = vmatpush1.bf16.msra.mxu0 0
        %2272 = vmatprep.subr.bf16.mxu0 0
        %2273 = vmatpush1.bf16.msra.mxu0 0
        %2274 = vmatprep.subr.bf16.mxu0 0
        %2275 = vmatpush1.bf16.msra.mxu0 0
        %2276 = vmatprep.subr.bf16.mxu0 0
        %2277 = vmatpush1.bf16.msra.mxu0 0
        %2278 = vmatprep.subr.bf16.mxu0 0
        %2279 = vmatpush1.bf16.msra.mxu0 0
        %2280 = vmatprep.subr.bf16.mxu0 0
        %2281 = vmatpush1.bf16.msra.mxu0 0
        %2282 = vmatprep.mubr.bf16.mxu0 0
        %2283 = vmatmul.mubr.bf16.gmra.mrb[0].mxu0 %v2203
        %v2284 = vpop.f32.mrb[0].mxu0
        %v2285 = vadd.f32 0.0, %v2284
        %v2286 = vpop.f32.mrb[0].mxu0
        %v2287 = vpop.f32.mrb[0].mxu0
        %v2288 = vadd.f32 0.0, %v2287
        %v2289 = vpop.f32.mrb[0].mxu0
        %2290 = vmatprep.mubr.bf16.mxu0 0
        %2291 = vmatmul.mubr.bf16.gmra.mrb[0].mxu0 %v2206
        %v2292 = vpop.f32.mrb[0].mxu0
        %v2293 = vadd.f32 0.0, %v2292
        %v2294 = vpop.f32.mrb[0].mxu0
        %v2295 = vpop.f32.mrb[0].mxu0
        %v2296 = vadd.f32 0.0, %v2295
        %v2297 = vpop.f32.mrb[0].mxu0
        %2298 = vmatprep.mubr.bf16.mxu0 0
        %2299 = vmatmul.mubr.bf16.gmra.mrb[0].mxu0 %v2209
        %v2300 = vpop.f32.mrb[0].mxu0
        %v2301 = vadd.f32 0.0, %v2300
        %v2302 = vpop.f32.mrb[0].mxu0
        %v2303 = vpop.f32.mrb[0].mxu0
        %v2304 = vadd.f32 0.0, %v2303
        %v2305 = vpop.f32.mrb[0].mxu0
        %2306 = vmatprep.mubr.bf16.mxu0 0
        %2307 = vmatmul.mubr.bf16.gmra.mrb[0].mxu0 %v2212
        %v2308 = vpop.f32.mrb[0].mxu0
        %v2309 = vadd.f32 0.0, %v2308
        %v2310 = vpop.f32.mrb[0].mxu0
        %v2311 = vpop.f32.mrb[0].mxu0
        %v2312 = vadd.f32 0.0, %v2311
        %v2313 = vpop.f32.mrb[0].mxu0
        %2314 = vmatprep.mubr.bf16.mxu0 0
        %2315 = vmatmul.mubr.bf16.gmra.mrb[0].mxu0 %v2215
        %v2316 = vpop.f32.mrb[0].mxu0
        %v2317 = vadd.f32 0.0, %v2316
        %v2318 = vpop.f32.mrb[0].mxu0
        %v2319 = vpop.f32.mrb[0].mxu0
        %v2320 = vadd.f32 0.0, %v2319
        %v2321 = vpop.f32.mrb[0].mxu0
        %2322 = vmatprep.mubr.bf16.mxu0 0
        %2323 = vmatmul.mubr.bf16.gmra.mrb[0].mxu0 %v2218
        %v2324 = vpop.f32.mrb[0].mxu0
        %v2325 = vadd.f32 0.0, %v2324
        %v2326 = vpop.f32.mrb[0].mxu0
        %v2327 = vpop.f32.mrb[0].mxu0
        %v2328 = vadd.f32 0.0, %v2327
        %v2329 = vpop.f32.mrb[0].mxu0
        %2330 = vmatprep.mubr.bf16.mxu0 0
        %2331 = vmatmul.mubr.bf16.gmra.mrb[0].mxu0 %v2221
        %v2332 = vpop.f32.mrb[0].mxu0
        %v2333 = vadd.f32 0.0, %v2332
        %v2334 = vpop.f32.mrb[0].mxu0
        %v2335 = vpop.f32.mrb[0].mxu0
        %v2336 = vadd.f32 0.0, %v2335
        %v2337 = vpop.f32.mrb[0].mxu0
        %2338 = vmatprep.mubr.bf16.mxu0 0
        %2339 = vmatmul.mubr.bf16.gmra.mrb[0].mxu0 %v2224
        %v2340 = vpop.f32.mrb[0].mxu0
        %v2341 = vadd.f32 0.0, %v2340
        %v2342 = vpop.f32.mrb[0].mxu0
        %v2343 = vpop.f32.mrb[0].mxu0
        %v2344 = vadd.f32 0.0, %v2343
        %v2345 = vpop.f32.mrb[0].mxu0
        %2346 = vmatprep.mubr.bf16.mxu0 0
        %2347 = vmatmul.mubr.bf16.gmra.mrb[0].mxu0 %v2227
        %v2348 = vpop.f32.mrb[0].mxu0
        %v2349 = vadd.f32 0.0, %v2348
        %v2350 = vpop.f32.mrb[0].mxu0
        %v2351 = vpop.f32.mrb[0].mxu0
        %v2352 = vadd.f32 0.0, %v2351
        %v2353 = vpop.f32.mrb[0].mxu0
        %2354 = vmatprep.mubr.bf16.mxu0 0
        %2355 = vmatmul.mubr.bf16.gmra.mrb[0].mxu0 %v2230
        %v2356 = vpop.f32.mrb[0].mxu0
        %v2357 = vadd.f32 0.0, %v2356
        %v2358 = vpop.f32.mrb[0].mxu0
        %v2359 = vpop.f32.mrb[0].mxu0
        %v2360 = vadd.f32 0.0, %v2359
        %v2361 = vpop.f32.mrb[0].mxu0
        %2362 = vmatprep.mubr.bf16.mxu0 0
        %2363 = vmatmul.mubr.bf16.gmra.mrb[0].mxu0 %v2233
        %v2364 = vpop.f32.mrb[0].mxu0
        %v2365 = vadd.f32 0.0, %v2364
        %v2366 = vpop.f32.mrb[0].mxu0
        %v2367 = vpop.f32.mrb[0].mxu0
        %v2368 = vadd.f32 0.0, %v2367
        %v2369 = vpop.f32.mrb[0].mxu0
        %2370 = vmatprep.mubr.bf16.mxu0 0
        %2371 = vmatmul.mubr.bf16.gmra.mrb[0].mxu0 %v2236
        %v2372 = vpop.f32.mrb[0].mxu0
        %v2373 = vadd.f32 0.0, %v2372
        %v2374 = vpop.f32.mrb[0].mxu0
        %v2375 = vpop.f32.mrb[0].mxu0
        %v2376 = vadd.f32 0.0, %v2375
        %v2377 = vpop.f32.mrb[0].mxu0
        %2378 = vmatprep.mubr.bf16.mxu0 0
        %2379 = vmatmul.mubr.bf16.gmra.mrb[0].mxu0 %v2239
        %v2380 = vpop.f32.mrb[0].mxu0
        %v2381 = vadd.f32 0.0, %v2380
        %v2382 = vpop.f32.mrb[0].mxu0
        %v2383 = vpop.f32.mrb[0].mxu0
        %v2384 = vadd.f32 0.0, %v2383
        %v2385 = vpop.f32.mrb[0].mxu0
        %2386 = vmatprep.mubr.bf16.mxu0 0
        %2387 = vmatmul.mubr.bf16.gmra.mrb[0].mxu0 %v2242
        %v2388 = vpop.f32.mrb[0].mxu0
        %v2389 = vadd.f32 0.0, %v2388
        %v2390 = vpop.f32.mrb[0].mxu0
        %v2391 = vpop.f32.mrb[0].mxu0
        %v2392 = vadd.f32 0.0, %v2391
        %v2393 = vpop.f32.mrb[0].mxu0
        %2394 = vmatprep.mubr.bf16.mxu0 0
        %2395 = vmatmul.mubr.bf16.gmra.mrb[0].mxu0 %v2245
        %v2396 = vpop.f32.mrb[0].mxu0
        %v2397 = vadd.f32 0.0, %v2396
        %v2398 = vpop.f32.mrb[0].mxu0
        %v2399 = vpop.f32.mrb[0].mxu0
        %v2400 = vadd.f32 0.0, %v2399
        %v2401 = vpop.f32.mrb[0].mxu0
        %2402 = vmatprep.mubr.bf16.mxu0 0
        %2403 = vmatmul.mubr.bf16.gmra.mrb[0].mxu0 %v2248
        %v2404 = vpop.f32.mrb[0].mxu0
        %v2405 = vadd.f32 0.0, %v2404
        %v2406 = vpop.f32.mrb[0].mxu0
        %v2407 = vpop.f32.mrb[0].mxu0
        %v2408 = vadd.f32 0.0, %v2407
        %v2409 = vpop.f32.mrb[0].mxu0
        %2410 = vdwg.mxu0
        %v2411 = vadd.f32 %v2100, %v2285
        %v2412 = vadd.f32 %v2101, %v2288
        %v2413 = vadd.f32 %v2102, %v2293
        %v2414 = vadd.f32 %v2103, %v2296
        %v2415 = vadd.f32 %v2104, %v2301
        %v2416 = vadd.f32 %v2105, %v2304
        %v2417 = vadd.f32 %v2106, %v2309
        %v2418 = vadd.f32 %v2107, %v2312
        %v2419 = vadd.f32 %v2108, %v2317
        %v2420 = vadd.f32 %v2109, %v2320
        %v2421 = vadd.f32 %v2110, %v2325
        %v2422 = vadd.f32 %v2111, %v2328
        %v2423 = vadd.f32 %v2112, %v2333
        %v2424 = vadd.f32 %v2113, %v2336
        %v2425 = vadd.f32 %v2114, %v2341
        %v2426 = vadd.f32 %v2115, %v2344
        %v2427 = vadd.f32 %v2116, %v2349
        %v2428 = vadd.f32 %v2117, %v2352
        %v2429 = vadd.f32 %v2118, %v2357
        %v2430 = vadd.f32 %v2119, %v2360
        %v2431 = vadd.f32 %v2120, %v2365
        %v2432 = vadd.f32 %v2121, %v2368
        %v2433 = vadd.f32 %v2122, %v2373
        %v2434 = vadd.f32 %v2123, %v2376
        %v2435 = vadd.f32 %v2124, %v2381
        %v2436 = vadd.f32 %v2125, %v2384
        %v2437 = vadd.f32 %v2126, %v2389
        %v2438 = vadd.f32 %v2127, %v2392
        %v2439 = vadd.f32 %v2128, %v2397
        %v2440 = vadd.f32 %v2129, %v2400
        %v2441 = vadd.f32 %v2130, %v2405
        %v2442 = vadd.f32 %v2131, %v2408
        %v2443 = vpack.c.bf16 %v704, %v703
        %s2444 = scalar_lea.vmem [#allocation5], 64
        %v2445 = vld [vmem:[%s2444] sm:$0xf]
        %v2446 = vld [vmem:[%s2444 + $0x4] sm:$0xf]
        %v2447 = vld [vmem:[%s2444 + $0x8] sm:$0xf]
        %v2448 = vld [vmem:[%s2444 + $0xc] sm:$0xf]
        %v2453 = vunpack.c.l.b16 %v2445
        %v2454 = vunpack.c.l.b16 %v2446
        %v2455 = vunpack.c.l.b16 %v2447
        %v2456 = vunpack.c.l.b16 %v2448
        %v2457 = vpack.c.b16 %v2454, %v2453
        %v2458 = vpack.c.b16 %v2456, %v2455
        %v2462 = vsel %vm1333, %v2443, 0
        %2464 = vmatprep.subr.bf16.mxu0 0
        %2465 = vmatpush1.bf16.msra.mxu0 %v2457
        %2466 = vmatprep.subr.bf16.mxu0 0
        %2467 = vmatpush1.bf16.msra.mxu0 %v2458
        %2468 = vmatprep.subr.bf16.mxu0 0
        %2469 = vmatpush1.bf16.msra.mxu0 0
        %2470 = vmatprep.subr.bf16.mxu0 0
        %2471 = vmatpush1.bf16.msra.mxu0 0
        %2472 = vmatprep.subr.bf16.mxu0 0
        %2473 = vmatpush1.bf16.msra.mxu0 0
        %2474 = vmatprep.subr.bf16.mxu0 0
        %2475 = vmatpush1.bf16.msra.mxu0 0
        %2476 = vmatprep.subr.bf16.mxu0 0
        %2477 = vmatpush1.bf16.msra.mxu0 0
        %2478 = vmatprep.subr.bf16.mxu0 0
        %2479 = vmatpush1.bf16.msra.mxu0 0
        %2480 = vmatprep.subr.bf16.mxu0 0
        %2481 = vmatpush1.bf16.msra.mxu0 0
        %2482 = vmatprep.subr.bf16.mxu0 0
        %2483 = vmatpush1.bf16.msra.mxu0 0
        %2484 = vmatprep.subr.bf16.mxu0 0
        %2485 = vmatpush1.bf16.msra.mxu0 0
        %2486 = vmatprep.subr.bf16.mxu0 0
        %2487 = vmatpush1.bf16.msra.mxu0 0
        %2488 = vmatprep.subr.bf16.mxu0 0
        %2489 = vmatpush1.bf16.msra.mxu0 0
        %2490 = vmatprep.subr.bf16.mxu0 0
        %2491 = vmatpush1.bf16.msra.mxu0 0
        %2492 = vmatprep.subr.bf16.mxu0 0
        %2493 = vmatpush1.bf16.msra.mxu0 0
        %2494 = vmatprep.subr.bf16.mxu0 0
        %2495 = vmatpush1.bf16.msra.mxu0 0
        %2496 = vmatprep.mubr.bf16.mxu0 0
        %2497 = vmatmul.mubr.bf16.gmra.mrb[0].mxu0 %v1338
        %v2498 = vpop.f32.mrb[0].mxu0
        %v2499 = vadd.f32 0.0, %v2498
        %v2500 = vpop.f32.mrb[0].mxu0
        %v2501 = vpop.f32.mrb[0].mxu0
        %v2502 = vadd.f32 0.0, %v2501
        %v2503 = vpop.f32.mrb[0].mxu0
        %2504 = vmatprep.mubr.bf16.mxu0 0
        %2505 = vmatmul.mubr.bf16.gmra.mrb[0].mxu0 %v1341
        %v2506 = vpop.f32.mrb[0].mxu0
        %v2507 = vadd.f32 0.0, %v2506
        %v2508 = vpop.f32.mrb[0].mxu0
        %v2509 = vpop.f32.mrb[0].mxu0
        %v2510 = vadd.f32 0.0, %v2509
        %v2511 = vpop.f32.mrb[0].mxu0
        %2512 = vmatprep.mubr.bf16.mxu0 0
        %2513 = vmatmul.mubr.bf16.gmra.mrb[0].mxu0 %v1344
        %v2514 = vpop.f32.mrb[0].mxu0
        %v2515 = vadd.f32 0.0, %v2514
        %v2516 = vpop.f32.mrb[0].mxu0
        %v2517 = vpop.f32.mrb[0].mxu0
        %v2518 = vadd.f32 0.0, %v2517
        %v2519 = vpop.f32.mrb[0].mxu0
        %2520 = vmatprep.mubr.bf16.mxu0 0
        %2521 = vmatmul.mubr.bf16.gmra.mrb[0].mxu0 %v1347
        %v2522 = vpop.f32.mrb[0].mxu0
        %v2523 = vadd.f32 0.0, %v2522
        %v2524 = vpop.f32.mrb[0].mxu0
        %v2525 = vpop.f32.mrb[0].mxu0
        %v2526 = vadd.f32 0.0, %v2525
        %v2527 = vpop.f32.mrb[0].mxu0
        %2528 = vmatprep.mubr.bf16.mxu0 0
        %2529 = vmatmul.mubr.bf16.gmra.mrb[0].mxu0 %v1350
        %v2530 = vpop.f32.mrb[0].mxu0
        %v2531 = vadd.f32 0.0, %v2530
        %v2532 = vpop.f32.mrb[0].mxu0
        %v2533 = vpop.f32.mrb[0].mxu0
        %v2534 = vadd.f32 0.0, %v2533
        %v2535 = vpop.f32.mrb[0].mxu0
        %2536 = vmatprep.mubr.bf16.mxu0 0
        %2537 = vmatmul.mubr.bf16.gmra.mrb[0].mxu0 %v1353
        %v2538 = vpop.f32.mrb[0].mxu0
        %v2539 = vadd.f32 0.0, %v2538
        %v2540 = vpop.f32.mrb[0].mxu0
        %v2541 = vpop.f32.mrb[0].mxu0
        %v2542 = vadd.f32 0.0, %v2541
        %v2543 = vpop.f32.mrb[0].mxu0
        %2544 = vmatprep.mubr.bf16.mxu0 0
        %2545 = vmatmul.mubr.bf16.gmra.mrb[0].mxu0 %v1356
        %v2546 = vpop.f32.mrb[0].mxu0
        %v2547 = vadd.f32 0.0, %v2546
        %v2548 = vpop.f32.mrb[0].mxu0
        %v2549 = vpop.f32.mrb[0].mxu0
        %v2550 = vadd.f32 0.0, %v2549
        %v2551 = vpop.f32.mrb[0].mxu0
        %2552 = vmatprep.mubr.bf16.mxu0 0
        %2553 = vmatmul.mubr.bf16.gmra.mrb[0].mxu0 %v1359
        %v2554 = vpop.f32.mrb[0].mxu0
        %v2555 = vadd.f32 0.0, %v2554
        %v2556 = vpop.f32.mrb[0].mxu0
        %v2557 = vpop.f32.mrb[0].mxu0
        %v2558 = vadd.f32 0.0, %v2557
        %v2559 = vpop.f32.mrb[0].mxu0
        %2560 = vmatprep.mubr.bf16.mxu0 0
        %2561 = vmatmul.mubr.bf16.gmra.mrb[0].mxu0 %v1362
        %v2562 = vpop.f32.mrb[0].mxu0
        %v2563 = vadd.f32 0.0, %v2562
        %v2564 = vpop.f32.mrb[0].mxu0
        %v2565 = vpop.f32.mrb[0].mxu0
        %v2566 = vadd.f32 0.0, %v2565
        %v2567 = vpop.f32.mrb[0].mxu0
        %2568 = vmatprep.mubr.bf16.mxu0 0
        %2569 = vmatmul.mubr.bf16.gmra.mrb[0].mxu0 %v1365
        %v2570 = vpop.f32.mrb[0].mxu0
        %v2571 = vadd.f32 0.0, %v2570
        %v2572 = vpop.f32.mrb[0].mxu0
        %v2573 = vpop.f32.mrb[0].mxu0
        %v2574 = vadd.f32 0.0, %v2573
        %v2575 = vpop.f32.mrb[0].mxu0
        %2576 = vmatprep.mubr.bf16.mxu0 0
        %2577 = vmatmul.mubr.bf16.gmra.mrb[0].mxu0 %v1368
        %v2578 = vpop.f32.mrb[0].mxu0
        %v2579 = vadd.f32 0.0, %v2578
        %v2580 = vpop.f32.mrb[0].mxu0
        %v2581 = vpop.f32.mrb[0].mxu0
        %v2582 = vadd.f32 0.0, %v2581
        %v2583 = vpop.f32.mrb[0].mxu0
        %2584 = vmatprep.mubr.bf16.mxu0 0
        %2585 = vmatmul.mubr.bf16.gmra.mrb[0].mxu0 %v1371
        %v2586 = vpop.f32.mrb[0].mxu0
        %v2587 = vadd.f32 0.0, %v2586
        %v2588 = vpop.f32.mrb[0].mxu0
        %v2589 = vpop.f32.mrb[0].mxu0
        %v2590 = vadd.f32 0.0, %v2589
        %v2591 = vpop.f32.mrb[0].mxu0
        %2592 = vmatprep.mubr.bf16.mxu0 0
        %2593 = vmatmul.mubr.bf16.gmra.mrb[0].mxu0 %v1374
        %v2594 = vpop.f32.mrb[0].mxu0
        %v2595 = vadd.f32 0.0, %v2594
        %v2596 = vpop.f32.mrb[0].mxu0
        %v2597 = vpop.f32.mrb[0].mxu0
        %v2598 = vadd.f32 0.0, %v2597
        %v2599 = vpop.f32.mrb[0].mxu0
        %2600 = vmatprep.mubr.bf16.mxu0 0
        %2601 = vmatmul.mubr.bf16.gmra.mrb[0].mxu0 %v1377
        %v2602 = vpop.f32.mrb[0].mxu0
        %v2603 = vadd.f32 0.0, %v2602
        %v2604 = vpop.f32.mrb[0].mxu0
        %v2605 = vpop.f32.mrb[0].mxu0
        %v2606 = vadd.f32 0.0, %v2605
        %v2607 = vpop.f32.mrb[0].mxu0
        %2608 = vmatprep.mubr.bf16.mxu0 0
        %2609 = vmatmul.mubr.bf16.gmra.mrb[0].mxu0 %v1380
        %v2610 = vpop.f32.mrb[0].mxu0
        %v2611 = vadd.f32 0.0, %v2610
        %v2612 = vpop.f32.mrb[0].mxu0
        %v2613 = vpop.f32.mrb[0].mxu0
        %v2614 = vadd.f32 0.0, %v2613
        %v2615 = vpop.f32.mrb[0].mxu0
        %2616 = vmatprep.mubr.bf16.mxu0 0
        %2617 = vmatmul.mubr.bf16.gmra.mrb[0].mxu0 %v2462
        %v2618 = vpop.f32.mrb[0].mxu0
        %v2619 = vadd.f32 0.0, %v2618
        %v2620 = vpop.f32.mrb[0].mxu0
        %v2621 = vpop.f32.mrb[0].mxu0
        %v2622 = vadd.f32 0.0, %v2621
        %v2623 = vpop.f32.mrb[0].mxu0
        %2624 = vdwg.mxu0
        %v2625 = vadd.f32 %v2411, %v2499
        %v2626 = vadd.f32 %v2412, %v2502
        %v2627 = vadd.f32 %v2413, %v2507
        %v2628 = vadd.f32 %v2414, %v2510
        %v2629 = vadd.f32 %v2415, %v2515
        %v2630 = vadd.f32 %v2416, %v2518
        %v2631 = vadd.f32 %v2417, %v2523
        %v2632 = vadd.f32 %v2418, %v2526
        %v2633 = vadd.f32 %v2419, %v2531
        %v2634 = vadd.f32 %v2420, %v2534
        %v2635 = vadd.f32 %v2421, %v2539
        %v2636 = vadd.f32 %v2422, %v2542
        %v2637 = vadd.f32 %v2423, %v2547
        %v2638 = vadd.f32 %v2424, %v2550
        %v2639 = vadd.f32 %v2425, %v2555
        %v2640 = vadd.f32 %v2426, %v2558
        %v2641 = vadd.f32 %v2427, %v2563
        %v2642 = vadd.f32 %v2428, %v2566
        %v2643 = vadd.f32 %v2429, %v2571
        %v2644 = vadd.f32 %v2430, %v2574
        %v2645 = vadd.f32 %v2431, %v2579
        %v2646 = vadd.f32 %v2432, %v2582
        %v2647 = vadd.f32 %v2433, %v2587
        %v2648 = vadd.f32 %v2434, %v2590
        %v2649 = vadd.f32 %v2435, %v2595
        %v2650 = vadd.f32 %v2436, %v2598
        %v2651 = vadd.f32 %v2437, %v2603
        %v2652 = vadd.f32 %v2438, %v2606
        %v2653 = vadd.f32 %v2439, %v2611
        %v2654 = vadd.f32 %v2440, %v2614
        %v2655 = vadd.f32 %v2441, %v2619
        %v2656 = vadd.f32 %v2442, %v2622
        %v2657 = vrot.slane %v703, 1
        %v2658 = vrot.slane %v704, 1
        %v2659 = vsel %vm1794, %v2657, %v2658
        %v2660 = vsel %vm1794, %v1793, %v2657
        %v2661 = vsel %vm1794, %v2658, %v1764
        %v2662 = vsel %vm1154, %v1823, 0.0
        %v2663 = vsel %vm1155, %v1822, 0.0
        %v2664 = vsel %vm1156, %v1821, 0.0
        %v2665 = vsel %vm1157, %v1820, 0.0
        %v2666 = vsel %vm1158, %v1819, 0.0
        %v2667 = vsel %vm1159, %v1818, 0.0
        %v2668 = vsel %vm1160, %v1817, 0.0
        %v2669 = vsel %vm1161, %v1816, 0.0
        %v2670 = vsel %vm1162, %v1815, 0.0
        %v2671 = vsel %vm1163, %v1814, 0.0
        %v2672 = vsel %vm1164, %v1813, 0.0
        %v2673 = vsel %vm1165, %v1812, 0.0
        %v2674 = vsel %vm1166, %v1811, 0.0
        %v2675 = vsel %vm1167, %v1810, 0.0
        %v2676 = vsel %vm1168, %v1809, 0.0
        %v2677 = vsel %vm1169, %v1808, 0.0
        %v2678 = vsel %vm1170, %v1807, 0.0
        %v2679 = vsel %vm1171, %v1806, 0.0
        %v2680 = vsel %vm1172, %v1805, 0.0
        %v2681 = vsel %vm1173, %v1804, 0.0
        %v2682 = vsel %vm1174, %v1803, 0.0
        %v2683 = vsel %vm1175, %v1802, 0.0
        %v2684 = vsel %vm1176, %v1801, 0.0
        %v2685 = vsel %vm1177, %v1800, 0.0
        %v2686 = vsel %vm1178, %v1799, 0.0
        %v2687 = vsel %vm1179, %v1798, 0.0
        %v2688 = vsel %vm1180, %v1797, 0.0
        %v2689 = vsel %vm1181, %v1796, 0.0
        %v2690 = vsel %vm1182, %v1795, 0.0
        %v2691 = vsel %vm1183, %v2660, 0.0
        %v2692 = vsel %vm1184, %v2659, 0.0
        %v2693 = vsel %vm1185, %v2661, 0.0
        %v2694 = vpack.c.bf16 %v2663, %v2662
        %v2695 = vpack.c.bf16 %v2665, %v2664
        %v2696 = vpack.c.bf16 %v2667, %v2666
        %v2697 = vpack.c.bf16 %v2669, %v2668
        %v2698 = vpack.c.bf16 %v2671, %v2670
        %v2699 = vpack.c.bf16 %v2673, %v2672
        %v2700 = vpack.c.bf16 %v2675, %v2674
        %v2701 = vpack.c.bf16 %v2677, %v2676
        %v2702 = vpack.c.bf16 %v2679, %v2678
        %v2703 = vpack.c.bf16 %v2681, %v2680
        %v2704 = vpack.c.bf16 %v2683, %v2682
        %v2705 = vpack.c.bf16 %v2685, %v2684
        %v2706 = vpack.c.bf16 %v2687, %v2686
        %v2707 = vpack.c.bf16 %v2689, %v2688
        %v2708 = vpack.c.bf16 %v2691, %v2690
        %v2709 = vpack.c.bf16 %v2693, %v2692
        %s2710 = scalar_lea.vmem [#allocation5], 80
        %v2711 = vld [vmem:[%s2710] sm:$0xf]
        %v2712 = vld [vmem:[%s2710 + $0x4] sm:$0xf]
        %v2713 = vld [vmem:[%s2710 + $0x8] sm:$0xf]
        %v2714 = vld [vmem:[%s2710 + $0xc] sm:$0xf]
        %v2719 = vunpack.c.l.b16 %v2711
        %v2720 = vunpack.c.l.b16 %v2712
        %v2721 = vunpack.c.l.b16 %v2713
        %v2722 = vunpack.c.l.b16 %v2714
        %v2723 = vpack.c.b16 %v2720, %v2719
        %v2724 = vpack.c.b16 %v2722, %v2721
        %v2728 = vsel %vm1333, %v2694, 0
        %v2731 = vsel %vm1333, %v2695, 0
        %v2734 = vsel %vm1333, %v2696, 0
        %v2737 = vsel %vm1333, %v2697, 0
        %v2740 = vsel %vm1333, %v2698, 0
        %v2743 = vsel %vm1333, %v2699, 0
        %v2746 = vsel %vm1333, %v2700, 0
        %v2749 = vsel %vm1333, %v2701, 0
        %v2752 = vsel %vm1333, %v2702, 0
        %v2755 = vsel %vm1333, %v2703, 0
        %v2758 = vsel %vm1333, %v2704, 0
        %v2761 = vsel %vm1333, %v2705, 0
        %v2764 = vsel %vm1333, %v2706, 0
        %v2767 = vsel %vm1333, %v2707, 0
        %v2770 = vsel %vm1333, %v2708, 0
        %v2773 = vsel %vm1333, %v2709, 0
        %2775 = vmatprep.subr.bf16.mxu0 0
        %2776 = vmatpush1.bf16.msra.mxu0 %v2723
        %2777 = vmatprep.subr.bf16.mxu0 0
        %2778 = vmatpush1.bf16.msra.mxu0 %v2724
        %2779 = vmatprep.subr.bf16.mxu0 0
        %2780 = vmatpush1.bf16.msra.mxu0 0
        %2781 = vmatprep.subr.bf16.mxu0 0
        %2782 = vmatpush1.bf16.msra.mxu0 0
        %2783 = vmatprep.subr.bf16.mxu0 0
        %2784 = vmatpush1.bf16.msra.mxu0 0
        %2785 = vmatprep.subr.bf16.mxu0 0
        %2786 = vmatpush1.bf16.msra.mxu0 0
        %2787 = vmatprep.subr.bf16.mxu0 0
        %2788 = vmatpush1.bf16.msra.mxu0 0
        %2789 = vmatprep.subr.bf16.mxu0 0
        %2790 = vmatpush1.bf16.msra.mxu0 0
        %2791 = vmatprep.subr.bf16.mxu0 0
        %2792 = vmatpush1.bf16.msra.mxu0 0
        %2793 = vmatprep.subr.bf16.mxu0 0
        %2794 = vmatpush1.bf16.msra.mxu0 0
        %2795 = vmatprep.subr.bf16.mxu0 0
        %2796 = vmatpush1.bf16.msra.mxu0 0
        %2797 = vmatprep.subr.bf16.mxu0 0
        %2798 = vmatpush1.bf16.msra.mxu0 0
        %2799 = vmatprep.subr.bf16.mxu0 0
        %2800 = vmatpush1.bf16.msra.mxu0 0
        %2801 = vmatprep.subr.bf16.mxu0 0
        %2802 = vmatpush1.bf16.msra.mxu0 0
        %2803 = vmatprep.subr.bf16.mxu0 0
        %2804 = vmatpush1.bf16.msra.mxu0 0
        %2805 = vmatprep.subr.bf16.mxu0 0
        %2806 = vmatpush1.bf16.msra.mxu0 0
        %2807 = vmatprep.mubr.bf16.mxu0 0
        %2808 = vmatmul.mubr.bf16.gmra.mrb[0].mxu0 %v2728
        %v2809 = vpop.f32.mrb[0].mxu0
        %v2810 = vadd.f32 0.0, %v2809
        %v2811 = vpop.f32.mrb[0].mxu0
        %v2812 = vpop.f32.mrb[0].mxu0
        %v2813 = vadd.f32 0.0, %v2812
        %v2814 = vpop.f32.mrb[0].mxu0
        %2815 = vmatprep.mubr.bf16.mxu0 0
        %2816 = vmatmul.mubr.bf16.gmra.mrb[0].mxu0 %v2731
        %v2817 = vpop.f32.mrb[0].mxu0
        %v2818 = vadd.f32 0.0, %v2817
        %v2819 = vpop.f32.mrb[0].mxu0
        %v2820 = vpop.f32.mrb[0].mxu0
        %v2821 = vadd.f32 0.0, %v2820
        %v2822 = vpop.f32.mrb[0].mxu0
        %2823 = vmatprep.mubr.bf16.mxu0 0
        %2824 = vmatmul.mubr.bf16.gmra.mrb[0].mxu0 %v2734
        %v2825 = vpop.f32.mrb[0].mxu0
        %v2826 = vadd.f32 0.0, %v2825
        %v2827 = vpop.f32.mrb[0].mxu0
        %v2828 = vpop.f32.mrb[0].mxu0
        %v2829 = vadd.f32 0.0, %v2828
        %v2830 = vpop.f32.mrb[0].mxu0
        %2831 = vmatprep.mubr.bf16.mxu0 0
        %2832 = vmatmul.mubr.bf16.gmra.mrb[0].mxu0 %v2737
        %v2833 = vpop.f32.mrb[0].mxu0
        %v2834 = vadd.f32 0.0, %v2833
        %v2835 = vpop.f32.mrb[0].mxu0
        %v2836 = vpop.f32.mrb[0].mxu0
        %v2837 = vadd.f32 0.0, %v2836
        %v2838 = vpop.f32.mrb[0].mxu0
        %2839 = vmatprep.mubr.bf16.mxu0 0
        %2840 = vmatmul.mubr.bf16.gmra.mrb[0].mxu0 %v2740
        %v2841 = vpop.f32.mrb[0].mxu0
        %v2842 = vadd.f32 0.0, %v2841
        %v2843 = vpop.f32.mrb[0].mxu0
        %v2844 = vpop.f32.mrb[0].mxu0
        %v2845 = vadd.f32 0.0, %v2844
        %v2846 = vpop.f32.mrb[0].mxu0
        %2847 = vmatprep.mubr.bf16.mxu0 0
        %2848 = vmatmul.mubr.bf16.gmra.mrb[0].mxu0 %v2743
        %v2849 = vpop.f32.mrb[0].mxu0
        %v2850 = vadd.f32 0.0, %v2849
        %v2851 = vpop.f32.mrb[0].mxu0
        %v2852 = vpop.f32.mrb[0].mxu0
        %v2853 = vadd.f32 0.0, %v2852
        %v2854 = vpop.f32.mrb[0].mxu0
        %2855 = vmatprep.mubr.bf16.mxu0 0
        %2856 = vmatmul.mubr.bf16.gmra.mrb[0].mxu0 %v2746
        %v2857 = vpop.f32.mrb[0].mxu0
        %v2858 = vadd.f32 0.0, %v2857
        %v2859 = vpop.f32.mrb[0].mxu0
        %v2860 = vpop.f32.mrb[0].mxu0
        %v2861 = vadd.f32 0.0, %v2860
        %v2862 = vpop.f32.mrb[0].mxu0
        %2863 = vmatprep.mubr.bf16.mxu0 0
        %2864 = vmatmul.mubr.bf16.gmra.mrb[0].mxu0 %v2749
        %v2865 = vpop.f32.mrb[0].mxu0
        %v2866 = vadd.f32 0.0, %v2865
        %v2867 = vpop.f32.mrb[0].mxu0
        %v2868 = vpop.f32.mrb[0].mxu0
        %v2869 = vadd.f32 0.0, %v2868
        %v2870 = vpop.f32.mrb[0].mxu0
        %2871 = vmatprep.mubr.bf16.mxu0 0
        %2872 = vmatmul.mubr.bf16.gmra.mrb[0].mxu0 %v2752
        %v2873 = vpop.f32.mrb[0].mxu0
        %v2874 = vadd.f32 0.0, %v2873
        %v2875 = vpop.f32.mrb[0].mxu0
        %v2876 = vpop.f32.mrb[0].mxu0
        %v2877 = vadd.f32 0.0, %v2876
        %v2878 = vpop.f32.mrb[0].mxu0
        %2879 = vmatprep.mubr.bf16.mxu0 0
        %2880 = vmatmul.mubr.bf16.gmra.mrb[0].mxu0 %v2755
        %v2881 = vpop.f32.mrb[0].mxu0
        %v2882 = vadd.f32 0.0, %v2881
        %v2883 = vpop.f32.mrb[0].mxu0
        %v2884 = vpop.f32.mrb[0].mxu0
        %v2885 = vadd.f32 0.0, %v2884
        %v2886 = vpop.f32.mrb[0].mxu0
        %2887 = vmatprep.mubr.bf16.mxu0 0
        %2888 = vmatmul.mubr.bf16.gmra.mrb[0].mxu0 %v2758
        %v2889 = vpop.f32.mrb[0].mxu0
        %v2890 = vadd.f32 0.0, %v2889
        %v2891 = vpop.f32.mrb[0].mxu0
        %v2892 = vpop.f32.mrb[0].mxu0
        %v2893 = vadd.f32 0.0, %v2892
        %v2894 = vpop.f32.mrb[0].mxu0
        %2895 = vmatprep.mubr.bf16.mxu0 0
        %2896 = vmatmul.mubr.bf16.gmra.mrb[0].mxu0 %v2761
        %v2897 = vpop.f32.mrb[0].mxu0
        %v2898 = vadd.f32 0.0, %v2897
        %v2899 = vpop.f32.mrb[0].mxu0
        %v2900 = vpop.f32.mrb[0].mxu0
        %v2901 = vadd.f32 0.0, %v2900
        %v2902 = vpop.f32.mrb[0].mxu0
        %2903 = vmatprep.mubr.bf16.mxu0 0
        %2904 = vmatmul.mubr.bf16.gmra.mrb[0].mxu0 %v2764
        %v2905 = vpop.f32.mrb[0].mxu0
        %v2906 = vadd.f32 0.0, %v2905
        %v2907 = vpop.f32.mrb[0].mxu0
        %v2908 = vpop.f32.mrb[0].mxu0
        %v2909 = vadd.f32 0.0, %v2908
        %v2910 = vpop.f32.mrb[0].mxu0
        %2911 = vmatprep.mubr.bf16.mxu0 0
        %2912 = vmatmul.mubr.bf16.gmra.mrb[0].mxu0 %v2767
        %v2913 = vpop.f32.mrb[0].mxu0
        %v2914 = vadd.f32 0.0, %v2913
        %v2915 = vpop.f32.mrb[0].mxu0
        %v2916 = vpop.f32.mrb[0].mxu0
        %v2917 = vadd.f32 0.0, %v2916
        %v2918 = vpop.f32.mrb[0].mxu0
        %2919 = vmatprep.mubr.bf16.mxu0 0
        %2920 = vmatmul.mubr.bf16.gmra.mrb[0].mxu0 %v2770
        %v2921 = vpop.f32.mrb[0].mxu0
        %v2922 = vadd.f32 0.0, %v2921
        %v2923 = vpop.f32.mrb[0].mxu0
        %v2924 = vpop.f32.mrb[0].mxu0
        %v2925 = vadd.f32 0.0, %v2924
        %v2926 = vpop.f32.mrb[0].mxu0
        %2927 = vmatprep.mubr.bf16.mxu0 0
        %2928 = vmatmul.mubr.bf16.gmra.mrb[0].mxu0 %v2773
        %v2929 = vpop.f32.mrb[0].mxu0
        %v2930 = vadd.f32 0.0, %v2929
        %v2931 = vpop.f32.mrb[0].mxu0
        %v2932 = vpop.f32.mrb[0].mxu0
        %v2933 = vadd.f32 0.0, %v2932
        %v2934 = vpop.f32.mrb[0].mxu0
        %2935 = vdwg.mxu0
        %v2936 = vadd.f32 %v2625, %v2810
        %v2937 = vadd.f32 %v2626, %v2813
        %v2938 = vadd.f32 %v2627, %v2818
        %v2939 = vadd.f32 %v2628, %v2821
        %v2940 = vadd.f32 %v2629, %v2826
        %v2941 = vadd.f32 %v2630, %v2829
        %v2942 = vadd.f32 %v2631, %v2834
        %v2943 = vadd.f32 %v2632, %v2837
        %v2944 = vadd.f32 %v2633, %v2842
        %v2945 = vadd.f32 %v2634, %v2845
        %v2946 = vadd.f32 %v2635, %v2850
        %v2947 = vadd.f32 %v2636, %v2853
        %v2948 = vadd.f32 %v2637, %v2858
        %v2949 = vadd.f32 %v2638, %v2861
        %v2950 = vadd.f32 %v2639, %v2866
        %v2951 = vadd.f32 %v2640, %v2869
        %v2952 = vadd.f32 %v2641, %v2874
        %v2953 = vadd.f32 %v2642, %v2877
        %v2954 = vadd.f32 %v2643, %v2882
        %v2955 = vadd.f32 %v2644, %v2885
        %v2956 = vadd.f32 %v2645, %v2890
        %v2957 = vadd.f32 %v2646, %v2893
        %v2958 = vadd.f32 %v2647, %v2898
        %v2959 = vadd.f32 %v2648, %v2901
        %v2960 = vadd.f32 %v2649, %v2906
        %v2961 = vadd.f32 %v2650, %v2909
        %v2962 = vadd.f32 %v2651, %v2914
        %v2963 = vadd.f32 %v2652, %v2917
        %v2964 = vadd.f32 %v2653, %v2922
        %v2965 = vadd.f32 %v2654, %v2925
        %v2966 = vadd.f32 %v2655, %v2930
        %v2967 = vadd.f32 %v2656, %v2933
        %v2968 = vsel %vm1216, %v2133, 0.0
        %v2969 = vsel %vm1216, 0.0, %v1188
        %v2970 = vsel %vm1122, %v2969, 0.0
        %v2971 = vsel %vm1123, %v1243, 0.0
        %v2972 = vsel %vm1124, %v1242, 0.0
        %v2973 = vsel %vm1125, %v1241, 0.0
        %v2974 = vsel %vm1126, %v1240, 0.0
        %v2975 = vsel %vm1127, %v1239, 0.0
        %v2976 = vsel %vm1128, %v1238, 0.0
        %v2977 = vsel %vm1129, %v1237, 0.0
        %v2978 = vsel %vm1130, %v1236, 0.0
        %v2979 = vsel %vm1131, %v1235, 0.0
        %v2980 = vsel %vm1132, %v1234, 0.0
        %v2981 = vsel %vm1133, %v1233, 0.0
        %v2982 = vsel %vm1134, %v1232, 0.0
        %v2983 = vsel %vm1135, %v1231, 0.0
        %v2984 = vsel %vm1136, %v1230, 0.0
        %v2985 = vsel %vm1137, %v1229, 0.0
        %v2986 = vsel %vm1138, %v1228, 0.0
        %v2987 = vsel %vm1139, %v1227, 0.0
        %v2988 = vsel %vm1140, %v1226, 0.0
        %v2989 = vsel %vm1141, %v1225, 0.0
        %v2990 = vsel %vm1142, %v1224, 0.0
        %v2991 = vsel %vm1143, %v1223, 0.0
        %v2992 = vsel %vm1144, %v1222, 0.0
        %v2993 = vsel %vm1145, %v1221, 0.0
        %v2994 = vsel %vm1146, %v1220, 0.0
        %v2995 = vsel %vm1147, %v1219, 0.0
        %v2996 = vsel %vm1148, %v1218, 0.0
        %v2997 = vsel %vm1149, %v1217, 0.0
        %v2998 = vsel %vm1150, %v2135, 0.0
        %v2999 = vsel %vm1151, %v2134, 0.0
        %v3000 = vsel %vm1152, %v2968, 0.0
        %v3001 = vsel %vm1153, 0.0, 0.0
        %v3002 = vpack.c.bf16 %v2971, %v2970
        %v3003 = vpack.c.bf16 %v2973, %v2972
        %v3004 = vpack.c.bf16 %v2975, %v2974
        %v3005 = vpack.c.bf16 %v2977, %v2976
        %v3006 = vpack.c.bf16 %v2979, %v2978
        %v3007 = vpack.c.bf16 %v2981, %v2980
        %v3008 = vpack.c.bf16 %v2983, %v2982
        %v3009 = vpack.c.bf16 %v2985, %v2984
        %v3010 = vpack.c.bf16 %v2987, %v2986
        %v3011 = vpack.c.bf16 %v2989, %v2988
        %v3012 = vpack.c.bf16 %v2991, %v2990
        %v3013 = vpack.c.bf16 %v2993, %v2992
        %v3014 = vpack.c.bf16 %v2995, %v2994
        %v3015 = vpack.c.bf16 %v2997, %v2996
        %v3016 = vpack.c.bf16 %v2999, %v2998
        %v3017 = vpack.c.bf16 %v3001, %v3000
        %s3018 = scalar_lea.vmem [#allocation5], 96
        %v3019 = vld [vmem:[%s3018] sm:$0xf]
        %v3020 = vld [vmem:[%s3018 + $0x4] sm:$0xf]
        %v3021 = vld [vmem:[%s3018 + $0x8] sm:$0xf]
        %v3022 = vld [vmem:[%s3018 + $0xc] sm:$0xf]
        %v3027 = vunpack.c.l.b16 %v3019
        %v3028 = vunpack.c.l.b16 %v3020
        %v3029 = vunpack.c.l.b16 %v3021
        %v3030 = vunpack.c.l.b16 %v3022
        %v3031 = vpack.c.b16 %v3028, %v3027
        %v3032 = vpack.c.b16 %v3030, %v3029
        %v3036 = vsel %vm1333, %v3002, 0
        %v3039 = vsel %vm1333, %v3003, 0
        %v3042 = vsel %vm1333, %v3004, 0
        %v3045 = vsel %vm1333, %v3005, 0
        %v3048 = vsel %vm1333, %v3006, 0
        %v3051 = vsel %vm1333, %v3007, 0
        %v3054 = vsel %vm1333, %v3008, 0
        %v3057 = vsel %vm1333, %v3009, 0
        %v3060 = vsel %vm1333, %v3010, 0
        %v3063 = vsel %vm1333, %v3011, 0
        %v3066 = vsel %vm1333, %v3012, 0
        %v3069 = vsel %vm1333, %v3013, 0
        %v3072 = vsel %vm1333, %v3014, 0
        %v3075 = vsel %vm1333, %v3015, 0
        %v3078 = vsel %vm1333, %v3016, 0
        %v3081 = vsel %vm1333, %v3017, 0
        %3083 = vmatprep.subr.bf16.mxu0 0
        %3084 = vmatpush1.bf16.msra.mxu0 %v3031
        %3085 = vmatprep.subr.bf16.mxu0 0
        %3086 = vmatpush1.bf16.msra.mxu0 %v3032
        %3087 = vmatprep.subr.bf16.mxu0 0
        %3088 = vmatpush1.bf16.msra.mxu0 0
        %3089 = vmatprep.subr.bf16.mxu0 0
        %3090 = vmatpush1.bf16.msra.mxu0 0
        %3091 = vmatprep.subr.bf16.mxu0 0
        %3092 = vmatpush1.bf16.msra.mxu0 0
        %3093 = vmatprep.subr.bf16.mxu0 0
        %3094 = vmatpush1.bf16.msra.mxu0 0
        %3095 = vmatprep.subr.bf16.mxu0 0
        %3096 = vmatpush1.bf16.msra.mxu0 0
        %3097 = vmatprep.subr.bf16.mxu0 0
        %3098 = vmatpush1.bf16.msra.mxu0 0
        %3099 = vmatprep.subr.bf16.mxu0 0
        %3100 = vmatpush1.bf16.msra.mxu0 0
        %3101 = vmatprep.subr.bf16.mxu0 0
        %3102 = vmatpush1.bf16.msra.mxu0 0
        %3103 = vmatprep.subr.bf16.mxu0 0
        %3104 = vmatpush1.bf16.msra.mxu0 0
        %3105 = vmatprep.subr.bf16.mxu0 0
        %3106 = vmatpush1.bf16.msra.mxu0 0
        %3107 = vmatprep.subr.bf16.mxu0 0
        %3108 = vmatpush1.bf16.msra.mxu0 0
        %3109 = vmatprep.subr.bf16.mxu0 0
        %3110 = vmatpush1.bf16.msra.mxu0 0
        %3111 = vmatprep.subr.bf16.mxu0 0
        %3112 = vmatpush1.bf16.msra.mxu0 0
        %3113 = vmatprep.subr.bf16.mxu0 0
        %3114 = vmatpush1.bf16.msra.mxu0 0
        %3115 = vmatprep.mubr.bf16.mxu0 0
        %3116 = vmatmul.mubr.bf16.gmra.mrb[0].mxu0 %v3036
        %v3117 = vpop.f32.mrb[0].mxu0
        %v3118 = vadd.f32 0.0, %v3117
        %v3119 = vpop.f32.mrb[0].mxu0
        %v3120 = vpop.f32.mrb[0].mxu0
        %v3121 = vadd.f32 0.0, %v3120
        %v3122 = vpop.f32.mrb[0].mxu0
        %3123 = vmatprep.mubr.bf16.mxu0 0
        %3124 = vmatmul.mubr.bf16.gmra.mrb[0].mxu0 %v3039
        %v3125 = vpop.f32.mrb[0].mxu0
        %v3126 = vadd.f32 0.0, %v3125
        %v3127 = vpop.f32.mrb[0].mxu0
        %v3128 = vpop.f32.mrb[0].mxu0
        %v3129 = vadd.f32 0.0, %v3128
        %v3130 = vpop.f32.mrb[0].mxu0
        %3131 = vmatprep.mubr.bf16.mxu0 0
        %3132 = vmatmul.mubr.bf16.gmra.mrb[0].mxu0 %v3042
        %v3133 = vpop.f32.mrb[0].mxu0
        %v3134 = vadd.f32 0.0, %v3133
        %v3135 = vpop.f32.mrb[0].mxu0
        %v3136 = vpop.f32.mrb[0].mxu0
        %v3137 = vadd.f32 0.0, %v3136
        %v3138 = vpop.f32.mrb[0].mxu0
        %3139 = vmatprep.mubr.bf16.mxu0 0
        %3140 = vmatmul.mubr.bf16.gmra.mrb[0].mxu0 %v3045
        %v3141 = vpop.f32.mrb[0].mxu0
        %v3142 = vadd.f32 0.0, %v3141
        %v3143 = vpop.f32.mrb[0].mxu0
        %v3144 = vpop.f32.mrb[0].mxu0
        %v3145 = vadd.f32 0.0, %v3144
        %v3146 = vpop.f32.mrb[0].mxu0
        %3147 = vmatprep.mubr.bf16.mxu0 0
        %3148 = vmatmul.mubr.bf16.gmra.mrb[0].mxu0 %v3048
        %v3149 = vpop.f32.mrb[0].mxu0
        %v3150 = vadd.f32 0.0, %v3149
        %v3151 = vpop.f32.mrb[0].mxu0
        %v3152 = vpop.f32.mrb[0].mxu0
        %v3153 = vadd.f32 0.0, %v3152
        %v3154 = vpop.f32.mrb[0].mxu0
        %3155 = vmatprep.mubr.bf16.mxu0 0
        %3156 = vmatmul.mubr.bf16.gmra.mrb[0].mxu0 %v3051
        %v3157 = vpop.f32.mrb[0].mxu0
        %v3158 = vadd.f32 0.0, %v3157
        %v3159 = vpop.f32.mrb[0].mxu0
        %v3160 = vpop.f32.mrb[0].mxu0
        %v3161 = vadd.f32 0.0, %v3160
        %v3162 = vpop.f32.mrb[0].mxu0
        %3163 = vmatprep.mubr.bf16.mxu0 0
        %3164 = vmatmul.mubr.bf16.gmra.mrb[0].mxu0 %v3054
        %v3165 = vpop.f32.mrb[0].mxu0
        %v3166 = vadd.f32 0.0, %v3165
        %v3167 = vpop.f32.mrb[0].mxu0
        %v3168 = vpop.f32.mrb[0].mxu0
        %v3169 = vadd.f32 0.0, %v3168
        %v3170 = vpop.f32.mrb[0].mxu0
        %3171 = vmatprep.mubr.bf16.mxu0 0
        %3172 = vmatmul.mubr.bf16.gmra.mrb[0].mxu0 %v3057
        %v3173 = vpop.f32.mrb[0].mxu0
        %v3174 = vadd.f32 0.0, %v3173
        %v3175 = vpop.f32.mrb[0].mxu0
        %v3176 = vpop.f32.mrb[0].mxu0
        %v3177 = vadd.f32 0.0, %v3176
        %v3178 = vpop.f32.mrb[0].mxu0
        %3179 = vmatprep.mubr.bf16.mxu0 0
        %3180 = vmatmul.mubr.bf16.gmra.mrb[0].mxu0 %v3060
        %v3181 = vpop.f32.mrb[0].mxu0
        %v3182 = vadd.f32 0.0, %v3181
        %v3183 = vpop.f32.mrb[0].mxu0
        %v3184 = vpop.f32.mrb[0].mxu0
        %v3185 = vadd.f32 0.0, %v3184
        %v3186 = vpop.f32.mrb[0].mxu0
        %3187 = vmatprep.mubr.bf16.mxu0 0
        %3188 = vmatmul.mubr.bf16.gmra.mrb[0].mxu0 %v3063
        %v3189 = vpop.f32.mrb[0].mxu0
        %v3190 = vadd.f32 0.0, %v3189
        %v3191 = vpop.f32.mrb[0].mxu0
        %v3192 = vpop.f32.mrb[0].mxu0
        %v3193 = vadd.f32 0.0, %v3192
        %v3194 = vpop.f32.mrb[0].mxu0
        %3195 = vmatprep.mubr.bf16.mxu0 0
        %3196 = vmatmul.mubr.bf16.gmra.mrb[0].mxu0 %v3066
        %v3197 = vpop.f32.mrb[0].mxu0
        %v3198 = vadd.f32 0.0, %v3197
        %v3199 = vpop.f32.mrb[0].mxu0
        %v3200 = vpop.f32.mrb[0].mxu0
        %v3201 = vadd.f32 0.0, %v3200
        %v3202 = vpop.f32.mrb[0].mxu0
        %3203 = vmatprep.mubr.bf16.mxu0 0
        %3204 = vmatmul.mubr.bf16.gmra.mrb[0].mxu0 %v3069
        %v3205 = vpop.f32.mrb[0].mxu0
        %v3206 = vadd.f32 0.0, %v3205
        %v3207 = vpop.f32.mrb[0].mxu0
        %v3208 = vpop.f32.mrb[0].mxu0
        %v3209 = vadd.f32 0.0, %v3208
        %v3210 = vpop.f32.mrb[0].mxu0
        %3211 = vmatprep.mubr.bf16.mxu0 0
        %3212 = vmatmul.mubr.bf16.gmra.mrb[0].mxu0 %v3072
        %v3213 = vpop.f32.mrb[0].mxu0
        %v3214 = vadd.f32 0.0, %v3213
        %v3215 = vpop.f32.mrb[0].mxu0
        %v3216 = vpop.f32.mrb[0].mxu0
        %v3217 = vadd.f32 0.0, %v3216
        %v3218 = vpop.f32.mrb[0].mxu0
        %3219 = vmatprep.mubr.bf16.mxu0 0
        %3220 = vmatmul.mubr.bf16.gmra.mrb[0].mxu0 %v3075
        %v3221 = vpop.f32.mrb[0].mxu0
        %v3222 = vadd.f32 0.0, %v3221
        %v3223 = vpop.f32.mrb[0].mxu0
        %v3224 = vpop.f32.mrb[0].mxu0
        %v3225 = vadd.f32 0.0, %v3224
        %v3226 = vpop.f32.mrb[0].mxu0
        %3227 = vmatprep.mubr.bf16.mxu0 0
        %3228 = vmatmul.mubr.bf16.gmra.mrb[0].mxu0 %v3078
        %v3229 = vpop.f32.mrb[0].mxu0
        %v3230 = vadd.f32 0.0, %v3229
        %v3231 = vpop.f32.mrb[0].mxu0
        %v3232 = vpop.f32.mrb[0].mxu0
        %v3233 = vadd.f32 0.0, %v3232
        %v3234 = vpop.f32.mrb[0].mxu0
        %3235 = vmatprep.mubr.bf16.mxu0 0
        %3236 = vmatmul.mubr.bf16.gmra.mrb[0].mxu0 %v3081
        %v3237 = vpop.f32.mrb[0].mxu0
        %v3238 = vadd.f32 0.0, %v3237
        %v3239 = vpop.f32.mrb[0].mxu0
        %v3240 = vpop.f32.mrb[0].mxu0
        %v3241 = vadd.f32 0.0, %v3240
        %v3242 = vpop.f32.mrb[0].mxu0
        %3243 = vdwg.mxu0
        %v3244 = vadd.f32 %v2936, %v3118
        %v3245 = vadd.f32 %v2937, %v3121
        %v3246 = vadd.f32 %v2938, %v3126
        %v3247 = vadd.f32 %v2939, %v3129
        %v3248 = vadd.f32 %v2940, %v3134
        %v3249 = vadd.f32 %v2941, %v3137
        %v3250 = vadd.f32 %v2942, %v3142
        %v3251 = vadd.f32 %v2943, %v3145
        %v3252 = vadd.f32 %v2944, %v3150
        %v3253 = vadd.f32 %v2945, %v3153
        %v3254 = vadd.f32 %v2946, %v3158
        %v3255 = vadd.f32 %v2947, %v3161
        %v3256 = vadd.f32 %v2948, %v3166
        %v3257 = vadd.f32 %v2949, %v3169
        %v3258 = vadd.f32 %v2950, %v3174
        %v3259 = vadd.f32 %v2951, %v3177
        %v3260 = vadd.f32 %v2952, %v3182
        %v3261 = vadd.f32 %v2953, %v3185
        %v3262 = vadd.f32 %v2954, %v3190
        %v3263 = vadd.f32 %v2955, %v3193
        %v3264 = vadd.f32 %v2956, %v3198
        %v3265 = vadd.f32 %v2957, %v3201
        %v3266 = vadd.f32 %v2958, %v3206
        %v3267 = vadd.f32 %v2959, %v3209
        %v3268 = vadd.f32 %v2960, %v3214
        %v3269 = vadd.f32 %v2961, %v3217
        %v3270 = vadd.f32 %v2962, %v3222
        %v3271 = vadd.f32 %v2963, %v3225
        %v3272 = vadd.f32 %v2964, %v3230
        %v3273 = vadd.f32 %v2965, %v3233
        %v3274 = vadd.f32 %v2966, %v3238
        %v3275 = vadd.f32 %v2967, %v3241
        %s3276 = scalar_lea.vmem [#allocation5], 112
        %v3277 = vld [vmem:[%s3276] sm:$0xf]
        %v3278 = vld [vmem:[%s3276 + $0x4] sm:$0xf]
        %v3279 = vld [vmem:[%s3276 + $0x8] sm:$0xf]
        %v3280 = vld [vmem:[%s3276 + $0xc] sm:$0xf]
        %v3285 = vunpack.c.l.b16 %v3277
        %v3286 = vunpack.c.l.b16 %v3278
        %v3287 = vunpack.c.l.b16 %v3279
        %v3288 = vunpack.c.l.b16 %v3280
        %v3289 = vpack.c.b16 %v3286, %v3285
        %v3290 = vpack.c.b16 %v3288, %v3287
        %3293 = vmatprep.subr.bf16.mxu0 0
        %3294 = vmatpush1.bf16.msra.mxu0 %v3289
        %3295 = vmatprep.subr.bf16.mxu0 0
        %3296 = vmatpush1.bf16.msra.mxu0 %v3290
        %3297 = vmatprep.subr.bf16.mxu0 0
        %3298 = vmatpush1.bf16.msra.mxu0 0
        %3299 = vmatprep.subr.bf16.mxu0 0
        %3300 = vmatpush1.bf16.msra.mxu0 0
        %3301 = vmatprep.subr.bf16.mxu0 0
        %3302 = vmatpush1.bf16.msra.mxu0 0
        %3303 = vmatprep.subr.bf16.mxu0 0
        %3304 = vmatpush1.bf16.msra.mxu0 0
        %3305 = vmatprep.subr.bf16.mxu0 0
        %3306 = vmatpush1.bf16.msra.mxu0 0
        %3307 = vmatprep.subr.bf16.mxu0 0
        %3308 = vmatpush1.bf16.msra.mxu0 0
        %3309 = vmatprep.subr.bf16.mxu0 0
        %3310 = vmatpush1.bf16.msra.mxu0 0
        %3311 = vmatprep.subr.bf16.mxu0 0
        %3312 = vmatpush1.bf16.msra.mxu0 0
        %3313 = vmatprep.subr.bf16.mxu0 0
        %3314 = vmatpush1.bf16.msra.mxu0 0
        %3315 = vmatprep.subr.bf16.mxu0 0
        %3316 = vmatpush1.bf16.msra.mxu0 0
        %3317 = vmatprep.subr.bf16.mxu0 0
        %3318 = vmatpush1.bf16.msra.mxu0 0
        %3319 = vmatprep.subr.bf16.mxu0 0
        %3320 = vmatpush1.bf16.msra.mxu0 0
        %3321 = vmatprep.subr.bf16.mxu0 0
        %3322 = vmatpush1.bf16.msra.mxu0 0
        %3323 = vmatprep.subr.bf16.mxu0 0
        %3324 = vmatpush1.bf16.msra.mxu0 0
        %3325 = vmatprep.mubr.bf16.mxu0 0
        %3326 = vmatmul.mubr.bf16.gmra.mrb[0].mxu0 %v1341
        %v3327 = vpop.f32.mrb[0].mxu0
        %v3328 = vadd.f32 0.0, %v3327
        %v3329 = vpop.f32.mrb[0].mxu0
        %v3330 = vpop.f32.mrb[0].mxu0
        %v3331 = vadd.f32 0.0, %v3330
        %v3332 = vpop.f32.mrb[0].mxu0
        %3333 = vmatprep.mubr.bf16.mxu0 0
        %3334 = vmatmul.mubr.bf16.gmra.mrb[0].mxu0 %v1344
        %v3335 = vpop.f32.mrb[0].mxu0
        %v3336 = vadd.f32 0.0, %v3335
        %v3337 = vpop.f32.mrb[0].mxu0
        %v3338 = vpop.f32.mrb[0].mxu0
        %v3339 = vadd.f32 0.0, %v3338
        %v3340 = vpop.f32.mrb[0].mxu0
        %3341 = vmatprep.mubr.bf16.mxu0 0
        %3342 = vmatmul.mubr.bf16.gmra.mrb[0].mxu0 %v1347
        %v3343 = vpop.f32.mrb[0].mxu0
        %v3344 = vadd.f32 0.0, %v3343
        %v3345 = vpop.f32.mrb[0].mxu0
        %v3346 = vpop.f32.mrb[0].mxu0
        %v3347 = vadd.f32 0.0, %v3346
        %v3348 = vpop.f32.mrb[0].mxu0
        %3349 = vmatprep.mubr.bf16.mxu0 0
        %3350 = vmatmul.mubr.bf16.gmra.mrb[0].mxu0 %v1350
        %v3351 = vpop.f32.mrb[0].mxu0
        %v3352 = vadd.f32 0.0, %v3351
        %v3353 = vpop.f32.mrb[0].mxu0
        %v3354 = vpop.f32.mrb[0].mxu0
        %v3355 = vadd.f32 0.0, %v3354
        %v3356 = vpop.f32.mrb[0].mxu0
        %3357 = vmatprep.mubr.bf16.mxu0 0
        %3358 = vmatmul.mubr.bf16.gmra.mrb[0].mxu0 %v1353
        %v3359 = vpop.f32.mrb[0].mxu0
        %v3360 = vadd.f32 0.0, %v3359
        %v3361 = vpop.f32.mrb[0].mxu0
        %v3362 = vpop.f32.mrb[0].mxu0
        %v3363 = vadd.f32 0.0, %v3362
        %v3364 = vpop.f32.mrb[0].mxu0
        %3365 = vmatprep.mubr.bf16.mxu0 0
        %3366 = vmatmul.mubr.bf16.gmra.mrb[0].mxu0 %v1356
        %v3367 = vpop.f32.mrb[0].mxu0
        %v3368 = vadd.f32 0.0, %v3367
        %v3369 = vpop.f32.mrb[0].mxu0
        %v3370 = vpop.f32.mrb[0].mxu0
        %v3371 = vadd.f32 0.0, %v3370
        %v3372 = vpop.f32.mrb[0].mxu0
        %3373 = vmatprep.mubr.bf16.mxu0 0
        %3374 = vmatmul.mubr.bf16.gmra.mrb[0].mxu0 %v1359
        %v3375 = vpop.f32.mrb[0].mxu0
        %v3376 = vadd.f32 0.0, %v3375
        %v3377 = vpop.f32.mrb[0].mxu0
        %v3378 = vpop.f32.mrb[0].mxu0
        %v3379 = vadd.f32 0.0, %v3378
        %v3380 = vpop.f32.mrb[0].mxu0
        %3381 = vmatprep.mubr.bf16.mxu0 0
        %3382 = vmatmul.mubr.bf16.gmra.mrb[0].mxu0 %v1362
        %v3383 = vpop.f32.mrb[0].mxu0
        %v3384 = vadd.f32 0.0, %v3383
        %v3385 = vpop.f32.mrb[0].mxu0
        %v3386 = vpop.f32.mrb[0].mxu0
        %v3387 = vadd.f32 0.0, %v3386
        %v3388 = vpop.f32.mrb[0].mxu0
        %3389 = vmatprep.mubr.bf16.mxu0 0
        %3390 = vmatmul.mubr.bf16.gmra.mrb[0].mxu0 %v1365
        %v3391 = vpop.f32.mrb[0].mxu0
        %v3392 = vadd.f32 0.0, %v3391
        %v3393 = vpop.f32.mrb[0].mxu0
        %v3394 = vpop.f32.mrb[0].mxu0
        %v3395 = vadd.f32 0.0, %v3394
        %v3396 = vpop.f32.mrb[0].mxu0
        %3397 = vmatprep.mubr.bf16.mxu0 0
        %3398 = vmatmul.mubr.bf16.gmra.mrb[0].mxu0 %v1368
        %v3399 = vpop.f32.mrb[0].mxu0
        %v3400 = vadd.f32 0.0, %v3399
        %v3401 = vpop.f32.mrb[0].mxu0
        %v3402 = vpop.f32.mrb[0].mxu0
        %v3403 = vadd.f32 0.0, %v3402
        %v3404 = vpop.f32.mrb[0].mxu0
        %3405 = vmatprep.mubr.bf16.mxu0 0
        %3406 = vmatmul.mubr.bf16.gmra.mrb[0].mxu0 %v1371
        %v3407 = vpop.f32.mrb[0].mxu0
        %v3408 = vadd.f32 0.0, %v3407
        %v3409 = vpop.f32.mrb[0].mxu0
        %v3410 = vpop.f32.mrb[0].mxu0
        %v3411 = vadd.f32 0.0, %v3410
        %v3412 = vpop.f32.mrb[0].mxu0
        %3413 = vmatprep.mubr.bf16.mxu0 0
        %3414 = vmatmul.mubr.bf16.gmra.mrb[0].mxu0 %v1374
        %v3415 = vpop.f32.mrb[0].mxu0
        %v3416 = vadd.f32 0.0, %v3415
        %v3417 = vpop.f32.mrb[0].mxu0
        %v3418 = vpop.f32.mrb[0].mxu0
        %v3419 = vadd.f32 0.0, %v3418
        %v3420 = vpop.f32.mrb[0].mxu0
        %3421 = vmatprep.mubr.bf16.mxu0 0
        %3422 = vmatmul.mubr.bf16.gmra.mrb[0].mxu0 %v1377
        %v3423 = vpop.f32.mrb[0].mxu0
        %v3424 = vadd.f32 0.0, %v3423
        %v3425 = vpop.f32.mrb[0].mxu0
        %v3426 = vpop.f32.mrb[0].mxu0
        %v3427 = vadd.f32 0.0, %v3426
        %v3428 = vpop.f32.mrb[0].mxu0
        %3429 = vmatprep.mubr.bf16.mxu0 0
        %3430 = vmatmul.mubr.bf16.gmra.mrb[0].mxu0 %v1380
        %v3431 = vpop.f32.mrb[0].mxu0
        %v3432 = vadd.f32 0.0, %v3431
        %v3433 = vpop.f32.mrb[0].mxu0
        %v3434 = vpop.f32.mrb[0].mxu0
        %v3435 = vadd.f32 0.0, %v3434
        %v3436 = vpop.f32.mrb[0].mxu0
        %3437 = vmatprep.mubr.bf16.mxu0 0
        %3438 = vmatmul.mubr.bf16.gmra.mrb[0].mxu0 %v2462
        %v3439 = vpop.f32.mrb[0].mxu0
        %v3440 = vadd.f32 0.0, %v3439
        %v3441 = vpop.f32.mrb[0].mxu0
        %v3442 = vpop.f32.mrb[0].mxu0
        %v3443 = vadd.f32 0.0, %v3442
        %v3444 = vpop.f32.mrb[0].mxu0
        %3445 = vmatprep.mubr.bf16.mxu0 0
        %3446 = vmatmul.mubr.bf16.gmra.mrb[0].mxu0 %v1335
        %v3447 = vpop.f32.mrb[0].mxu0
        %v3448 = vadd.f32 0.0, %v3447
        %v3449 = vpop.f32.mrb[0].mxu0
        %v3450 = vpop.f32.mrb[0].mxu0
        %v3451 = vadd.f32 0.0, %v3450
        %v3452 = vpop.f32.mrb[0].mxu0
        %3453 = vdwg.mxu0
        %v3454 = vadd.f32 %v3244, %v3328
        %v3455 = vadd.f32 %v3245, %v3331
        %v3456 = vadd.f32 %v3246, %v3336
        %v3457 = vadd.f32 %v3247, %v3339
        %v3458 = vadd.f32 %v3248, %v3344
        %v3459 = vadd.f32 %v3249, %v3347
        %v3460 = vadd.f32 %v3250, %v3352
        %v3461 = vadd.f32 %v3251, %v3355
        %v3462 = vadd.f32 %v3252, %v3360
        %v3463 = vadd.f32 %v3253, %v3363
        %v3464 = vadd.f32 %v3254, %v3368
        %v3465 = vadd.f32 %v3255, %v3371
        %v3466 = vadd.f32 %v3256, %v3376
        %v3467 = vadd.f32 %v3257, %v3379
        %v3468 = vadd.f32 %v3258, %v3384
        %v3469 = vadd.f32 %v3259, %v3387
        %v3470 = vadd.f32 %v3260, %v3392
        %v3471 = vadd.f32 %v3261, %v3395
        %v3472 = vadd.f32 %v3262, %v3400
        %v3473 = vadd.f32 %v3263, %v3403
        %v3474 = vadd.f32 %v3264, %v3408
        %v3475 = vadd.f32 %v3265, %v3411
        %v3476 = vadd.f32 %v3266, %v3416
        %v3477 = vadd.f32 %v3267, %v3419
        %v3478 = vadd.f32 %v3268, %v3424
        %v3479 = vadd.f32 %v3269, %v3427
        %v3480 = vadd.f32 %v3270, %v3432
        %v3481 = vadd.f32 %v3271, %v3435
        %v3482 = vadd.f32 %v3272, %v3440
        %v3483 = vadd.f32 %v3273, %v3443
        %v3484 = vadd.f32 %v3274, %v3448
        %v3485 = vadd.f32 %v3275, %v3451
        %v3486 = vsel %vm1794, %v2658, 0.0
        %v3487 = vsel %vm1794, 0.0, %v1766
        %v3488 = vsel %vm1154, %v1821, 0.0
        %v3489 = vsel %vm1155, %v1820, 0.0
        %v3490 = vsel %vm1156, %v1819, 0.0
        %v3491 = vsel %vm1157, %v1818, 0.0
        %v3492 = vsel %vm1158, %v1817, 0.0
        %v3493 = vsel %vm1159, %v1816, 0.0
        %v3494 = vsel %vm1160, %v1815, 0.0
        %v3495 = vsel %vm1161, %v1814, 0.0
        %v3496 = vsel %vm1162, %v1813, 0.0
        %v3497 = vsel %vm1163, %v1812, 0.0
        %v3498 = vsel %vm1164, %v1811, 0.0
        %v3499 = vsel %vm1165, %v1810, 0.0
        %v3500 = vsel %vm1166, %v1809, 0.0
        %v3501 = vsel %vm1167, %v1808, 0.0
        %v3502 = vsel %vm1168, %v1807, 0.0
        %v3503 = vsel %vm1169, %v1806, 0.0
        %v3504 = vsel %vm1170, %v1805, 0.0
        %v3505 = vsel %vm1171, %v1804, 0.0
        %v3506 = vsel %vm1172, %v1803, 0.0
        %v3507 = vsel %vm1173, %v1802, 0.0
        %v3508 = vsel %vm1174, %v1801, 0.0
        %v3509 = vsel %vm1175, %v1800, 0.0
        %v3510 = vsel %vm1176, %v1799, 0.0
        %v3511 = vsel %vm1177, %v1798, 0.0
        %v3512 = vsel %vm1178, %v1797, 0.0
        %v3513 = vsel %vm1179, %v1796, 0.0
        %v3514 = vsel %vm1180, %v1795, 0.0
        %v3515 = vsel %vm1181, %v2660, 0.0
        %v3516 = vsel %vm1182, %v2659, 0.0
        %v3517 = vsel %vm1183, %v3486, 0.0
        %v3518 = vsel %vm1184, 0.0, 0.0
        %v3519 = vsel %vm1185, %v3487, 0.0
        %v3520 = vpack.c.bf16 %v3489, %v3488
        %v3521 = vpack.c.bf16 %v3491, %v3490
        %v3522 = vpack.c.bf16 %v3493, %v3492
        %v3523 = vpack.c.bf16 %v3495, %v3494
        %v3524 = vpack.c.bf16 %v3497, %v3496
        %v3525 = vpack.c.bf16 %v3499, %v3498
        %v3526 = vpack.c.bf16 %v3501, %v3500
        %v3527 = vpack.c.bf16 %v3503, %v3502
        %v3528 = vpack.c.bf16 %v3505, %v3504
        %v3529 = vpack.c.bf16 %v3507, %v3506
        %v3530 = vpack.c.bf16 %v3509, %v3508
        %v3531 = vpack.c.bf16 %v3511, %v3510
        %v3532 = vpack.c.bf16 %v3513, %v3512
        %v3533 = vpack.c.bf16 %v3515, %v3514
        %v3534 = vpack.c.bf16 %v3517, %v3516
        %v3535 = vpack.c.bf16 %v3519, %v3518
        %s3536 = scalar_lea.vmem [#allocation5], 128
        %v3537 = vld [vmem:[%s3536] sm:$0xf]
        %v3538 = vld [vmem:[%s3536 + $0x4] sm:$0xf]
        %v3539 = vld [vmem:[%s3536 + $0x8] sm:$0xf]
        %v3540 = vld [vmem:[%s3536 + $0xc] sm:$0xf]
        %v3545 = vunpack.c.l.b16 %v3537
        %v3546 = vunpack.c.l.b16 %v3538
        %v3547 = vunpack.c.l.b16 %v3539
        %v3548 = vunpack.c.l.b16 %v3540
        %v3549 = vpack.c.b16 %v3546, %v3545
        %v3550 = vpack.c.b16 %v3548, %v3547
        %v3554 = vsel %vm1333, %v3520, 0
        %v3557 = vsel %vm1333, %v3521, 0
        %v3560 = vsel %vm1333, %v3522, 0
        %v3563 = vsel %vm1333, %v3523, 0
        %v3566 = vsel %vm1333, %v3524, 0
        %v3569 = vsel %vm1333, %v3525, 0
        %v3572 = vsel %vm1333, %v3526, 0
        %v3575 = vsel %vm1333, %v3527, 0
        %v3578 = vsel %vm1333, %v3528, 0
        %v3581 = vsel %vm1333, %v3529, 0
        %v3584 = vsel %vm1333, %v3530, 0
        %v3587 = vsel %vm1333, %v3531, 0
        %v3590 = vsel %vm1333, %v3532, 0
        %v3593 = vsel %vm1333, %v3533, 0
        %v3596 = vsel %vm1333, %v3534, 0
        %v3599 = vsel %vm1333, %v3535, 0
        %3601 = vmatprep.subr.bf16.mxu0 0
        %3602 = vmatpush1.bf16.msra.mxu0 %v3549
        %3603 = vmatprep.subr.bf16.mxu0 0
        %3604 = vmatpush1.bf16.msra.mxu0 %v3550
        %3605 = vmatprep.subr.bf16.mxu0 0
        %3606 = vmatpush1.bf16.msra.mxu0 0
        %3607 = vmatprep.subr.bf16.mxu0 0
        %3608 = vmatpush1.bf16.msra.mxu0 0
        %3609 = vmatprep.subr.bf16.mxu0 0
        %3610 = vmatpush1.bf16.msra.mxu0 0
        %3611 = vmatprep.subr.bf16.mxu0 0
        %3612 = vmatpush1.bf16.msra.mxu0 0
        %3613 = vmatprep.subr.bf16.mxu0 0
        %3614 = vmatpush1.bf16.msra.mxu0 0
        %3615 = vmatprep.subr.bf16.mxu0 0
        %3616 = vmatpush1.bf16.msra.mxu0 0
        %3617 = vmatprep.subr.bf16.mxu0 0
        %3618 = vmatpush1.bf16.msra.mxu0 0
        %3619 = vmatprep.subr.bf16.mxu0 0
        %3620 = vmatpush1.bf16.msra.mxu0 0
        %3621 = vmatprep.subr.bf16.mxu0 0
        %3622 = vmatpush1.bf16.msra.mxu0 0
        %3623 = vmatprep.subr.bf16.mxu0 0
        %3624 = vmatpush1.bf16.msra.mxu0 0
        %3625 = vmatprep.subr.bf16.mxu0 0
        %3626 = vmatpush1.bf16.msra.mxu0 0
        %3627 = vmatprep.subr.bf16.mxu0 0
        %3628 = vmatpush1.bf16.msra.mxu0 0
        %3629 = vmatprep.subr.bf16.mxu0 0
        %3630 = vmatpush1.bf16.msra.mxu0 0
        %3631 = vmatprep.subr.bf16.mxu0 0
        %3632 = vmatpush1.bf16.msra.mxu0 0
        %3633 = vmatprep.mubr.bf16.mxu0 0
        %3634 = vmatmul.mubr.bf16.gmra.mrb[0].mxu0 %v3554
        %v3635 = vpop.f32.mrb[0].mxu0
        %v3636 = vadd.f32 0.0, %v3635
        %v3637 = vpop.f32.mrb[0].mxu0
        %v3638 = vpop.f32.mrb[0].mxu0
        %v3639 = vadd.f32 0.0, %v3638
        %v3640 = vpop.f32.mrb[0].mxu0
        %3641 = vmatprep.mubr.bf16.mxu0 0
        %3642 = vmatmul.mubr.bf16.gmra.mrb[0].mxu0 %v3557
        %v3643 = vpop.f32.mrb[0].mxu0
        %v3644 = vadd.f32 0.0, %v3643
        %v3645 = vpop.f32.mrb[0].mxu0
        %v3646 = vpop.f32.mrb[0].mxu0
        %v3647 = vadd.f32 0.0, %v3646
        %v3648 = vpop.f32.mrb[0].mxu0
        %3649 = vmatprep.mubr.bf16.mxu0 0
        %3650 = vmatmul.mubr.bf16.gmra.mrb[0].mxu0 %v3560
        %v3651 = vpop.f32.mrb[0].mxu0
        %v3652 = vadd.f32 0.0, %v3651
        %v3653 = vpop.f32.mrb[0].mxu0
        %v3654 = vpop.f32.mrb[0].mxu0
        %v3655 = vadd.f32 0.0, %v3654
        %v3656 = vpop.f32.mrb[0].mxu0
        %3657 = vmatprep.mubr.bf16.mxu0 0
        %3658 = vmatmul.mubr.bf16.gmra.mrb[0].mxu0 %v3563
        %v3659 = vpop.f32.mrb[0].mxu0
        %v3660 = vadd.f32 0.0, %v3659
        %v3661 = vpop.f32.mrb[0].mxu0
        %v3662 = vpop.f32.mrb[0].mxu0
        %v3663 = vadd.f32 0.0, %v3662
        %v3664 = vpop.f32.mrb[0].mxu0
        %3665 = vmatprep.mubr.bf16.mxu0 0
        %3666 = vmatmul.mubr.bf16.gmra.mrb[0].mxu0 %v3566
        %v3667 = vpop.f32.mrb[0].mxu0
        %v3668 = vadd.f32 0.0, %v3667
        %v3669 = vpop.f32.mrb[0].mxu0
        %v3670 = vpop.f32.mrb[0].mxu0
        %v3671 = vadd.f32 0.0, %v3670
        %v3672 = vpop.f32.mrb[0].mxu0
        %3673 = vmatprep.mubr.bf16.mxu0 0
        %3674 = vmatmul.mubr.bf16.gmra.mrb[0].mxu0 %v3569
        %v3675 = vpop.f32.mrb[0].mxu0
        %v3676 = vadd.f32 0.0, %v3675
        %v3677 = vpop.f32.mrb[0].mxu0
        %v3678 = vpop.f32.mrb[0].mxu0
        %v3679 = vadd.f32 0.0, %v3678
        %v3680 = vpop.f32.mrb[0].mxu0
        %3681 = vmatprep.mubr.bf16.mxu0 0
        %3682 = vmatmul.mubr.bf16.gmra.mrb[0].mxu0 %v3572
        %v3683 = vpop.f32.mrb[0].mxu0
        %v3684 = vadd.f32 0.0, %v3683
        %v3685 = vpop.f32.mrb[0].mxu0
        %v3686 = vpop.f32.mrb[0].mxu0
        %v3687 = vadd.f32 0.0, %v3686
        %v3688 = vpop.f32.mrb[0].mxu0
        %3689 = vmatprep.mubr.bf16.mxu0 0
        %3690 = vmatmul.mubr.bf16.gmra.mrb[0].mxu0 %v3575
        %v3691 = vpop.f32.mrb[0].mxu0
        %v3692 = vadd.f32 0.0, %v3691
        %v3693 = vpop.f32.mrb[0].mxu0
        %v3694 = vpop.f32.mrb[0].mxu0
        %v3695 = vadd.f32 0.0, %v3694
        %v3696 = vpop.f32.mrb[0].mxu0
        %3697 = vmatprep.mubr.bf16.mxu0 0
        %3698 = vmatmul.mubr.bf16.gmra.mrb[0].mxu0 %v3578
        %v3699 = vpop.f32.mrb[0].mxu0
        %v3700 = vadd.f32 0.0, %v3699
        %v3701 = vpop.f32.mrb[0].mxu0
        %v3702 = vpop.f32.mrb[0].mxu0
        %v3703 = vadd.f32 0.0, %v3702
        %v3704 = vpop.f32.mrb[0].mxu0
        %3705 = vmatprep.mubr.bf16.mxu0 0
        %3706 = vmatmul.mubr.bf16.gmra.mrb[0].mxu0 %v3581
        %v3707 = vpop.f32.mrb[0].mxu0
        %v3708 = vadd.f32 0.0, %v3707
        %v3709 = vpop.f32.mrb[0].mxu0
        %v3710 = vpop.f32.mrb[0].mxu0
        %v3711 = vadd.f32 0.0, %v3710
        %v3712 = vpop.f32.mrb[0].mxu0
        %3713 = vmatprep.mubr.bf16.mxu0 0
        %3714 = vmatmul.mubr.bf16.gmra.mrb[0].mxu0 %v3584
        %v3715 = vpop.f32.mrb[0].mxu0
        %v3716 = vadd.f32 0.0, %v3715
        %v3717 = vpop.f32.mrb[0].mxu0
        %v3718 = vpop.f32.mrb[0].mxu0
        %v3719 = vadd.f32 0.0, %v3718
        %v3720 = vpop.f32.mrb[0].mxu0
        %3721 = vmatprep.mubr.bf16.mxu0 0
        %3722 = vmatmul.mubr.bf16.gmra.mrb[0].mxu0 %v3587
        %v3723 = vpop.f32.mrb[0].mxu0
        %v3724 = vadd.f32 0.0, %v3723
        %v3725 = vpop.f32.mrb[0].mxu0
        %v3726 = vpop.f32.mrb[0].mxu0
        %v3727 = vadd.f32 0.0, %v3726
        %v3728 = vpop.f32.mrb[0].mxu0
        %3729 = vmatprep.mubr.bf16.mxu0 0
        %3730 = vmatmul.mubr.bf16.gmra.mrb[0].mxu0 %v3590
        %v3731 = vpop.f32.mrb[0].mxu0
        %v3732 = vadd.f32 0.0, %v3731
        %v3733 = vpop.f32.mrb[0].mxu0
        %v3734 = vpop.f32.mrb[0].mxu0
        %v3735 = vadd.f32 0.0, %v3734
        %v3736 = vpop.f32.mrb[0].mxu0
        %3737 = vmatprep.mubr.bf16.mxu0 0
        %3738 = vmatmul.mubr.bf16.gmra.mrb[0].mxu0 %v3593
        %v3739 = vpop.f32.mrb[0].mxu0
        %v3740 = vadd.f32 0.0, %v3739
        %v3741 = vpop.f32.mrb[0].mxu0
        %v3742 = vpop.f32.mrb[0].mxu0
        %v3743 = vadd.f32 0.0, %v3742
        %v3744 = vpop.f32.mrb[0].mxu0
        %3745 = vmatprep.mubr.bf16.mxu0 0
        %3746 = vmatmul.mubr.bf16.gmra.mrb[0].mxu0 %v3596
        %v3747 = vpop.f32.mrb[0].mxu0
        %v3748 = vadd.f32 0.0, %v3747
        %v3749 = vpop.f32.mrb[0].mxu0
        %v3750 = vpop.f32.mrb[0].mxu0
        %v3751 = vadd.f32 0.0, %v3750
        %v3752 = vpop.f32.mrb[0].mxu0
        %3753 = vmatprep.mubr.bf16.mxu0 0
        %3754 = vmatmul.mubr.bf16.gmra.mrb[0].mxu0 %v3599
        %v3755 = vpop.f32.mrb[0].mxu0
        %v3756 = vadd.f32 0.0, %v3755
        %v3757 = vpop.f32.mrb[0].mxu0
        %v3758 = vpop.f32.mrb[0].mxu0
        %v3759 = vadd.f32 0.0, %v3758
        %v3760 = vpop.f32.mrb[0].mxu0
        %3761 = vdwg.mxu0
        %v3762 = vadd.f32 %v3454, %v3636
        %v3763 = vadd.f32 %v3455, %v3639
        %v3764 = vadd.f32 %v3456, %v3644
        %v3765 = vadd.f32 %v3457, %v3647
        %v3766 = vadd.f32 %v3458, %v3652
        %v3767 = vadd.f32 %v3459, %v3655
        %v3768 = vadd.f32 %v3460, %v3660
        %v3769 = vadd.f32 %v3461, %v3663
        %v3770 = vadd.f32 %v3462, %v3668
        %v3771 = vadd.f32 %v3463, %v3671
        %v3772 = vadd.f32 %v3464, %v3676
        %v3773 = vadd.f32 %v3465, %v3679
        %v3774 = vadd.f32 %v3466, %v3684
        %v3775 = vadd.f32 %v3467, %v3687
        %v3776 = vadd.f32 %v3468, %v3692
        %v3777 = vadd.f32 %v3469, %v3695
        %v3778 = vadd.f32 %v3470, %v3700
        %v3779 = vadd.f32 %v3471, %v3703
        %v3780 = vadd.f32 %v3472, %v3708
        %v3781 = vadd.f32 %v3473, %v3711
        %v3782 = vadd.f32 %v3474, %v3716
        %v3783 = vadd.f32 %v3475, %v3719
        %v3784 = vadd.f32 %v3476, %v3724
        %v3785 = vadd.f32 %v3477, %v3727
        %v3786 = vadd.f32 %v3478, %v3732
        %v3787 = vadd.f32 %v3479, %v3735
        %v3788 = vadd.f32 %v3480, %v3740
        %v3789 = vadd.f32 %v3481, %v3743
        %v3790 = vadd.f32 %v3482, %v3748
        %v3791 = vadd.f32 %v3483, %v3751
        %v3792 = vadd.f32 %v3484, %v3756
        %v3793 = vadd.f32 %v3485, %v3759
        %v3794 = vld [vmem:[%s4] sm:$0x1]
        %v3796 = vlaneseq
        %v3797 = vshrl.u32 %v3796, 7
        %v3798 = vsub.s32 0, %v3797
        %v3799 = vrot.slane %v3794, %v3798
        %v3801 = vadd.f32 %v3762, %v3799
        %v3802 = vadd.f32 %v3763, %v3799
        %v3803 = vadd.f32 %v3764, %v3799
        %v3804 = vadd.f32 %v3765, %v3799
        %v3805 = vadd.f32 %v3766, %v3799
        %v3806 = vadd.f32 %v3767, %v3799
        %v3807 = vadd.f32 %v3768, %v3799
        %v3808 = vadd.f32 %v3769, %v3799
        %v3809 = vadd.f32 %v3770, %v3799
        %v3810 = vadd.f32 %v3771, %v3799
        %v3811 = vadd.f32 %v3772, %v3799
        %v3812 = vadd.f32 %v3773, %v3799
        %v3813 = vadd.f32 %v3774, %v3799
        %v3814 = vadd.f32 %v3775, %v3799
        %v3815 = vadd.f32 %v3776, %v3799
        %v3816 = vadd.f32 %v3777, %v3799
        %v3817 = vadd.f32 %v3778, %v3799
        %v3818 = vadd.f32 %v3779, %v3799
        %v3819 = vadd.f32 %v3780, %v3799
        %v3820 = vadd.f32 %v3781, %v3799
        %v3821 = vadd.f32 %v3782, %v3799
        %v3822 = vadd.f32 %v3783, %v3799
        %v3823 = vadd.f32 %v3784, %v3799
        %v3824 = vadd.f32 %v3785, %v3799
        %v3825 = vadd.f32 %v3786, %v3799
        %v3826 = vadd.f32 %v3787, %v3799
        %v3827 = vadd.f32 %v3788, %v3799
        %v3828 = vadd.f32 %v3789, %v3799
        %v3829 = vadd.f32 %v3790, %v3799
        %v3830 = vadd.f32 %v3791, %v3799
        %v3831 = vadd.f32 %v3792, %v3799
        %v3832 = vadd.f32 %v3793, %v3799
        %v3833 = vmax.f32 %v3801, 0.0
        %v3834 = vmax.f32 %v3802, 0.0
        %v3835 = vmax.f32 %v3803, 0.0
        %v3836 = vmax.f32 %v3804, 0.0
        %v3837 = vmax.f32 %v3805, 0.0
        %v3838 = vmax.f32 %v3806, 0.0
        %v3839 = vmax.f32 %v3807, 0.0
        %v3840 = vmax.f32 %v3808, 0.0
        %v3841 = vmax.f32 %v3809, 0.0
        %v3842 = vmax.f32 %v3810, 0.0
        %v3843 = vmax.f32 %v3811, 0.0
        %v3844 = vmax.f32 %v3812, 0.0
        %v3845 = vmax.f32 %v3813, 0.0
        %v3846 = vmax.f32 %v3814, 0.0
        %v3847 = vmax.f32 %v3815, 0.0
        %v3848 = vmax.f32 %v3816, 0.0
        %v3849 = vmax.f32 %v3817, 0.0
        %v3850 = vmax.f32 %v3818, 0.0
        %v3851 = vmax.f32 %v3819, 0.0
        %v3852 = vmax.f32 %v3820, 0.0
        %v3853 = vmax.f32 %v3821, 0.0
        %v3854 = vmax.f32 %v3822, 0.0
        %v3855 = vmax.f32 %v3823, 0.0
        %v3856 = vmax.f32 %v3824, 0.0
        %v3857 = vmax.f32 %v3825, 0.0
        %v3858 = vmax.f32 %v3826, 0.0
        %v3859 = vmax.f32 %v3827, 0.0
        %v3860 = vmax.f32 %v3828, 0.0
        %v3861 = vmax.f32 %v3829, 0.0
        %v3862 = vmax.f32 %v3830, 0.0
        %v3863 = vmax.f32 %v3831, 0.0
        %v3864 = vmax.f32 %v3832, 0.0
        %v3865 = vpack.c.bf16 %v3834, %v3833
        %v3866 = vpack.c.bf16 %v3836, %v3835
        %v3867 = vpack.c.bf16 %v3838, %v3837
        %v3868 = vpack.c.bf16 %v3840, %v3839
        %v3869 = vpack.c.bf16 %v3842, %v3841
        %v3870 = vpack.c.bf16 %v3844, %v3843
        %v3871 = vpack.c.bf16 %v3846, %v3845
        %v3872 = vpack.c.bf16 %v3848, %v3847
        %v3873 = vpack.c.bf16 %v3850, %v3849
        %v3874 = vpack.c.bf16 %v3852, %v3851
        %v3875 = vpack.c.bf16 %v3854, %v3853
        %v3876 = vpack.c.bf16 %v3856, %v3855
        %v3877 = vpack.c.bf16 %v3858, %v3857
        %v3878 = vpack.c.bf16 %v3860, %v3859
        %v3879 = vpack.c.bf16 %v3862, %v3861
        %v3880 = vpack.c.bf16 %v3864, %v3863
        %v3881 = vld [vmem:[%s5] sm:$0xf]
        %v3882 = vld [vmem:[%s5 + $0x4] sm:$0xf]
        %v3883 = vld [vmem:[%s5 + $0x8] sm:$0xf]
        %v3884 = vld [vmem:[%s5 + $0xc] sm:$0xf]
        %v3885 = vld [vmem:[%s6] sm:$0x1]
        %v3887 = vlaneseq
        %v3888 = vshrl.u32 %v3887, 7
        %v3889 = vsub.s32 0, %v3888
        %v3890 = vrot.slane %v3885, %v3889
        %v3896 = vunpack.c.l.b16 %v3881
        %v3897 = vunpack.c.l.b16 %v3882
        %v3898 = vunpack.c.l.b16 %v3883
        %v3899 = vunpack.c.l.b16 %v3884
        %v3900 = vpack.c.b16 %v3897, %v3896
        %v3901 = vpack.c.b16 %v3899, %v3898
        %v3905 = vsel %vm1333, %v3865, 0
        %v3908 = vsel %vm1333, %v3866, 0
        %v3911 = vsel %vm1333, %v3867, 0
        %v3914 = vsel %vm1333, %v3868, 0
        %v3917 = vsel %vm1333, %v3869, 0
        %v3920 = vsel %vm1333, %v3870, 0
        %v3923 = vsel %vm1333, %v3871, 0
        %v3926 = vsel %vm1333, %v3872, 0
        %v3929 = vsel %vm1333, %v3873, 0
        %v3932 = vsel %vm1333, %v3874, 0
        %v3935 = vsel %vm1333, %v3875, 0
        %v3938 = vsel %vm1333, %v3876, 0
        %v3941 = vsel %vm1333, %v3877, 0
        %v3944 = vsel %vm1333, %v3878, 0
        %v3947 = vsel %vm1333, %v3879, 0
        %v3950 = vsel %vm1333, %v3880, 0
        %3952 = vmatprep.subr.bf16.mxu0 0
        %3953 = vmatpush1.bf16.msra.mxu0 %v3900
        %3954 = vmatprep.subr.bf16.mxu0 0
        %3955 = vmatpush1.bf16.msra.mxu0 %v3901
        %3956 = vmatprep.subr.bf16.mxu0 0
        %3957 = vmatpush1.bf16.msra.mxu0 0
        %3958 = vmatprep.subr.bf16.mxu0 0
        %3959 = vmatpush1.bf16.msra.mxu0 0
        %3960 = vmatprep.subr.bf16.mxu0 0
        %3961 = vmatpush1.bf16.msra.mxu0 0
        %3962 = vmatprep.subr.bf16.mxu0 0
        %3963 = vmatpush1.bf16.msra.mxu0 0
        %3964 = vmatprep.subr.bf16.mxu0 0
        %3965 = vmatpush1.bf16.msra.mxu0 0
        %3966 = vmatprep.subr.bf16.mxu0 0
        %3967 = vmatpush1.bf16.msra.mxu0 0
        %3968 = vmatprep.subr.bf16.mxu0 0
        %3969 = vmatpush1.bf16.msra.mxu0 0
        %3970 = vmatprep.subr.bf16.mxu0 0
        %3971 = vmatpush1.bf16.msra.mxu0 0
        %3972 = vmatprep.subr.bf16.mxu0 0
        %3973 = vmatpush1.bf16.msra.mxu0 0
        %3974 = vmatprep.subr.bf16.mxu0 0
        %3975 = vmatpush1.bf16.msra.mxu0 0
        %3976 = vmatprep.subr.bf16.mxu0 0
        %3977 = vmatpush1.bf16.msra.mxu0 0
        %3978 = vmatprep.subr.bf16.mxu0 0
        %3979 = vmatpush1.bf16.msra.mxu0 0
        %3980 = vmatprep.subr.bf16.mxu0 0
        %3981 = vmatpush1.bf16.msra.mxu0 0
        %3982 = vmatprep.subr.bf16.mxu0 0
        %3983 = vmatpush1.bf16.msra.mxu0 0
        %3984 = vmatprep.mubr.bf16.mxu0 0
        %3985 = vmatmul.mubr.bf16.gmra.mrb[0].mxu0 %v3905
        %v3986 = vpop.f32.mrb[0].mxu0
        %v3987 = vadd.f32 %v3890, %v3986
        %v3988 = vpop.f32.mrb[0].mxu0
        %v3989 = vpop.f32.mrb[0].mxu0
        %v3990 = vadd.f32 %v3890, %v3989
        %v3991 = vpop.f32.mrb[0].mxu0
        %3992 = vmatprep.mubr.bf16.mxu0 0
        %3993 = vmatmul.mubr.bf16.gmra.mrb[0].mxu0 %v3908
        %v3994 = vpop.f32.mrb[0].mxu0
        %v3995 = vadd.f32 %v3890, %v3994
        %v3996 = vpop.f32.mrb[0].mxu0
        %v3997 = vpop.f32.mrb[0].mxu0
        %v3998 = vadd.f32 %v3890, %v3997
        %v3999 = vpop.f32.mrb[0].mxu0
        %4000 = vmatprep.mubr.bf16.mxu0 0
        %4001 = vmatmul.mubr.bf16.gmra.mrb[0].mxu0 %v3911
        %v4002 = vpop.f32.mrb[0].mxu0
        %v4003 = vadd.f32 %v3890, %v4002
        %v4004 = vpop.f32.mrb[0].mxu0
        %v4005 = vpop.f32.mrb[0].mxu0
        %v4006 = vadd.f32 %v3890, %v4005
        %v4007 = vpop.f32.mrb[0].mxu0
        %4008 = vmatprep.mubr.bf16.mxu0 0
        %4009 = vmatmul.mubr.bf16.gmra.mrb[0].mxu0 %v3914
        %v4010 = vpop.f32.mrb[0].mxu0
        %v4011 = vadd.f32 %v3890, %v4010
        %v4012 = vpop.f32.mrb[0].mxu0
        %v4013 = vpop.f32.mrb[0].mxu0
        %v4014 = vadd.f32 %v3890, %v4013
        %v4015 = vpop.f32.mrb[0].mxu0
        %4016 = vmatprep.mubr.bf16.mxu0 0
        %4017 = vmatmul.mubr.bf16.gmra.mrb[0].mxu0 %v3917
        %v4018 = vpop.f32.mrb[0].mxu0
        %v4019 = vadd.f32 %v3890, %v4018
        %v4020 = vpop.f32.mrb[0].mxu0
        %v4021 = vpop.f32.mrb[0].mxu0
        %v4022 = vadd.f32 %v3890, %v4021
        %v4023 = vpop.f32.mrb[0].mxu0
        %4024 = vmatprep.mubr.bf16.mxu0 0
        %4025 = vmatmul.mubr.bf16.gmra.mrb[0].mxu0 %v3920
        %v4026 = vpop.f32.mrb[0].mxu0
        %v4027 = vadd.f32 %v3890, %v4026
        %v4028 = vpop.f32.mrb[0].mxu0
        %v4029 = vpop.f32.mrb[0].mxu0
        %v4030 = vadd.f32 %v3890, %v4029
        %v4031 = vpop.f32.mrb[0].mxu0
        %4032 = vmatprep.mubr.bf16.mxu0 0
        %4033 = vmatmul.mubr.bf16.gmra.mrb[0].mxu0 %v3923
        %v4034 = vpop.f32.mrb[0].mxu0
        %v4035 = vadd.f32 %v3890, %v4034
        %v4036 = vpop.f32.mrb[0].mxu0
        %v4037 = vpop.f32.mrb[0].mxu0
        %v4038 = vadd.f32 %v3890, %v4037
        %v4039 = vpop.f32.mrb[0].mxu0
        %4040 = vmatprep.mubr.bf16.mxu0 0
        %4041 = vmatmul.mubr.bf16.gmra.mrb[0].mxu0 %v3926
        %v4042 = vpop.f32.mrb[0].mxu0
        %v4043 = vadd.f32 %v3890, %v4042
        %v4044 = vpop.f32.mrb[0].mxu0
        %v4045 = vpop.f32.mrb[0].mxu0
        %v4046 = vadd.f32 %v3890, %v4045
        %v4047 = vpop.f32.mrb[0].mxu0
        %4048 = vmatprep.mubr.bf16.mxu0 0
        %4049 = vmatmul.mubr.bf16.gmra.mrb[0].mxu0 %v3929
        %v4050 = vpop.f32.mrb[0].mxu0
        %v4051 = vadd.f32 %v3890, %v4050
        %v4052 = vpop.f32.mrb[0].mxu0
        %v4053 = vpop.f32.mrb[0].mxu0
        %v4054 = vadd.f32 %v3890, %v4053
        %v4055 = vpop.f32.mrb[0].mxu0
        %4056 = vmatprep.mubr.bf16.mxu0 0
        %4057 = vmatmul.mubr.bf16.gmra.mrb[0].mxu0 %v3932
        %v4058 = vpop.f32.mrb[0].mxu0
        %v4059 = vadd.f32 %v3890, %v4058
        %v4060 = vpop.f32.mrb[0].mxu0
        %v4061 = vpop.f32.mrb[0].mxu0
        %v4062 = vadd.f32 %v3890, %v4061
        %v4063 = vpop.f32.mrb[0].mxu0
        %4064 = vmatprep.mubr.bf16.mxu0 0
        %4065 = vmatmul.mubr.bf16.gmra.mrb[0].mxu0 %v3935
        %v4066 = vpop.f32.mrb[0].mxu0
        %v4067 = vadd.f32 %v3890, %v4066
        %v4068 = vpop.f32.mrb[0].mxu0
        %v4069 = vpop.f32.mrb[0].mxu0
        %v4070 = vadd.f32 %v3890, %v4069
        %v4071 = vpop.f32.mrb[0].mxu0
        %4072 = vmatprep.mubr.bf16.mxu0 0
        %4073 = vmatmul.mubr.bf16.gmra.mrb[0].mxu0 %v3938
        %v4074 = vpop.f32.mrb[0].mxu0
        %v4075 = vadd.f32 %v3890, %v4074
        %v4076 = vpop.f32.mrb[0].mxu0
        %v4077 = vpop.f32.mrb[0].mxu0
        %v4078 = vadd.f32 %v3890, %v4077
        %v4079 = vpop.f32.mrb[0].mxu0
        %4080 = vmatprep.mubr.bf16.mxu0 0
        %4081 = vmatmul.mubr.bf16.gmra.mrb[0].mxu0 %v3941
        %v4082 = vpop.f32.mrb[0].mxu0
        %v4083 = vadd.f32 %v3890, %v4082
        %v4084 = vpop.f32.mrb[0].mxu0
        %v4085 = vpop.f32.mrb[0].mxu0
        %v4086 = vadd.f32 %v3890, %v4085
        %v4087 = vpop.f32.mrb[0].mxu0
        %4088 = vmatprep.mubr.bf16.mxu0 0
        %4089 = vmatmul.mubr.bf16.gmra.mrb[0].mxu0 %v3944
        %v4090 = vpop.f32.mrb[0].mxu0
        %v4091 = vadd.f32 %v3890, %v4090
        %v4092 = vpop.f32.mrb[0].mxu0
        %v4093 = vpop.f32.mrb[0].mxu0
        %v4094 = vadd.f32 %v3890, %v4093
        %v4095 = vpop.f32.mrb[0].mxu0
        %4096 = vmatprep.mubr.bf16.mxu0 0
        %4097 = vmatmul.mubr.bf16.gmra.mrb[0].mxu0 %v3947
        %v4098 = vpop.f32.mrb[0].mxu0
        %v4099 = vadd.f32 %v3890, %v4098
        %v4100 = vpop.f32.mrb[0].mxu0
        %v4101 = vpop.f32.mrb[0].mxu0
        %v4102 = vadd.f32 %v3890, %v4101
        %v4103 = vpop.f32.mrb[0].mxu0
        %4104 = vmatprep.mubr.bf16.mxu0 0
        %4105 = vmatmul.mubr.bf16.gmra.mrb[0].mxu0 %v3950
        %v4106 = vpop.f32.mrb[0].mxu0
        %v4107 = vadd.f32 %v3890, %v4106
        %v4108 = vpop.f32.mrb[0].mxu0
        %v4109 = vpop.f32.mrb[0].mxu0
        %v4110 = vadd.f32 %v3890, %v4109
        %v4111 = vpop.f32.mrb[0].mxu0
        %4112 = vdwg.mxu0
        %v4113 = vunpack.c.l.bf16 %v313
        %v4114 = vunpack.c.l.bf16 %v314
        %v4115 = vunpack.c.l.bf16 %v315
        %v4116 = vunpack.c.l.bf16 %v316
        %v4117 = vunpack.c.l.bf16 %v317
        %v4118 = vunpack.c.l.bf16 %v318
        %v4119 = vunpack.c.l.bf16 %v319
        %v4120 = vunpack.c.l.bf16 %v320
        %v4121 = vunpack.c.l.bf16 %v321
        %v4122 = vunpack.c.l.bf16 %v322
        %v4123 = vunpack.c.l.bf16 %v323
        %v4124 = vunpack.c.l.bf16 %v324
        %v4125 = vunpack.c.l.bf16 %v325
        %v4126 = vunpack.c.l.bf16 %v326
        %v4127 = vunpack.c.l.bf16 %v327
        %v4128 = vunpack.c.l.bf16 %v328
        %v4129 = vunpack.c.l.bf16 %v329
        %v4130 = vunpack.c.l.bf16 %v330
        %v4131 = vunpack.c.l.bf16 %v331
        %v4132 = vunpack.c.l.bf16 %v332
        %v4133 = vunpack.c.l.bf16 %v333
        %v4134 = vunpack.c.l.bf16 %v334
        %v4135 = vunpack.c.l.bf16 %v335
        %v4136 = vunpack.c.l.bf16 %v336
        %v4137 = vunpack.c.l.bf16 %v337
        %v4138 = vunpack.c.l.bf16 %v338
        %v4139 = vunpack.c.l.bf16 %v339
        %v4140 = vunpack.c.l.bf16 %v340
        %v4141 = vunpack.c.l.bf16 %v341
        %v4142 = vunpack.c.l.bf16 %v342
        %v4143 = vunpack.c.l.bf16 %v343
        %v4144 = vunpack.c.l.bf16 %v344
        %v4145 = vadd.f32 %v3987, %v4113
        %v4146 = vadd.f32 %v3990, %v4114
        %v4147 = vadd.f32 %v3995, %v4115
        %v4148 = vadd.f32 %v3998, %v4116
        %v4149 = vadd.f32 %v4003, %v4117
        %v4150 = vadd.f32 %v4006, %v4118
        %v4151 = vadd.f32 %v4011, %v4119
        %v4152 = vadd.f32 %v4014, %v4120
        %v4153 = vadd.f32 %v4019, %v4121
        %v4154 = vadd.f32 %v4022, %v4122
        %v4155 = vadd.f32 %v4027, %v4123
        %v4156 = vadd.f32 %v4030, %v4124
        %v4157 = vadd.f32 %v4035, %v4125
        %v4158 = vadd.f32 %v4038, %v4126
        %v4159 = vadd.f32 %v4043, %v4127
        %v4160 = vadd.f32 %v4046, %v4128
        %v4161 = vadd.f32 %v4051, %v4129
        %v4162 = vadd.f32 %v4054, %v4130
        %v4163 = vadd.f32 %v4059, %v4131
        %v4164 = vadd.f32 %v4062, %v4132
        %v4165 = vadd.f32 %v4067, %v4133
        %v4166 = vadd.f32 %v4070, %v4134
        %v4167 = vadd.f32 %v4075, %v4135
        %v4168 = vadd.f32 %v4078, %v4136
        %v4169 = vadd.f32 %v4083, %v4137
        %v4170 = vadd.f32 %v4086, %v4138
        %v4171 = vadd.f32 %v4091, %v4139
        %v4172 = vadd.f32 %v4094, %v4140
        %v4173 = vadd.f32 %v4099, %v4141
        %v4174 = vadd.f32 %v4102, %v4142
        %v4175 = vadd.f32 %v4107, %v4143
        %v4176 = vadd.f32 %v4110, %v4144
        %v4177 = vmax.f32 %v4145, 0.0
        %v4178 = vmax.f32 %v4146, 0.0
        %v4179 = vmax.f32 %v4147, 0.0
        %v4180 = vmax.f32 %v4148, 0.0
        %v4181 = vmax.f32 %v4149, 0.0
        %v4182 = vmax.f32 %v4150, 0.0
        %v4183 = vmax.f32 %v4151, 0.0
        %v4184 = vmax.f32 %v4152, 0.0
        %v4185 = vmax.f32 %v4153, 0.0
        %v4186 = vmax.f32 %v4154, 0.0
        %v4187 = vmax.f32 %v4155, 0.0
        %v4188 = vmax.f32 %v4156, 0.0
        %v4189 = vmax.f32 %v4157, 0.0
        %v4190 = vmax.f32 %v4158, 0.0
        %v4191 = vmax.f32 %v4159, 0.0
        %v4192 = vmax.f32 %v4160, 0.0
        %v4193 = vmax.f32 %v4161, 0.0
        %v4194 = vmax.f32 %v4162, 0.0
        %v4195 = vmax.f32 %v4163, 0.0
        %v4196 = vmax.f32 %v4164, 0.0
        %v4197 = vmax.f32 %v4165, 0.0
        %v4198 = vmax.f32 %v4166, 0.0
        %v4199 = vmax.f32 %v4167, 0.0
        %v4200 = vmax.f32 %v4168, 0.0
        %v4201 = vmax.f32 %v4169, 0.0
        %v4202 = vmax.f32 %v4170, 0.0
        %v4203 = vmax.f32 %v4171, 0.0
        %v4204 = vmax.f32 %v4172, 0.0
        %v4205 = vmax.f32 %v4173, 0.0
        %v4206 = vmax.f32 %v4174, 0.0
        %v4207 = vmax.f32 %v4175, 0.0
        %v4208 = vmax.f32 %v4176, 0.0
        %v4209 = vpack.c.bf16 %v4178, %v4177
        %v4210 = vpack.c.bf16 %v4180, %v4179
        %v4211 = vpack.c.bf16 %v4182, %v4181
        %v4212 = vpack.c.bf16 %v4184, %v4183
        %v4213 = vpack.c.bf16 %v4186, %v4185
        %v4214 = vpack.c.bf16 %v4188, %v4187
        %v4215 = vpack.c.bf16 %v4190, %v4189
        %v4216 = vpack.c.bf16 %v4192, %v4191
        %v4217 = vpack.c.bf16 %v4194, %v4193
        %v4218 = vpack.c.bf16 %v4196, %v4195
        %v4219 = vpack.c.bf16 %v4198, %v4197
        %v4220 = vpack.c.bf16 %v4200, %v4199
        %v4221 = vpack.c.bf16 %v4202, %v4201
        %v4222 = vpack.c.bf16 %v4204, %v4203
        %v4223 = vpack.c.bf16 %v4206, %v4205
        %v4224 = vpack.c.bf16 %v4208, %v4207
        %v4241 = vunpack.c.l.b16 %v4209
        %v4242 = vunpack.c.h.b16 %v4209
        %v4243 = vunpack.c.l.b16 %v4210
        %v4244 = vunpack.c.h.b16 %v4210
        %v4245 = vunpack.c.l.b16 %v4211
        %v4246 = vunpack.c.h.b16 %v4211
        %v4247 = vunpack.c.l.b16 %v4212
        %v4248 = vunpack.c.h.b16 %v4212
        %v4249 = vunpack.c.l.b16 %v4213
        %v4250 = vunpack.c.h.b16 %v4213
        %v4251 = vunpack.c.l.b16 %v4214
        %v4252 = vunpack.c.h.b16 %v4214
        %v4253 = vunpack.c.l.b16 %v4215
        %v4254 = vunpack.c.h.b16 %v4215
        %v4255 = vunpack.c.l.b16 %v4216
        %v4256 = vunpack.c.h.b16 %v4216
        %v4257 = vunpack.c.l.b16 %v4217
        %v4258 = vunpack.c.h.b16 %v4217
        %v4259 = vunpack.c.l.b16 %v4218
        %v4260 = vunpack.c.h.b16 %v4218
        %v4261 = vunpack.c.l.b16 %v4219
        %v4262 = vunpack.c.h.b16 %v4219
        %v4263 = vunpack.c.l.b16 %v4220
        %v4264 = vunpack.c.h.b16 %v4220
        %v4265 = vunpack.c.l.b16 %v4221
        %v4266 = vunpack.c.h.b16 %v4221
        %v4267 = vunpack.c.l.b16 %v4222
        %v4268 = vunpack.c.h.b16 %v4222
        %v4269 = vunpack.c.l.b16 %v4223
        %v4270 = vunpack.c.h.b16 %v4223
        %v4271 = vunpack.c.l.b16 %v4224
        %v4272 = vunpack.c.h.b16 %v4224
        %v4273 = vpack.c.b16 %v4241, %v4241
        %v4274 = vpack.c.b16 %v4242, %v4242
        %v4275 = vpack.c.b16 %v4243, %v4243
        %v4276 = vpack.c.b16 %v4244, %v4244
        %v4277 = vpack.c.b16 %v4245, %v4245
        %v4278 = vpack.c.b16 %v4246, %v4246
        %v4279 = vpack.c.b16 %v4247, %v4247
        %v4280 = vpack.c.b16 %v4248, %v4248
        %v4281 = vpack.c.b16 %v4249, %v4249
        %v4282 = vpack.c.b16 %v4250, %v4250
        %v4283 = vpack.c.b16 %v4251, %v4251
        %v4284 = vpack.c.b16 %v4252, %v4252
        %v4285 = vpack.c.b16 %v4253, %v4253
        %v4286 = vpack.c.b16 %v4254, %v4254
        %v4287 = vpack.c.b16 %v4255, %v4255
        %v4288 = vpack.c.b16 %v4256, %v4256
        %v4289 = vpack.c.b16 %v4257, %v4257
        %v4290 = vpack.c.b16 %v4258, %v4258
        %v4291 = vpack.c.b16 %v4259, %v4259
        %v4292 = vpack.c.b16 %v4260, %v4260
        %v4293 = vpack.c.b16 %v4261, %v4261
        %v4294 = vpack.c.b16 %v4262, %v4262
        %v4295 = vpack.c.b16 %v4263, %v4263
        %v4296 = vpack.c.b16 %v4264, %v4264
        %v4297 = vpack.c.b16 %v4265, %v4265
        %v4298 = vpack.c.b16 %v4266, %v4266
        %v4299 = vpack.c.b16 %v4267, %v4267
        %v4300 = vpack.c.b16 %v4268, %v4268
        %v4301 = vpack.c.b16 %v4269, %v4269
        %v4302 = vpack.c.b16 %v4270, %v4270
        %v4303 = vpack.c.b16 %v4271, %v4271
        %v4304 = vpack.c.b16 %v4272, %v4272
        %4337 = vst [vmem:[%s311] sm:$0xf] %v4273
        %4338 = vst [vmem:[%s311 + $0x4] sm:$0xf] %v4274
        %4339 = vst [vmem:[%s311 + $0x8] sm:$0xf] %v4275
        %4340 = vst [vmem:[%s311 + $0xc] sm:$0xf] %v4276
        %4341 = vst [vmem:[%s311 + $0x10] sm:$0xf] %v4277
        %4342 = vst [vmem:[%s311 + $0x14] sm:$0xf] %v4278
        %4343 = vst [vmem:[%s311 + $0x18] sm:$0xf] %v4279
        %4344 = vst [vmem:[%s311 + $0x1c] sm:$0xf] %v4280
        %4345 = vst [vmem:[%s311 + $0x20] sm:$0xf] %v4281
        %4346 = vst [vmem:[%s311 + $0x24] sm:$0xf] %v4282
        %4347 = vst [vmem:[%s311 + $0x28] sm:$0xf] %v4283
        %4348 = vst [vmem:[%s311 + $0x2c] sm:$0xf] %v4284
        %4349 = vst [vmem:[%s311 + $0x30] sm:$0xf] %v4285
        %4350 = vst [vmem:[%s311 + $0x34] sm:$0xf] %v4286
        %4351 = vst [vmem:[%s311 + $0x38] sm:$0xf] %v4287
        %4352 = vst [vmem:[%s311 + $0x3c] sm:$0xf] %v4288
        %4353 = vst [vmem:[%s311 + $0x40] sm:$0xf] %v4289
        %4354 = vst [vmem:[%s311 + $0x44] sm:$0xf] %v4290
        %4355 = vst [vmem:[%s311 + $0x48] sm:$0xf] %v4291
        %4356 = vst [vmem:[%s311 + $0x4c] sm:$0xf] %v4292
        %4357 = vst [vmem:[%s311 + $0x50] sm:$0xf] %v4293
        %4358 = vst [vmem:[%s311 + $0x54] sm:$0xf] %v4294
        %4359 = vst [vmem:[%s311 + $0x58] sm:$0xf] %v4295
        %4360 = vst [vmem:[%s311 + $0x5c] sm:$0xf] %v4296
        %4361 = vst [vmem:[%s311 + $0x60] sm:$0xf] %v4297
        %4362 = vst [vmem:[%s311 + $0x64] sm:$0xf] %v4298
        %4363 = vst [vmem:[%s311 + $0x68] sm:$0xf] %v4299
        %4364 = vst [vmem:[%s311 + $0x6c] sm:$0xf] %v4300
        %4365 = vst [vmem:[%s311 + $0x70] sm:$0xf] %v4301
        %4366 = vst [vmem:[%s311 + $0x74] sm:$0xf] %v4302
        %4367 = vst [vmem:[%s311 + $0x78] sm:$0xf] %v4303
        %4368 = vst [vmem:[%s311 + $0x7c] sm:$0xf] %v4304
        %s4369 = sand.u32 %s185, 1
        %s4370 = scalar_lea.sflag [#allocation4], %s4369
        %s4371 = sand.u32 %s185, 1
        %s4372 = smul.addr %s4371, 128
        %s4373 = scalar_lea.vmem [#allocation7], %s4372
        // Predicated region
        $region57: #{tpu_custom_call.1} parent=47 // pred_check
          %p4374 = pneg %p195
        $region58: #{tpu_custom_call.1} parent=47 // pred_check_branch
          %4376 = sbr.rel (%p4374) target = $region60
        $region59: #{tpu_custom_call.1} parent=47 // pred_region
          %s4378 = ssub.s32 2048, 2048
          %4379 = vsyncadd %s4370, %s4378
          %s4380 = smul.addr %s25, 32
          %s4381 = smul.addr %s4380, 64
          %s4382 = scalar_lea.hbm %s7, %s4381
          %s4383 = sshll.u32 %s4373, 4
          %s4384 = int_to_ptr.vmem [resolvable:$true] %s4383
          %4389 = dma.vmem_to_hbm [thread:$0]  %s4384, 2048, %s4382, %s4370, 64, 64, 4
        $region60: #{tpu_custom_call.1} parent=47 // pred_fallthru
          _
      $region48: #{tpu_custom_call.1} parent=5 // pred_fallthru
        _
      %p4390 = scmp.le.s32.totalorder 2, %s20
      // Predicated region
      $region61: #{tpu_custom_call.1} parent=5 // pred_check
        %p4391 = pneg %p4390
      $region62: #{tpu_custom_call.1} parent=5 // pred_check_branch
        %4393 = sbr.rel (%p4391) target = $region64
      $region63: #{tpu_custom_call.1} parent=5 // pred_region
        %s4394 = ssub.s32 %s20, 2
        // Predicated region
        $region65: #{tpu_custom_call.1} parent=63 // pred_check
          %p4395 = pneg %p201
        $region66: #{tpu_custom_call.1} parent=63 // pred_check_branch
          %4397 = sbr.rel (%p4395) target = $region68
        $region67: #{tpu_custom_call.1} parent=63 // pred_region
          %s4398 = sand.u32 %s186, 1
          %s4399 = scalar_lea.sflag [#allocation4], %s4398
          %s4400 = sand.u32 %s186, 1
          %s4401 = smul.addr %s4400, 128
          %s4402 = scalar_lea.vmem [#allocation7], %s4401
          %4403 = dma.done %s4399, 2048
        $region68: #{tpu_custom_call.1} parent=63 // pred_fallthru
          _
      $region64: #{tpu_custom_call.1} parent=5 // pred_fallthru
        _
    $region6: #{tpu_custom_call.1} parent=1 // loop_footer
      %s24 = sadd.s32 1, %s20
    $region7: #{tpu_custom_call.1} parent=1 // loop_footer_branch
      %19 = sbr.rel target = $region3
    $region8: #{tpu_custom_call.1} parent=1 // loop_exit
      _
    %4404 = vsyncpa [#allocation3], 1
    %s4405 = scalar_lea.sflag [#allocation3], 1
    %4406 = vsyncpa %s4405, 1
    %4407 = vsyncpa [#allocation6], 1
    %4408 = vsyncpa [#allocation4], 1
    %s4409 = scalar_lea.sflag [#allocation4], 1
    %4410 = vsyncpa %s4409, 1

</llo_original>
